<compile_context>
chip_gen: v7x
topology: tpu7x:2x2x1
jax: 0.10.0
libtpu: 0.0.40
codegen_flags: <defaults>
</compile_context>

<pallas_src>
import functools

import jax
import jax.numpy as jnp
from jax.experimental import pallas as pl
from jax.experimental.pallas import tpu as pltpu

_CIN_PAD = 8  # pad 3-channel inputs to 8 channels for sublane-aligned im2col


# ----------------------------------------------------------------------------
# Fused kernel: one grid step == one image through Encoder -> Noiser -> Decoder
# ----------------------------------------------------------------------------
def _fused_encdec_kernel(*refs, n_enc, n_dec, H, W):
    HW = H * W
    it = iter(refs)
    img_ref = next(it)        # (1, 8, HW)   image, channels 3..7 are zero
    msg_ref = next(it)        # (1, 1, L)    message (row)
    masks_ref = next(it)      # (9, HW)      per-tap validity mask (zero padding)
    enc_layers = [(next(it), next(it), next(it)) for _ in range(n_enc)]
    ea_w = next(it)           # (Cout, 9*(Cenc + 8))  after-concat conv [feat|img]
    ea_scale = next(it)       # (Cout, 1)
    ea_bias = next(it)        # (Cout, 1)
    ea_wmsg = next(it)        # (9*Cout, L)  per-tap message weights
    ef_w = next(it)           # (8, Cenc)    1x1 final conv (rows 3..7 zero)
    ef_b = next(it)           # (8, 1)
    dec_layers = [(next(it), next(it), next(it)) for _ in range(n_dec)]
    lin_w = next(it)          # (L, L)
    lin_b = next(it)          # (L, 1)
    o_enc_ref = next(it)      # (1, 3, HW)
    o_dec_ref = next(it)      # (1, L, 1)

    masks = masks_ref[...]                                    # (9, HW) f32
    offsets = [(dy, dx) for dy in range(3) for dx in range(3)]

    def im2col(x):
        # (C, HW) -> (9*C, HW): 9 lane-rolled + masked taps, stacked on sublanes.
        cols = []
        for t, (dy, dx) in enumerate(offsets):
            s = (dy - 1) * W + (dx - 1)
            tap = x if s == 0 else pltpu.roll(x, shift=(-s) % HW, axis=1)
            cols.append(tap * masks[t:t + 1, :])
        return jnp.concatenate(cols, axis=0)

    def conv_bn_relu(cols, w_ref, scale_ref, bias_ref, pre_add=None):
        # One MXU matmul with K = 9*Cin, then folded-BN affine + ReLU (VPU).
        y = jnp.dot(w_ref[...], cols, preferred_element_type=jnp.float32)
        if pre_add is not None:
            y = y + pre_add
        return jnp.maximum(y * scale_ref[...] + bias_ref[...], 0.0)

    img = img_ref[0]                                          # (8, HW)
    img_cols = im2col(img)                                    # (72, HW), reused twice

    # ---------------- Encoder ----------------
    x = conv_bn_relu(img_cols, *enc_layers[0])
    for layer in enc_layers[1:]:
        x = conv_bn_relu(im2col(x), *layer)

    # after-concat conv over [message, features, image]; the message is constant
    # over HW, so its 3x3-conv contribution is 9 rank-1 terms gated by the tap
    # masks (exact, incl. zero-padding at the borders).
    msg_row = msg_ref[0]                                      # (1, L)
    wmsg = ea_wmsg[...]                                       # (9*Cout, L)
    cout = ea_scale.shape[0]
    msg_contrib = jnp.zeros((cout, HW), jnp.float32)
    for t in range(9):
        c_t = jnp.sum(wmsg[t * cout:(t + 1) * cout, :] * msg_row,
                      axis=1, keepdims=True)                  # (Cout, 1)
        msg_contrib = msg_contrib + c_t * masks[t:t + 1, :]
    x = conv_bn_relu(jnp.concatenate([im2col(x), img_cols], axis=0),
                     ea_w, ea_scale, ea_bias, pre_add=msg_contrib)

    # fused 1x1 final conv -> encoded image (output rows 3..7 are zero padding)
    enc_img = jnp.dot(ef_w[...], x, preferred_element_type=jnp.float32) + ef_b[...]
    o_enc_ref[0] = enc_img[0:3, :]                            # lane-dense (3, 256) store

    # ---------------- Noiser ----------------
    # TODO(synk): ScreenShooting noise (random perspective warp + moire + light
    # distortion) has no clean Pallas equivalent; identity pass-through (float32).
    z = enc_img                                               # (8, HW), rows 3..7 zero

    # ---------------- Decoder ----------------
    for layer in dec_layers:
        z = conv_bn_relu(im2col(z), *layer)                   # last layer -> (L, HW)

    # AdaptiveAvgPool2d((1,1)) + Linear, fused (linear commutes with the mean).
    dec = jnp.dot(lin_w[...], z, preferred_element_type=jnp.float32)     # (L, HW)
    dec = jnp.sum(dec, axis=1, keepdims=True) * (1.0 / HW) + lin_b[...]  # (L, 1)
    o_dec_ref[0] = dec


# ----------------------------------------------------------------------------
# Wrapper
# ----------------------------------------------------------------------------
def _make_tap_masks(H, W):
    """(9, H*W) float mask: 1 where tap (dy,dx) reads inside the image, 0 at padding."""
    idx = jnp.arange(H * W, dtype=jnp.int32)
    y, x = idx // W, idx % W
    masks = []
    for dy in range(3):
        for dx in range(3):
            valid = ((y + dy - 1 >= 0) & (y + dy - 1 < H) &
                     (x + dx - 1 >= 0) & (x + dx - 1 < W))
            masks.append(valid)
    return jnp.stack(masks, axis=0).astype(jnp.float32)


def encoder_decoder_forward(params, image_nchw, message):
    B, c_img, H, W = image_nchw.shape
    HW = H * W
    L = message.shape[1]
    n_enc = len(params["enc_convs"])
    n_dec = len(params["dec_convs"])

    img = image_nchw.astype(jnp.float32).reshape(B, c_img, HW)
    img = jnp.pad(img, ((0, 0), (0, _CIN_PAD - c_img), (0, 0)))      # (B, 8, HW)
    msg = message.astype(jnp.float32).reshape(B, 1, L)
    masks = _make_tap_masks(H, W)

    args = [img, msg, masks]
    for lp in params["enc_convs"]:
        args += [lp["w"], lp["scale"], lp["bias"]]
    ea = params["enc_after"]
    args += [ea["w"], ea["scale"], ea["bias"], ea["w_msg"]]
    args += [params["enc_final_w"], params["enc_final_b"]]
    for lp in params["dec_convs"]:
        args += [lp["w"], lp["scale"], lp["bias"]]
    args += [params["lin_w"], params["lin_b"]]

    per_image = lambda b: (b, 0, 0)
    broadcast2d = lambda b: (0, 0)
    in_specs = [
        pl.BlockSpec((1, _CIN_PAD, HW), per_image),
        pl.BlockSpec((1, 1, L), per_image),
        pl.BlockSpec((9, HW), broadcast2d),
    ]
    for a in args[3:]:
        in_specs.append(pl.BlockSpec(a.shape, broadcast2d))

    flops = 2 * B * HW * sum(int(a.shape[0]) * int(a.shape[1]) for a in args[3:])
    bytes_accessed = 4 * (sum(int(a.size) for a in args) + B * (3 * HW + L))

    kernel = functools.partial(_fused_encdec_kernel,
                               n_enc=n_enc, n_dec=n_dec, H=H, W=W)

    encoded_flat, decoded_col = pl.pallas_call(
        kernel,
        out_shape=(jax.ShapeDtypeStruct((B, 3, HW), jnp.float32),
                   jax.ShapeDtypeStruct((B, L, 1), jnp.float32)),
        grid=(B,),
        in_specs=in_specs,
        out_specs=(pl.BlockSpec((1, 3, HW), per_image),
                   pl.BlockSpec((1, L, 1), per_image)),
        compiler_params=pltpu.CompilerParams(dimension_semantics=("parallel",)),
        cost_estimate=pl.CostEstimate(flops=flops, transcendentals=0,
                                      bytes_accessed=bytes_accessed),
    )(*args)

    encoded_image = encoded_flat.reshape(B, 3, H, W)   # already NCHW
    noised_image = encoded_image                       # identity Noiser (float32)
    decoded_message = decoded_col.reshape(B, L)
    return encoded_image, noised_image, decoded_message


# ----------------------------------------------------------------------------
# Deterministic synthetic parameters (shapes follow the PyTorch module),
# pre-transformed to the kernel layout.
# ----------------------------------------------------------------------------
def _make_conv_bn_params(key, cin, cout, cin_pad=None, eps=1e-5):
    k = jax.random.split(key, 6)
    w = jax.random.normal(k[0], (3, 3, cin, cout), jnp.float32) / jnp.sqrt(9.0 * cin)
    conv_b = 0.01 * jax.random.normal(k[1], (cout,), jnp.float32)
    gamma = 1.0 + 0.1 * jax.random.normal(k[2], (cout,), jnp.float32)
    beta = 0.1 * jax.random.normal(k[3], (cout,), jnp.float32)
    mean = 0.1 * jax.random.normal(k[4], (cout,), jnp.float32)
    var = 1.0 + 0.1 * jnp.abs(jax.random.normal(k[5], (cout,), jnp.float32))
    scale = gamma / jnp.sqrt(var + eps)                     # folded BN (eval mode)
    bias = beta + (conv_b - mean) * scale
    if cin_pad is not None and cin_pad > cin:
        w = jnp.pad(w, ((0, 0), (0, 0), (0, cin_pad - cin), (0, 0)))
    w_t = jnp.transpose(w, (3, 0, 1, 2)).reshape(cout, -1)  # (Cout, 9*Cin_pad)
    return {"w": w_t, "scale": scale.reshape(cout, 1), "bias": bias.reshape(cout, 1)}


def _make_enc_after_params(key, msg_len, feat_ch, img_ch, img_pad, cout, eps=1e-5):
    # Full conv weight over the concat [message, features, image], then split.
    k = jax.random.split(key, 6)
    cin = msg_len + feat_ch + img_ch
    w = jax.random.normal(k[0], (3, 3, cin, cout), jnp.float32) / jnp.sqrt(9.0 * cin)
    conv_b = 0.01 * jax.random.normal(k[1], (cout,), jnp.float32)
    gamma = 1.0 + 0.1 * jax.random.normal(k[2], (cout,), jnp.float32)
    beta = 0.1 * jax.random.normal(k[3], (cout,), jnp.float32)
    mean = 0.1 * jax.random.normal(k[4], (cout,), jnp.float32)
    var = 1.0 + 0.1 * jnp.abs(jax.random.normal(k[5], (cout,), jnp.float32))
    scale = gamma / jnp.sqrt(var + eps)
    bias = beta + (conv_b - mean) * scale

    w_msg = w[:, :, :msg_len, :]                                      # (3,3,L,Cout)
    w_feat = w[:, :, msg_len:msg_len + feat_ch, :]                    # (3,3,Cenc,Cout)
    w_img = jnp.pad(w[:, :, msg_len + feat_ch:, :],
                    ((0, 0), (0, 0), (0, img_pad - img_ch), (0, 0)))  # (3,3,8,Cout)
    w_msg_t = jnp.transpose(w_msg, (0, 1, 3, 2)).reshape(9 * cout, msg_len)
    w_feat_t = jnp.transpose(w_feat, (3, 0, 1, 2)).reshape(cout, -1)
    w_img_t = jnp.transpose(w_img, (3, 0, 1, 2)).reshape(cout, -1)
    return {"w": jnp.concatenate([w_feat_t, w_img_t], axis=1),
            "scale": scale.reshape(cout, 1), "bias": bias.reshape(cout, 1),
            "w_msg": w_msg_t}


def init_params(key, *, msg_len, enc_channels, enc_blocks, dec_channels, dec_blocks):
    keys = iter(jax.random.split(key, 32))
    enc_convs = [_make_conv_bn_params(next(keys), 3, enc_channels, cin_pad=_CIN_PAD)]
    for _ in range(enc_blocks - 1):
        enc_convs.append(_make_conv_bn_params(next(keys), enc_channels, enc_channels))
    enc_after = _make_enc_after_params(next(keys), msg_len, enc_channels, 3, _CIN_PAD,
                                       enc_channels)
    ef_w = jax.random.normal(next(keys), (3, enc_channels), jnp.float32) / jnp.sqrt(
        float(enc_channels))
    ef_b = 0.01 * jax.random.normal(next(keys), (3, 1), jnp.float32)
    enc_final_w = jnp.pad(ef_w, ((0, _CIN_PAD - 3), (0, 0)))          # zero rows 3..7
    enc_final_b = jnp.pad(ef_b, ((0, _CIN_PAD - 3), (0, 0)))

    dec_convs = [_make_conv_bn_params(next(keys), 3, dec_channels, cin_pad=_CIN_PAD)]
    for _ in range(dec_blocks - 1):
        dec_convs.append(_make_conv_bn_params(next(keys), dec_channels, dec_channels))
    dec_convs.append(_make_conv_bn_params(next(keys), dec_channels, msg_len))

    lin_w = jax.random.normal(next(keys), (msg_len, msg_len), jnp.float32) / jnp.sqrt(
        float(msg_len))                          # (out, in): decoded = W @ pooled + b
    lin_b = 0.01 * jax.random.normal(next(keys), (msg_len, 1), jnp.float32)

    return dict(enc_convs=enc_convs, enc_after=enc_after,
                enc_final_w=enc_final_w, enc_final_b=enc_final_b,
                dec_convs=dec_convs, lin_w=lin_w, lin_b=lin_b)


# ----------------------------------------------------------------------------
if __name__ == "__main__":
    B, H, W = 2, 16, 16
    MSG_LEN = 8
    ENC_CH, ENC_BLOCKS = 16, 2
    DEC_CH, DEC_BLOCKS = 16, 3

    key = jax.random.PRNGKey(0)
    k_params, k_img, k_msg = jax.random.split(key, 3)

    params = init_params(k_params, msg_len=MSG_LEN,
                         enc_channels=ENC_CH, enc_blocks=ENC_BLOCKS,
                         dec_channels=DEC_CH, dec_blocks=DEC_BLOCKS)

    image = jax.random.uniform(k_img, (B, 3, H, W), jnp.float32)          # NCHW cover image
    message = jax.random.bernoulli(k_msg, 0.5, (B, MSG_LEN)).astype(jnp.float32)

    fwd = jax.jit(encoder_decoder_forward)
    encoded, noised, decoded = fwd(params, image, message)
    jax.block_until_ready((encoded, noised, decoded))

    assert encoded.shape == (B, 3, H, W) and encoded.dtype == jnp.float32
    assert noised.shape == (B, 3, H, W) and noised.dtype == jnp.float32
    assert decoded.shape == (B, MSG_LEN) and decoded.dtype == jnp.float32

    print("KERNEL_OK")
</pallas_src>

<mosaic_0001>
module attributes {stable_mosaic.version = 11 : i64} {
  func.func @_fused_encdec_kernel(%arg0: i32, %arg1: memref<1x8x256xf32, #tpu.memory_space<vmem>>, %arg2: memref<1x1x8xf32, #tpu.memory_space<vmem>>, %arg3: memref<9x256xf32, #tpu.memory_space<vmem>>, %arg4: memref<16x72xf32, #tpu.memory_space<vmem>>, %arg5: memref<16x1xf32, #tpu.memory_space<vmem>>, %arg6: memref<16x1xf32, #tpu.memory_space<vmem>>, %arg7: memref<16x144xf32, #tpu.memory_space<vmem>>, %arg8: memref<16x1xf32, #tpu.memory_space<vmem>>, %arg9: memref<16x1xf32, #tpu.memory_space<vmem>>, %arg10: memref<16x216xf32, #tpu.memory_space<vmem>>, %arg11: memref<16x1xf32, #tpu.memory_space<vmem>>, %arg12: memref<16x1xf32, #tpu.memory_space<vmem>>, %arg13: memref<144x8xf32, #tpu.memory_space<vmem>>, %arg14: memref<8x16xf32, #tpu.memory_space<vmem>>, %arg15: memref<8x1xf32, #tpu.memory_space<vmem>>, %arg16: memref<16x72xf32, #tpu.memory_space<vmem>>, %arg17: memref<16x1xf32, #tpu.memory_space<vmem>>, %arg18: memref<16x1xf32, #tpu.memory_space<vmem>>, %arg19: memref<16x144xf32, #tpu.memory_space<vmem>>, %arg20: memref<16x1xf32, #tpu.memory_space<vmem>>, %arg21: memref<16x1xf32, #tpu.memory_space<vmem>>, %arg22: memref<16x144xf32, #tpu.memory_space<vmem>>, %arg23: memref<16x1xf32, #tpu.memory_space<vmem>>, %arg24: memref<16x1xf32, #tpu.memory_space<vmem>>, %arg25: memref<8x144xf32, #tpu.memory_space<vmem>>, %arg26: memref<8x1xf32, #tpu.memory_space<vmem>>, %arg27: memref<8x1xf32, #tpu.memory_space<vmem>>, %arg28: memref<8x8xf32, #tpu.memory_space<vmem>>, %arg29: memref<8x1xf32, #tpu.memory_space<vmem>>, %arg30: memref<1x3x256xf32, #tpu.memory_space<vmem>>, %arg31: memref<1x8x1xf32, #tpu.memory_space<vmem>>) attributes {dimension_semantics = [#tpu.dimension_semantics<parallel>], iteration_bounds = array<i64: 2>, scalar_prefetch = 0 : i64, scratch_operands = 0 : i64, tpu.core_type = #tpu.core_type<tc>, window_params = [{transform_indices = @transform_0, window_bounds = array<i64: 1, 8, 256>}, {transform_indices = @transform_1, window_bounds = array<i64: 1, 1, 8>}, {pipeline_mode = #tpu.pipeline_mode<synchronous>, transform_indices = @transform_2, window_bounds = array<i64: 9, 256>}, {pipeline_mode = #tpu.pipeline_mode<synchronous>, transform_indices = @transform_3, window_bounds = array<i64: 16, 72>}, {pipeline_mode = #tpu.pipeline_mode<synchronous>, transform_indices = @transform_4, window_bounds = array<i64: 16, 1>}, {pipeline_mode = #tpu.pipeline_mode<synchronous>, transform_indices = @transform_5, window_bounds = array<i64: 16, 1>}, {pipeline_mode = #tpu.pipeline_mode<synchronous>, transform_indices = @transform_6, window_bounds = array<i64: 16, 144>}, {pipeline_mode = #tpu.pipeline_mode<synchronous>, transform_indices = @transform_7, window_bounds = array<i64: 16, 1>}, {pipeline_mode = #tpu.pipeline_mode<synchronous>, transform_indices = @transform_8, window_bounds = array<i64: 16, 1>}, {pipeline_mode = #tpu.pipeline_mode<synchronous>, transform_indices = @transform_9, window_bounds = array<i64: 16, 216>}, {pipeline_mode = #tpu.pipeline_mode<synchronous>, transform_indices = @transform_10, window_bounds = array<i64: 16, 1>}, {pipeline_mode = #tpu.pipeline_mode<synchronous>, transform_indices = @transform_11, window_bounds = array<i64: 16, 1>}, {pipeline_mode = #tpu.pipeline_mode<synchronous>, transform_indices = @transform_12, window_bounds = array<i64: 144, 8>}, {pipeline_mode = #tpu.pipeline_mode<synchronous>, transform_indices = @transform_13, window_bounds = array<i64: 8, 16>}, {pipeline_mode = #tpu.pipeline_mode<synchronous>, transform_indices = @transform_14, window_bounds = array<i64: 8, 1>}, {pipeline_mode = #tpu.pipeline_mode<synchronous>, transform_indices = @transform_15, window_bounds = array<i64: 16, 72>}, {pipeline_mode = #tpu.pipeline_mode<synchronous>, transform_indices = @transform_16, window_bounds = array<i64: 16, 1>}, {pipeline_mode = #tpu.pipeline_mode<synchronous>, transform_indices = @transform_17, window_bounds = array<i64: 16, 1>}, {pipeline_mode = #tpu.pipeline_mode<synchronous>, transform_indices = @transform_18, window_bounds = array<i64: 16, 144>}, {pipeline_mode = #tpu.pipeline_mode<synchronous>, transform_indices = @transform_19, window_bounds = array<i64: 16, 1>}, {pipeline_mode = #tpu.pipeline_mode<synchronous>, transform_indices = @transform_20, window_bounds = array<i64: 16, 1>}, {pipeline_mode = #tpu.pipeline_mode<synchronous>, transform_indices = @transform_21, window_bounds = array<i64: 16, 144>}, {pipeline_mode = #tpu.pipeline_mode<synchronous>, transform_indices = @transform_22, window_bounds = array<i64: 16, 1>}, {pipeline_mode = #tpu.pipeline_mode<synchronous>, transform_indices = @transform_23, window_bounds = array<i64: 16, 1>}, {pipeline_mode = #tpu.pipeline_mode<synchronous>, transform_indices = @transform_24, window_bounds = array<i64: 8, 144>}, {pipeline_mode = #tpu.pipeline_mode<synchronous>, transform_indices = @transform_25, window_bounds = array<i64: 8, 1>}, {pipeline_mode = #tpu.pipeline_mode<synchronous>, transform_indices = @transform_26, window_bounds = array<i64: 8, 1>}, {pipeline_mode = #tpu.pipeline_mode<synchronous>, transform_indices = @transform_27, window_bounds = array<i64: 8, 8>}, {pipeline_mode = #tpu.pipeline_mode<synchronous>, transform_indices = @transform_28, window_bounds = array<i64: 8, 1>}, {transform_indices = @transform_29, window_bounds = array<i64: 1, 3, 256>}, {transform_indices = @transform_30, window_bounds = array<i64: 1, 8, 1>}]} {
    %c0 = arith.constant 0 : index
    %c0_0 = arith.constant 0 : index
    %0 = vector.load %arg3[%c0, %c0_0] : memref<9x256xf32, #tpu.memory_space<vmem>>, vector<9x256xf32>
    %c0_1 = arith.constant 0 : index
    %c0_2 = arith.constant 0 : index
    %c0_3 = arith.constant 0 : index
    %1 = vector.load %arg1[%c0_1, %c0_2, %c0_3] : memref<1x8x256xf32, #tpu.memory_space<vmem>>, vector<1x8x256xf32>
    %2 = vector.shape_cast %1 : vector<1x8x256xf32> to vector<8x256xf32>
    %c17_i32 = arith.constant 17 : i32
    %3 = tpu.dynamic_rotate %2 by %c17_i32 dim 1 : vector<8x256xf32>, i32 -> vector<8x256xf32>
    %4 = vector.extract_strided_slice %0 {offsets = [0, 0], sizes = [1, 256], strides = [1, 1]} : vector<9x256xf32> to vector<1x256xf32>
    %5 = vector.broadcast %4 : vector<1x256xf32> to vector<8x256xf32>
    %6 = arith.mulf %3, %5 : vector<8x256xf32>
    %c16_i32 = arith.constant 16 : i32
    %7 = tpu.dynamic_rotate %2 by %c16_i32 dim 1 : vector<8x256xf32>, i32 -> vector<8x256xf32>
    %8 = vector.extract_strided_slice %0 {offsets = [1, 0], sizes = [1, 256], strides = [1, 1]} : vector<9x256xf32> to vector<1x256xf32>
    %9 = vector.broadcast %8 : vector<1x256xf32> to vector<8x256xf32>
    %10 = arith.mulf %7, %9 : vector<8x256xf32>
    %c15_i32 = arith.constant 15 : i32
    %11 = tpu.dynamic_rotate %2 by %c15_i32 dim 1 : vector<8x256xf32>, i32 -> vector<8x256xf32>
    %12 = vector.extract_strided_slice %0 {offsets = [2, 0], sizes = [1, 256], strides = [1, 1]} : vector<9x256xf32> to vector<1x256xf32>
    %13 = vector.broadcast %12 : vector<1x256xf32> to vector<8x256xf32>
    %14 = arith.mulf %11, %13 : vector<8x256xf32>
    %c1_i32 = arith.constant 1 : i32
    %15 = tpu.dynamic_rotate %2 by %c1_i32 dim 1 : vector<8x256xf32>, i32 -> vector<8x256xf32>
    %16 = vector.extract_strided_slice %0 {offsets = [3, 0], sizes = [1, 256], strides = [1, 1]} : vector<9x256xf32> to vector<1x256xf32>
    %17 = vector.broadcast %16 : vector<1x256xf32> to vector<8x256xf32>
    %18 = arith.mulf %15, %17 : vector<8x256xf32>
    %19 = vector.extract_strided_slice %0 {offsets = [4, 0], sizes = [1, 256], strides = [1, 1]} : vector<9x256xf32> to vector<1x256xf32>
    %20 = vector.broadcast %19 : vector<1x256xf32> to vector<8x256xf32>
    %21 = arith.mulf %2, %20 : vector<8x256xf32>
    %c255_i32 = arith.constant 255 : i32
    %22 = tpu.dynamic_rotate %2 by %c255_i32 dim 1 : vector<8x256xf32>, i32 -> vector<8x256xf32>
    %23 = vector.extract_strided_slice %0 {offsets = [5, 0], sizes = [1, 256], strides = [1, 1]} : vector<9x256xf32> to vector<1x256xf32>
    %24 = vector.broadcast %23 : vector<1x256xf32> to vector<8x256xf32>
    %25 = arith.mulf %22, %24 : vector<8x256xf32>
    %c241_i32 = arith.constant 241 : i32
    %26 = tpu.dynamic_rotate %2 by %c241_i32 dim 1 : vector<8x256xf32>, i32 -> vector<8x256xf32>
    %27 = vector.extract_strided_slice %0 {offsets = [6, 0], sizes = [1, 256], strides = [1, 1]} : vector<9x256xf32> to vector<1x256xf32>
    %28 = vector.broadcast %27 : vector<1x256xf32> to vector<8x256xf32>
    %29 = arith.mulf %26, %28 : vector<8x256xf32>
    %c240_i32 = arith.constant 240 : i32
    %30 = tpu.dynamic_rotate %2 by %c240_i32 dim 1 : vector<8x256xf32>, i32 -> vector<8x256xf32>
    %31 = vector.extract_strided_slice %0 {offsets = [7, 0], sizes = [1, 256], strides = [1, 1]} : vector<9x256xf32> to vector<1x256xf32>
    %32 = vector.broadcast %31 : vector<1x256xf32> to vector<8x256xf32>
    %33 = arith.mulf %30, %32 : vector<8x256xf32>
    %c239_i32 = arith.constant 239 : i32
    %34 = tpu.dynamic_rotate %2 by %c239_i32 dim 1 : vector<8x256xf32>, i32 -> vector<8x256xf32>
    %35 = vector.extract_strided_slice %0 {offsets = [8, 0], sizes = [1, 256], strides = [1, 1]} : vector<9x256xf32> to vector<1x256xf32>
    %36 = vector.broadcast %35 : vector<1x256xf32> to vector<8x256xf32>
    %37 = arith.mulf %34, %36 : vector<8x256xf32>
    %38 = tpu.concatenate %6, %10, %14, %18, %21, %25, %29, %33, %37 in 0 : vector<8x256xf32>, vector<8x256xf32>, vector<8x256xf32>, vector<8x256xf32>, vector<8x256xf32>, vector<8x256xf32>, vector<8x256xf32>, vector<8x256xf32>, vector<8x256xf32> -> vector<72x256xf32>
    %c0_4 = arith.constant 0 : index
    %c0_5 = arith.constant 0 : index
    %39 = vector.load %arg4[%c0_4, %c0_5] : memref<16x72xf32, #tpu.memory_space<vmem>>, vector<16x72xf32>
    %cst = arith.constant dense<0.000000e+00> : vector<16x256xf32>
    %40 = tpu.matmul %39, %38, %cst {dimension_numbers = #tpu.dot_dimension_numbers<[1], [0], [0], [1], [0, 0, 1, 1], [], []>} : vector<16x72xf32>, vector<72x256xf32>, vector<16x256xf32> -> vector<16x256xf32>
    %c0_6 = arith.constant 0 : index
    %c0_7 = arith.constant 0 : index
    %41 = vector.load %arg5[%c0_6, %c0_7] : memref<16x1xf32, #tpu.memory_space<vmem>>, vector<16x1xf32>
    %42 = vector.broadcast %41 : vector<16x1xf32> to vector<16x256xf32>
    %43 = arith.mulf %40, %42 : vector<16x256xf32>
    %c0_8 = arith.constant 0 : index
    %c0_9 = arith.constant 0 : index
    %44 = vector.load %arg6[%c0_8, %c0_9] : memref<16x1xf32, #tpu.memory_space<vmem>>, vector<16x1xf32>
    %45 = vector.broadcast %44 : vector<16x1xf32> to vector<16x256xf32>
    %46 = arith.addf %43, %45 : vector<16x256xf32>
    %cst_10 = arith.constant 0.000000e+00 : f32
    %47 = vector.broadcast %cst_10 : f32 to vector<16x256xf32>
    %48 = arith.maximumf %46, %47 : vector<16x256xf32>
    %c17_i32_11 = arith.constant 17 : i32
    %49 = tpu.dynamic_rotate %48 by %c17_i32_11 dim 1 : vector<16x256xf32>, i32 -> vector<16x256xf32>
    %50 = vector.extract_strided_slice %0 {offsets = [0, 0], sizes = [1, 256], strides = [1, 1]} : vector<9x256xf32> to vector<1x256xf32>
    %51 = vector.broadcast %50 : vector<1x256xf32> to vector<16x256xf32>
    %52 = arith.mulf %49, %51 : vector<16x256xf32>
    %c16_i32_12 = arith.constant 16 : i32
    %53 = tpu.dynamic_rotate %48 by %c16_i32_12 dim 1 : vector<16x256xf32>, i32 -> vector<16x256xf32>
    %54 = vector.extract_strided_slice %0 {offsets = [1, 0], sizes = [1, 256], strides = [1, 1]} : vector<9x256xf32> to vector<1x256xf32>
    %55 = vector.broadcast %54 : vector<1x256xf32> to vector<16x256xf32>
    %56 = arith.mulf %53, %55 : vector<16x256xf32>
    %c15_i32_13 = arith.constant 15 : i32
    %57 = tpu.dynamic_rotate %48 by %c15_i32_13 dim 1 : vector<16x256xf32>, i32 -> vector<16x256xf32>
    %58 = vector.extract_strided_slice %0 {offsets = [2, 0], sizes = [1, 256], strides = [1, 1]} : vector<9x256xf32> to vector<1x256xf32>
    %59 = vector.broadcast %58 : vector<1x256xf32> to vector<16x256xf32>
    %60 = arith.mulf %57, %59 : vector<16x256xf32>
    %c1_i32_14 = arith.constant 1 : i32
    %61 = tpu.dynamic_rotate %48 by %c1_i32_14 dim 1 : vector<16x256xf32>, i32 -> vector<16x256xf32>
    %62 = vector.extract_strided_slice %0 {offsets = [3, 0], sizes = [1, 256], strides = [1, 1]} : vector<9x256xf32> to vector<1x256xf32>
    %63 = vector.broadcast %62 : vector<1x256xf32> to vector<16x256xf32>
    %64 = arith.mulf %61, %63 : vector<16x256xf32>
    %65 = vector.extract_strided_slice %0 {offsets = [4, 0], sizes = [1, 256], strides = [1, 1]} : vector<9x256xf32> to vector<1x256xf32>
    %66 = vector.broadcast %65 : vector<1x256xf32> to vector<16x256xf32>
    %67 = arith.mulf %48, %66 : vector<16x256xf32>
    %c255_i32_15 = arith.constant 255 : i32
    %68 = tpu.dynamic_rotate %48 by %c255_i32_15 dim 1 : vector<16x256xf32>, i32 -> vector<16x256xf32>
    %69 = vector.extract_strided_slice %0 {offsets = [5, 0], sizes = [1, 256], strides = [1, 1]} : vector<9x256xf32> to vector<1x256xf32>
    %70 = vector.broadcast %69 : vector<1x256xf32> to vector<16x256xf32>
    %71 = arith.mulf %68, %70 : vector<16x256xf32>
    %c241_i32_16 = arith.constant 241 : i32
    %72 = tpu.dynamic_rotate %48 by %c241_i32_16 dim 1 : vector<16x256xf32>, i32 -> vector<16x256xf32>
    %73 = vector.extract_strided_slice %0 {offsets = [6, 0], sizes = [1, 256], strides = [1, 1]} : vector<9x256xf32> to vector<1x256xf32>
    %74 = vector.broadcast %73 : vector<1x256xf32> to vector<16x256xf32>
    %75 = arith.mulf %72, %74 : vector<16x256xf32>
    %c240_i32_17 = arith.constant 240 : i32
    %76 = tpu.dynamic_rotate %48 by %c240_i32_17 dim 1 : vector<16x256xf32>, i32 -> vector<16x256xf32>
    %77 = vector.extract_strided_slice %0 {offsets = [7, 0], sizes = [1, 256], strides = [1, 1]} : vector<9x256xf32> to vector<1x256xf32>
    %78 = vector.broadcast %77 : vector<1x256xf32> to vector<16x256xf32>
    %79 = arith.mulf %76, %78 : vector<16x256xf32>
    %c239_i32_18 = arith.constant 239 : i32
    %80 = tpu.dynamic_rotate %48 by %c239_i32_18 dim 1 : vector<16x256xf32>, i32 -> vector<16x256xf32>
    %81 = vector.extract_strided_slice %0 {offsets = [8, 0], sizes = [1, 256], strides = [1, 1]} : vector<9x256xf32> to vector<1x256xf32>
    %82 = vector.broadcast %81 : vector<1x256xf32> to vector<16x256xf32>
    %83 = arith.mulf %80, %82 : vector<16x256xf32>
    %84 = tpu.concatenate %52, %56, %60, %64, %67, %71, %75, %79, %83 in 0 : vector<16x256xf32>, vector<16x256xf32>, vector<16x256xf32>, vector<16x256xf32>, vector<16x256xf32>, vector<16x256xf32>, vector<16x256xf32>, vector<16x256xf32>, vector<16x256xf32> -> vector<144x256xf32>
    %c0_19 = arith.constant 0 : index
    %c0_20 = arith.constant 0 : index
    %85 = vector.load %arg7[%c0_19, %c0_20] : memref<16x144xf32, #tpu.memory_space<vmem>>, vector<16x144xf32>
    %cst_21 = arith.constant dense<0.000000e+00> : vector<16x256xf32>
    %86 = tpu.matmul %85, %84, %cst_21 {dimension_numbers = #tpu.dot_dimension_numbers<[1], [0], [0], [1], [0, 0, 1, 1], [], []>} : vector<16x144xf32>, vector<144x256xf32>, vector<16x256xf32> -> vector<16x256xf32>
    %c0_22 = arith.constant 0 : index
    %c0_23 = arith.constant 0 : index
    %87 = vector.load %arg8[%c0_22, %c0_23] : memref<16x1xf32, #tpu.memory_space<vmem>>, vector<16x1xf32>
    %88 = vector.broadcast %87 : vector<16x1xf32> to vector<16x256xf32>
    %89 = arith.mulf %86, %88 : vector<16x256xf32>
    %c0_24 = arith.constant 0 : index
    %c0_25 = arith.constant 0 : index
    %90 = vector.load %arg9[%c0_24, %c0_25] : memref<16x1xf32, #tpu.memory_space<vmem>>, vector<16x1xf32>
    %91 = vector.broadcast %90 : vector<16x1xf32> to vector<16x256xf32>
    %92 = arith.addf %89, %91 : vector<16x256xf32>
    %cst_26 = arith.constant 0.000000e+00 : f32
    %93 = vector.broadcast %cst_26 : f32 to vector<16x256xf32>
    %94 = arith.maximumf %92, %93 : vector<16x256xf32>
    %c0_27 = arith.constant 0 : index
    %c0_28 = arith.constant 0 : index
    %c0_29 = arith.constant 0 : index
    %95 = vector.load %arg2[%c0_27, %c0_28, %c0_29] : memref<1x1x8xf32, #tpu.memory_space<vmem>>, vector<1x1x8xf32>
    %96 = vector.shape_cast %95 : vector<1x1x8xf32> to vector<1x8xf32>
    %c0_30 = arith.constant 0 : index
    %c0_31 = arith.constant 0 : index
    %97 = vector.load %arg13[%c0_30, %c0_31] : memref<144x8xf32, #tpu.memory_space<vmem>>, vector<144x8xf32>
    %cst_32 = arith.constant 0.000000e+00 : f32
    %98 = vector.broadcast %cst_32 : f32 to vector<16x256xf32>
    %99 = vector.extract_strided_slice %97 {offsets = [0, 0], sizes = [16, 8], strides = [1, 1]} : vector<144x8xf32> to vector<16x8xf32>
    %100 = vector.broadcast %96 : vector<1x8xf32> to vector<16x8xf32>
    %101 = arith.mulf %99, %100 : vector<16x8xf32>
    %cst_33 = arith.constant dense<0.000000e+00> : vector<16xf32>
    %102 = vector.multi_reduction <add>, %101, %cst_33 [1] : vector<16x8xf32> to vector<16xf32>
    %103 = vector.shape_cast %102 : vector<16xf32> to vector<16x1xf32>
    %104 = vector.extract_strided_slice %0 {offsets = [0, 0], sizes = [1, 256], strides = [1, 1]} : vector<9x256xf32> to vector<1x256xf32>
    %105 = vector.broadcast %103 : vector<16x1xf32> to vector<16x256xf32>
    %106 = vector.broadcast %104 : vector<1x256xf32> to vector<16x256xf32>
    %107 = arith.mulf %105, %106 : vector<16x256xf32>
    %108 = arith.addf %98, %107 : vector<16x256xf32>
    %109 = vector.extract_strided_slice %97 {offsets = [16, 0], sizes = [16, 8], strides = [1, 1]} : vector<144x8xf32> to vector<16x8xf32>
    %110 = vector.broadcast %96 : vector<1x8xf32> to vector<16x8xf32>
    %111 = arith.mulf %109, %110 : vector<16x8xf32>
    %cst_34 = arith.constant dense<0.000000e+00> : vector<16xf32>
    %112 = vector.multi_reduction <add>, %111, %cst_34 [1] : vector<16x8xf32> to vector<16xf32>
    %113 = vector.shape_cast %112 : vector<16xf32> to vector<16x1xf32>
    %114 = vector.extract_strided_slice %0 {offsets = [1, 0], sizes = [1, 256], strides = [1, 1]} : vector<9x256xf32> to vector<1x256xf32>
    %115 = vector.broadcast %113 : vector<16x1xf32> to vector<16x256xf32>
    %116 = vector.broadcast %114 : vector<1x256xf32> to vector<16x256xf32>
    %117 = arith.mulf %115, %116 : vector<16x256xf32>
    %118 = arith.addf %108, %117 : vector<16x256xf32>
    %119 = vector.extract_strided_slice %97 {offsets = [32, 0], sizes = [16, 8], strides = [1, 1]} : vector<144x8xf32> to vector<16x8xf32>
    %120 = vector.broadcast %96 : vector<1x8xf32> to vector<16x8xf32>
    %121 = arith.mulf %119, %120 : vector<16x8xf32>
    %cst_35 = arith.constant dense<0.000000e+00> : vector<16xf32>
    %122 = vector.multi_reduction <add>, %121, %cst_35 [1] : vector<16x8xf32> to vector<16xf32>
    %123 = vector.shape_cast %122 : vector<16xf32> to vector<16x1xf32>
    %124 = vector.extract_strided_slice %0 {offsets = [2, 0], sizes = [1, 256], strides = [1, 1]} : vector<9x256xf32> to vector<1x256xf32>
    %125 = vector.broadcast %123 : vector<16x1xf32> to vector<16x256xf32>
    %126 = vector.broadcast %124 : vector<1x256xf32> to vector<16x256xf32>
    %127 = arith.mulf %125, %126 : vector<16x256xf32>
    %128 = arith.addf %118, %127 : vector<16x256xf32>
    %129 = vector.extract_strided_slice %97 {offsets = [48, 0], sizes = [16, 8], strides = [1, 1]} : vector<144x8xf32> to vector<16x8xf32>
    %130 = vector.broadcast %96 : vector<1x8xf32> to vector<16x8xf32>
    %131 = arith.mulf %129, %130 : vector<16x8xf32>
    %cst_36 = arith.constant dense<0.000000e+00> : vector<16xf32>
    %132 = vector.multi_reduction <add>, %131, %cst_36 [1] : vector<16x8xf32> to vector<16xf32>
    %133 = vector.shape_cast %132 : vector<16xf32> to vector<16x1xf32>
    %134 = vector.extract_strided_slice %0 {offsets = [3, 0], sizes = [1, 256], strides = [1, 1]} : vector<9x256xf32> to vector<1x256xf32>
    %135 = vector.broadcast %133 : vector<16x1xf32> to vector<16x256xf32>
    %136 = vector.broadcast %134 : vector<1x256xf32> to vector<16x256xf32>
    %137 = arith.mulf %135, %136 : vector<16x256xf32>
    %138 = arith.addf %128, %137 : vector<16x256xf32>
    %139 = vector.extract_strided_slice %97 {offsets = [64, 0], sizes = [16, 8], strides = [1, 1]} : vector<144x8xf32> to vector<16x8xf32>
    %140 = vector.broadcast %96 : vector<1x8xf32> to vector<16x8xf32>
    %141 = arith.mulf %139, %140 : vector<16x8xf32>
    %cst_37 = arith.constant dense<0.000000e+00> : vector<16xf32>
    %142 = vector.multi_reduction <add>, %141, %cst_37 [1] : vector<16x8xf32> to vector<16xf32>
    %143 = vector.shape_cast %142 : vector<16xf32> to vector<16x1xf32>
    %144 = vector.extract_strided_slice %0 {offsets = [4, 0], sizes = [1, 256], strides = [1, 1]} : vector<9x256xf32> to vector<1x256xf32>
    %145 = vector.broadcast %143 : vector<16x1xf32> to vector<16x256xf32>
    %146 = vector.broadcast %144 : vector<1x256xf32> to vector<16x256xf32>
    %147 = arith.mulf %145, %146 : vector<16x256xf32>
    %148 = arith.addf %138, %147 : vector<16x256xf32>
    %149 = vector.extract_strided_slice %97 {offsets = [80, 0], sizes = [16, 8], strides = [1, 1]} : vector<144x8xf32> to vector<16x8xf32>
    %150 = vector.broadcast %96 : vector<1x8xf32> to vector<16x8xf32>
    %151 = arith.mulf %149, %150 : vector<16x8xf32>
    %cst_38 = arith.constant dense<0.000000e+00> : vector<16xf32>
    %152 = vector.multi_reduction <add>, %151, %cst_38 [1] : vector<16x8xf32> to vector<16xf32>
    %153 = vector.shape_cast %152 : vector<16xf32> to vector<16x1xf32>
    %154 = vector.extract_strided_slice %0 {offsets = [5, 0], sizes = [1, 256], strides = [1, 1]} : vector<9x256xf32> to vector<1x256xf32>
    %155 = vector.broadcast %153 : vector<16x1xf32> to vector<16x256xf32>
    %156 = vector.broadcast %154 : vector<1x256xf32> to vector<16x256xf32>
    %157 = arith.mulf %155, %156 : vector<16x256xf32>
    %158 = arith.addf %148, %157 : vector<16x256xf32>
    %159 = vector.extract_strided_slice %97 {offsets = [96, 0], sizes = [16, 8], strides = [1, 1]} : vector<144x8xf32> to vector<16x8xf32>
    %160 = vector.broadcast %96 : vector<1x8xf32> to vector<16x8xf32>
    %161 = arith.mulf %159, %160 : vector<16x8xf32>
    %cst_39 = arith.constant dense<0.000000e+00> : vector<16xf32>
    %162 = vector.multi_reduction <add>, %161, %cst_39 [1] : vector<16x8xf32> to vector<16xf32>
    %163 = vector.shape_cast %162 : vector<16xf32> to vector<16x1xf32>
    %164 = vector.extract_strided_slice %0 {offsets = [6, 0], sizes = [1, 256], strides = [1, 1]} : vector<9x256xf32> to vector<1x256xf32>
    %165 = vector.broadcast %163 : vector<16x1xf32> to vector<16x256xf32>
    %166 = vector.broadcast %164 : vector<1x256xf32> to vector<16x256xf32>
    %167 = arith.mulf %165, %166 : vector<16x256xf32>
    %168 = arith.addf %158, %167 : vector<16x256xf32>
    %169 = vector.extract_strided_slice %97 {offsets = [112, 0], sizes = [16, 8], strides = [1, 1]} : vector<144x8xf32> to vector<16x8xf32>
    %170 = vector.broadcast %96 : vector<1x8xf32> to vector<16x8xf32>
    %171 = arith.mulf %169, %170 : vector<16x8xf32>
    %cst_40 = arith.constant dense<0.000000e+00> : vector<16xf32>
    %172 = vector.multi_reduction <add>, %171, %cst_40 [1] : vector<16x8xf32> to vector<16xf32>
    %173 = vector.shape_cast %172 : vector<16xf32> to vector<16x1xf32>
    %174 = vector.extract_strided_slice %0 {offsets = [7, 0], sizes = [1, 256], strides = [1, 1]} : vector<9x256xf32> to vector<1x256xf32>
    %175 = vector.broadcast %173 : vector<16x1xf32> to vector<16x256xf32>
    %176 = vector.broadcast %174 : vector<1x256xf32> to vector<16x256xf32>
    %177 = arith.mulf %175, %176 : vector<16x256xf32>
    %178 = arith.addf %168, %177 : vector<16x256xf32>
    %179 = vector.extract_strided_slice %97 {offsets = [128, 0], sizes = [16, 8], strides = [1, 1]} : vector<144x8xf32> to vector<16x8xf32>
    %180 = vector.broadcast %96 : vector<1x8xf32> to vector<16x8xf32>
    %181 = arith.mulf %179, %180 : vector<16x8xf32>
    %cst_41 = arith.constant dense<0.000000e+00> : vector<16xf32>
    %182 = vector.multi_reduction <add>, %181, %cst_41 [1] : vector<16x8xf32> to vector<16xf32>
    %183 = vector.shape_cast %182 : vector<16xf32> to vector<16x1xf32>
    %184 = vector.extract_strided_slice %0 {offsets = [8, 0], sizes = [1, 256], strides = [1, 1]} : vector<9x256xf32> to vector<1x256xf32>
    %185 = vector.broadcast %183 : vector<16x1xf32> to vector<16x256xf32>
    %186 = vector.broadcast %184 : vector<1x256xf32> to vector<16x256xf32>
    %187 = arith.mulf %185, %186 : vector<16x256xf32>
    %188 = arith.addf %178, %187 : vector<16x256xf32>
    %c17_i32_42 = arith.constant 17 : i32
    %189 = tpu.dynamic_rotate %94 by %c17_i32_42 dim 1 : vector<16x256xf32>, i32 -> vector<16x256xf32>
    %190 = vector.extract_strided_slice %0 {offsets = [0, 0], sizes = [1, 256], strides = [1, 1]} : vector<9x256xf32> to vector<1x256xf32>
    %191 = vector.broadcast %190 : vector<1x256xf32> to vector<16x256xf32>
    %192 = arith.mulf %189, %191 : vector<16x256xf32>
    %c16_i32_43 = arith.constant 16 : i32
    %193 = tpu.dynamic_rotate %94 by %c16_i32_43 dim 1 : vector<16x256xf32>, i32 -> vector<16x256xf32>
    %194 = vector.extract_strided_slice %0 {offsets = [1, 0], sizes = [1, 256], strides = [1, 1]} : vector<9x256xf32> to vector<1x256xf32>
    %195 = vector.broadcast %194 : vector<1x256xf32> to vector<16x256xf32>
    %196 = arith.mulf %193, %195 : vector<16x256xf32>
    %c15_i32_44 = arith.constant 15 : i32
    %197 = tpu.dynamic_rotate %94 by %c15_i32_44 dim 1 : vector<16x256xf32>, i32 -> vector<16x256xf32>
    %198 = vector.extract_strided_slice %0 {offsets = [2, 0], sizes = [1, 256], strides = [1, 1]} : vector<9x256xf32> to vector<1x256xf32>
    %199 = vector.broadcast %198 : vector<1x256xf32> to vector<16x256xf32>
    %200 = arith.mulf %197, %199 : vector<16x256xf32>
    %c1_i32_45 = arith.constant 1 : i32
    %201 = tpu.dynamic_rotate %94 by %c1_i32_45 dim 1 : vector<16x256xf32>, i32 -> vector<16x256xf32>
    %202 = vector.extract_strided_slice %0 {offsets = [3, 0], sizes = [1, 256], strides = [1, 1]} : vector<9x256xf32> to vector<1x256xf32>
    %203 = vector.broadcast %202 : vector<1x256xf32> to vector<16x256xf32>
    %204 = arith.mulf %201, %203 : vector<16x256xf32>
    %205 = vector.extract_strided_slice %0 {offsets = [4, 0], sizes = [1, 256], strides = [1, 1]} : vector<9x256xf32> to vector<1x256xf32>
    %206 = vector.broadcast %205 : vector<1x256xf32> to vector<16x256xf32>
    %207 = arith.mulf %94, %206 : vector<16x256xf32>
    %c255_i32_46 = arith.constant 255 : i32
    %208 = tpu.dynamic_rotate %94 by %c255_i32_46 dim 1 : vector<16x256xf32>, i32 -> vector<16x256xf32>
    %209 = vector.extract_strided_slice %0 {offsets = [5, 0], sizes = [1, 256], strides = [1, 1]} : vector<9x256xf32> to vector<1x256xf32>
    %210 = vector.broadcast %209 : vector<1x256xf32> to vector<16x256xf32>
    %211 = arith.mulf %208, %210 : vector<16x256xf32>
    %c241_i32_47 = arith.constant 241 : i32
    %212 = tpu.dynamic_rotate %94 by %c241_i32_47 dim 1 : vector<16x256xf32>, i32 -> vector<16x256xf32>
    %213 = vector.extract_strided_slice %0 {offsets = [6, 0], sizes = [1, 256], strides = [1, 1]} : vector<9x256xf32> to vector<1x256xf32>
    %214 = vector.broadcast %213 : vector<1x256xf32> to vector<16x256xf32>
    %215 = arith.mulf %212, %214 : vector<16x256xf32>
    %c240_i32_48 = arith.constant 240 : i32
    %216 = tpu.dynamic_rotate %94 by %c240_i32_48 dim 1 : vector<16x256xf32>, i32 -> vector<16x256xf32>
    %217 = vector.extract_strided_slice %0 {offsets = [7, 0], sizes = [1, 256], strides = [1, 1]} : vector<9x256xf32> to vector<1x256xf32>
    %218 = vector.broadcast %217 : vector<1x256xf32> to vector<16x256xf32>
    %219 = arith.mulf %216, %218 : vector<16x256xf32>
    %c239_i32_49 = arith.constant 239 : i32
    %220 = tpu.dynamic_rotate %94 by %c239_i32_49 dim 1 : vector<16x256xf32>, i32 -> vector<16x256xf32>
    %221 = vector.extract_strided_slice %0 {offsets = [8, 0], sizes = [1, 256], strides = [1, 1]} : vector<9x256xf32> to vector<1x256xf32>
    %222 = vector.broadcast %221 : vector<1x256xf32> to vector<16x256xf32>
    %223 = arith.mulf %220, %222 : vector<16x256xf32>
    %224 = tpu.concatenate %192, %196, %200, %204, %207, %211, %215, %219, %223 in 0 : vector<16x256xf32>, vector<16x256xf32>, vector<16x256xf32>, vector<16x256xf32>, vector<16x256xf32>, vector<16x256xf32>, vector<16x256xf32>, vector<16x256xf32>, vector<16x256xf32> -> vector<144x256xf32>
    %225 = tpu.concatenate %224, %38 in 0 : vector<144x256xf32>, vector<72x256xf32> -> vector<216x256xf32>
    %c0_50 = arith.constant 0 : index
    %c0_51 = arith.constant 0 : index
    %226 = vector.load %arg10[%c0_50, %c0_51] : memref<16x216xf32, #tpu.memory_space<vmem>>, vector<16x216xf32>
    %cst_52 = arith.constant dense<0.000000e+00> : vector<16x256xf32>
    %227 = tpu.matmul %226, %225, %cst_52 {dimension_numbers = #tpu.dot_dimension_numbers<[1], [0], [0], [1], [0, 0, 1, 1], [], []>} : vector<16x216xf32>, vector<216x256xf32>, vector<16x256xf32> -> vector<16x256xf32>
    %228 = arith.addf %227, %188 : vector<16x256xf32>
    %c0_53 = arith.constant 0 : index
    %c0_54 = arith.constant 0 : index
    %229 = vector.load %arg11[%c0_53, %c0_54] : memref<16x1xf32, #tpu.memory_space<vmem>>, vector<16x1xf32>
    %230 = vector.broadcast %229 : vector<16x1xf32> to vector<16x256xf32>
    %231 = arith.mulf %228, %230 : vector<16x256xf32>
    %c0_55 = arith.constant 0 : index
    %c0_56 = arith.constant 0 : index
    %232 = vector.load %arg12[%c0_55, %c0_56] : memref<16x1xf32, #tpu.memory_space<vmem>>, vector<16x1xf32>
    %233 = vector.broadcast %232 : vector<16x1xf32> to vector<16x256xf32>
    %234 = arith.addf %231, %233 : vector<16x256xf32>
    %cst_57 = arith.constant 0.000000e+00 : f32
    %235 = vector.broadcast %cst_57 : f32 to vector<16x256xf32>
    %236 = arith.maximumf %234, %235 : vector<16x256xf32>
    %c0_58 = arith.constant 0 : index
    %c0_59 = arith.constant 0 : index
    %237 = vector.load %arg14[%c0_58, %c0_59] : memref<8x16xf32, #tpu.memory_space<vmem>>, vector<8x16xf32>
    %cst_60 = arith.constant dense<0.000000e+00> : vector<8x256xf32>
    %238 = tpu.matmul %237, %236, %cst_60 {dimension_numbers = #tpu.dot_dimension_numbers<[1], [0], [0], [1], [0, 0, 1, 1], [], []>} : vector<8x16xf32>, vector<16x256xf32>, vector<8x256xf32> -> vector<8x256xf32>
    %c0_61 = arith.constant 0 : index
    %c0_62 = arith.constant 0 : index
    %239 = vector.load %arg15[%c0_61, %c0_62] : memref<8x1xf32, #tpu.memory_space<vmem>>, vector<8x1xf32>
    %240 = vector.broadcast %239 : vector<8x1xf32> to vector<8x256xf32>
    %241 = arith.addf %238, %240 : vector<8x256xf32>
    %242 = vector.extract_strided_slice %241 {offsets = [0, 0], sizes = [3, 256], strides = [1, 1]} : vector<8x256xf32> to vector<3x256xf32>
    %c0_63 = arith.constant 0 : index
    %c0_64 = arith.constant 0 : index
    %c0_65 = arith.constant 0 : index
    %243 = vector.load %arg30[%c0_63, %c0_64, %c0_65] : memref<1x3x256xf32, #tpu.memory_space<vmem>>, vector<1x3x256xf32>
    %244 = vector.shape_cast %243 : vector<1x3x256xf32> to vector<3x256xf32>
    %245 = vector.shape_cast %242 : vector<3x256xf32> to vector<1x3x256xf32>
    tpu.vector_store %arg30[%c0_63, %c0_64, %c0_65], %245 {strides = array<i32>} : memref<1x3x256xf32, #tpu.memory_space<vmem>>, vector<1x3x256xf32>,
    %c17_i32_66 = arith.constant 17 : i32
    %246 = tpu.dynamic_rotate %241 by %c17_i32_66 dim 1 : vector<8x256xf32>, i32 -> vector<8x256xf32>
    %247 = vector.extract_strided_slice %0 {offsets = [0, 0], sizes = [1, 256], strides = [1, 1]} : vector<9x256xf32> to vector<1x256xf32>
    %248 = vector.broadcast %247 : vector<1x256xf32> to vector<8x256xf32>
    %249 = arith.mulf %246, %248 : vector<8x256xf32>
    %c16_i32_67 = arith.constant 16 : i32
    %250 = tpu.dynamic_rotate %241 by %c16_i32_67 dim 1 : vector<8x256xf32>, i32 -> vector<8x256xf32>
    %251 = vector.extract_strided_slice %0 {offsets = [1, 0], sizes = [1, 256], strides = [1, 1]} : vector<9x256xf32> to vector<1x256xf32>
    %252 = vector.broadcast %251 : vector<1x256xf32> to vector<8x256xf32>
    %253 = arith.mulf %250, %252 : vector<8x256xf32>
    %c15_i32_68 = arith.constant 15 : i32
    %254 = tpu.dynamic_rotate %241 by %c15_i32_68 dim 1 : vector<8x256xf32>, i32 -> vector<8x256xf32>
    %255 = vector.extract_strided_slice %0 {offsets = [2, 0], sizes = [1, 256], strides = [1, 1]} : vector<9x256xf32> to vector<1x256xf32>
    %256 = vector.broadcast %255 : vector<1x256xf32> to vector<8x256xf32>
    %257 = arith.mulf %254, %256 : vector<8x256xf32>
    %c1_i32_69 = arith.constant 1 : i32
    %258 = tpu.dynamic_rotate %241 by %c1_i32_69 dim 1 : vector<8x256xf32>, i32 -> vector<8x256xf32>
    %259 = vector.extract_strided_slice %0 {offsets = [3, 0], sizes = [1, 256], strides = [1, 1]} : vector<9x256xf32> to vector<1x256xf32>
    %260 = vector.broadcast %259 : vector<1x256xf32> to vector<8x256xf32>
    %261 = arith.mulf %258, %260 : vector<8x256xf32>
    %262 = vector.extract_strided_slice %0 {offsets = [4, 0], sizes = [1, 256], strides = [1, 1]} : vector<9x256xf32> to vector<1x256xf32>
    %263 = vector.broadcast %262 : vector<1x256xf32> to vector<8x256xf32>
    %264 = arith.mulf %241, %263 : vector<8x256xf32>
    %c255_i32_70 = arith.constant 255 : i32
    %265 = tpu.dynamic_rotate %241 by %c255_i32_70 dim 1 : vector<8x256xf32>, i32 -> vector<8x256xf32>
    %266 = vector.extract_strided_slice %0 {offsets = [5, 0], sizes = [1, 256], strides = [1, 1]} : vector<9x256xf32> to vector<1x256xf32>
    %267 = vector.broadcast %266 : vector<1x256xf32> to vector<8x256xf32>
    %268 = arith.mulf %265, %267 : vector<8x256xf32>
    %c241_i32_71 = arith.constant 241 : i32
    %269 = tpu.dynamic_rotate %241 by %c241_i32_71 dim 1 : vector<8x256xf32>, i32 -> vector<8x256xf32>
    %270 = vector.extract_strided_slice %0 {offsets = [6, 0], sizes = [1, 256], strides = [1, 1]} : vector<9x256xf32> to vector<1x256xf32>
    %271 = vector.broadcast %270 : vector<1x256xf32> to vector<8x256xf32>
    %272 = arith.mulf %269, %271 : vector<8x256xf32>
    %c240_i32_72 = arith.constant 240 : i32
    %273 = tpu.dynamic_rotate %241 by %c240_i32_72 dim 1 : vector<8x256xf32>, i32 -> vector<8x256xf32>
    %274 = vector.extract_strided_slice %0 {offsets = [7, 0], sizes = [1, 256], strides = [1, 1]} : vector<9x256xf32> to vector<1x256xf32>
    %275 = vector.broadcast %274 : vector<1x256xf32> to vector<8x256xf32>
    %276 = arith.mulf %273, %275 : vector<8x256xf32>
    %c239_i32_73 = arith.constant 239 : i32
    %277 = tpu.dynamic_rotate %241 by %c239_i32_73 dim 1 : vector<8x256xf32>, i32 -> vector<8x256xf32>
    %278 = vector.extract_strided_slice %0 {offsets = [8, 0], sizes = [1, 256], strides = [1, 1]} : vector<9x256xf32> to vector<1x256xf32>
    %279 = vector.broadcast %278 : vector<1x256xf32> to vector<8x256xf32>
    %280 = arith.mulf %277, %279 : vector<8x256xf32>
    %281 = tpu.concatenate %249, %253, %257, %261, %264, %268, %272, %276, %280 in 0 : vector<8x256xf32>, vector<8x256xf32>, vector<8x256xf32>, vector<8x256xf32>, vector<8x256xf32>, vector<8x256xf32>, vector<8x256xf32>, vector<8x256xf32>, vector<8x256xf32> -> vector<72x256xf32>
    %c0_74 = arith.constant 0 : index
    %c0_75 = arith.constant 0 : index
    %282 = vector.load %arg16[%c0_74, %c0_75] : memref<16x72xf32, #tpu.memory_space<vmem>>, vector<16x72xf32>
    %cst_76 = arith.constant dense<0.000000e+00> : vector<16x256xf32>
    %283 = tpu.matmul %282, %281, %cst_76 {dimension_numbers = #tpu.dot_dimension_numbers<[1], [0], [0], [1], [0, 0, 1, 1], [], []>} : vector<16x72xf32>, vector<72x256xf32>, vector<16x256xf32> -> vector<16x256xf32>
    %c0_77 = arith.constant 0 : index
    %c0_78 = arith.constant 0 : index
    %284 = vector.load %arg17[%c0_77, %c0_78] : memref<16x1xf32, #tpu.memory_space<vmem>>, vector<16x1xf32>
    %285 = vector.broadcast %284 : vector<16x1xf32> to vector<16x256xf32>
    %286 = arith.mulf %283, %285 : vector<16x256xf32>
    %c0_79 = arith.constant 0 : index
    %c0_80 = arith.constant 0 : index
    %287 = vector.load %arg18[%c0_79, %c0_80] : memref<16x1xf32, #tpu.memory_space<vmem>>, vector<16x1xf32>
    %288 = vector.broadcast %287 : vector<16x1xf32> to vector<16x256xf32>
    %289 = arith.addf %286, %288 : vector<16x256xf32>
    %cst_81 = arith.constant 0.000000e+00 : f32
    %290 = vector.broadcast %cst_81 : f32 to vector<16x256xf32>
    %291 = arith.maximumf %289, %290 : vector<16x256xf32>
    %c17_i32_82 = arith.constant 17 : i32
    %292 = tpu.dynamic_rotate %291 by %c17_i32_82 dim 1 : vector<16x256xf32>, i32 -> vector<16x256xf32>
    %293 = vector.extract_strided_slice %0 {offsets = [0, 0], sizes = [1, 256], strides = [1, 1]} : vector<9x256xf32> to vector<1x256xf32>
    %294 = vector.broadcast %293 : vector<1x256xf32> to vector<16x256xf32>
    %295 = arith.mulf %292, %294 : vector<16x256xf32>
    %c16_i32_83 = arith.constant 16 : i32
    %296 = tpu.dynamic_rotate %291 by %c16_i32_83 dim 1 : vector<16x256xf32>, i32 -> vector<16x256xf32>
    %297 = vector.extract_strided_slice %0 {offsets = [1, 0], sizes = [1, 256], strides = [1, 1]} : vector<9x256xf32> to vector<1x256xf32>
    %298 = vector.broadcast %297 : vector<1x256xf32> to vector<16x256xf32>
    %299 = arith.mulf %296, %298 : vector<16x256xf32>
    %c15_i32_84 = arith.constant 15 : i32
    %300 = tpu.dynamic_rotate %291 by %c15_i32_84 dim 1 : vector<16x256xf32>, i32 -> vector<16x256xf32>
    %301 = vector.extract_strided_slice %0 {offsets = [2, 0], sizes = [1, 256], strides = [1, 1]} : vector<9x256xf32> to vector<1x256xf32>
    %302 = vector.broadcast %301 : vector<1x256xf32> to vector<16x256xf32>
    %303 = arith.mulf %300, %302 : vector<16x256xf32>
    %c1_i32_85 = arith.constant 1 : i32
    %304 = tpu.dynamic_rotate %291 by %c1_i32_85 dim 1 : vector<16x256xf32>, i32 -> vector<16x256xf32>
    %305 = vector.extract_strided_slice %0 {offsets = [3, 0], sizes = [1, 256], strides = [1, 1]} : vector<9x256xf32> to vector<1x256xf32>
    %306 = vector.broadcast %305 : vector<1x256xf32> to vector<16x256xf32>
    %307 = arith.mulf %304, %306 : vector<16x256xf32>
    %308 = vector.extract_strided_slice %0 {offsets = [4, 0], sizes = [1, 256], strides = [1, 1]} : vector<9x256xf32> to vector<1x256xf32>
    %309 = vector.broadcast %308 : vector<1x256xf32> to vector<16x256xf32>
    %310 = arith.mulf %291, %309 : vector<16x256xf32>
    %c255_i32_86 = arith.constant 255 : i32
    %311 = tpu.dynamic_rotate %291 by %c255_i32_86 dim 1 : vector<16x256xf32>, i32 -> vector<16x256xf32>
    %312 = vector.extract_strided_slice %0 {offsets = [5, 0], sizes = [1, 256], strides = [1, 1]} : vector<9x256xf32> to vector<1x256xf32>
    %313 = vector.broadcast %312 : vector<1x256xf32> to vector<16x256xf32>
    %314 = arith.mulf %311, %313 : vector<16x256xf32>
    %c241_i32_87 = arith.constant 241 : i32
    %315 = tpu.dynamic_rotate %291 by %c241_i32_87 dim 1 : vector<16x256xf32>, i32 -> vector<16x256xf32>
    %316 = vector.extract_strided_slice %0 {offsets = [6, 0], sizes = [1, 256], strides = [1, 1]} : vector<9x256xf32> to vector<1x256xf32>
    %317 = vector.broadcast %316 : vector<1x256xf32> to vector<16x256xf32>
    %318 = arith.mulf %315, %317 : vector<16x256xf32>
    %c240_i32_88 = arith.constant 240 : i32
    %319 = tpu.dynamic_rotate %291 by %c240_i32_88 dim 1 : vector<16x256xf32>, i32 -> vector<16x256xf32>
    %320 = vector.extract_strided_slice %0 {offsets = [7, 0], sizes = [1, 256], strides = [1, 1]} : vector<9x256xf32> to vector<1x256xf32>
    %321 = vector.broadcast %320 : vector<1x256xf32> to vector<16x256xf32>
    %322 = arith.mulf %319, %321 : vector<16x256xf32>
    %c239_i32_89 = arith.constant 239 : i32
    %323 = tpu.dynamic_rotate %291 by %c239_i32_89 dim 1 : vector<16x256xf32>, i32 -> vector<16x256xf32>
    %324 = vector.extract_strided_slice %0 {offsets = [8, 0], sizes = [1, 256], strides = [1, 1]} : vector<9x256xf32> to vector<1x256xf32>
    %325 = vector.broadcast %324 : vector<1x256xf32> to vector<16x256xf32>
    %326 = arith.mulf %323, %325 : vector<16x256xf32>
    %327 = tpu.concatenate %295, %299, %303, %307, %310, %314, %318, %322, %326 in 0 : vector<16x256xf32>, vector<16x256xf32>, vector<16x256xf32>, vector<16x256xf32>, vector<16x256xf32>, vector<16x256xf32>, vector<16x256xf32>, vector<16x256xf32>, vector<16x256xf32> -> vector<144x256xf32>
    %c0_90 = arith.constant 0 : index
    %c0_91 = arith.constant 0 : index
    %328 = vector.load %arg19[%c0_90, %c0_91] : memref<16x144xf32, #tpu.memory_space<vmem>>, vector<16x144xf32>
    %cst_92 = arith.constant dense<0.000000e+00> : vector<16x256xf32>
    %329 = tpu.matmul %328, %327, %cst_92 {dimension_numbers = #tpu.dot_dimension_numbers<[1], [0], [0], [1], [0, 0, 1, 1], [], []>} : vector<16x144xf32>, vector<144x256xf32>, vector<16x256xf32> -> vector<16x256xf32>
    %c0_93 = arith.constant 0 : index
    %c0_94 = arith.constant 0 : index
    %330 = vector.load %arg20[%c0_93, %c0_94] : memref<16x1xf32, #tpu.memory_space<vmem>>, vector<16x1xf32>
    %331 = vector.broadcast %330 : vector<16x1xf32> to vector<16x256xf32>
    %332 = arith.mulf %329, %331 : vector<16x256xf32>
    %c0_95 = arith.constant 0 : index
    %c0_96 = arith.constant 0 : index
    %333 = vector.load %arg21[%c0_95, %c0_96] : memref<16x1xf32, #tpu.memory_space<vmem>>, vector<16x1xf32>
    %334 = vector.broadcast %333 : vector<16x1xf32> to vector<16x256xf32>
    %335 = arith.addf %332, %334 : vector<16x256xf32>
    %cst_97 = arith.constant 0.000000e+00 : f32
    %336 = vector.broadcast %cst_97 : f32 to vector<16x256xf32>
    %337 = arith.maximumf %335, %336 : vector<16x256xf32>
    %c17_i32_98 = arith.constant 17 : i32
    %338 = tpu.dynamic_rotate %337 by %c17_i32_98 dim 1 : vector<16x256xf32>, i32 -> vector<16x256xf32>
    %339 = vector.extract_strided_slice %0 {offsets = [0, 0], sizes = [1, 256], strides = [1, 1]} : vector<9x256xf32> to vector<1x256xf32>
    %340 = vector.broadcast %339 : vector<1x256xf32> to vector<16x256xf32>
    %341 = arith.mulf %338, %340 : vector<16x256xf32>
    %c16_i32_99 = arith.constant 16 : i32
    %342 = tpu.dynamic_rotate %337 by %c16_i32_99 dim 1 : vector<16x256xf32>, i32 -> vector<16x256xf32>
    %343 = vector.extract_strided_slice %0 {offsets = [1, 0], sizes = [1, 256], strides = [1, 1]} : vector<9x256xf32> to vector<1x256xf32>
    %344 = vector.broadcast %343 : vector<1x256xf32> to vector<16x256xf32>
    %345 = arith.mulf %342, %344 : vector<16x256xf32>
    %c15_i32_100 = arith.constant 15 : i32
    %346 = tpu.dynamic_rotate %337 by %c15_i32_100 dim 1 : vector<16x256xf32>, i32 -> vector<16x256xf32>
    %347 = vector.extract_strided_slice %0 {offsets = [2, 0], sizes = [1, 256], strides = [1, 1]} : vector<9x256xf32> to vector<1x256xf32>
    %348 = vector.broadcast %347 : vector<1x256xf32> to vector<16x256xf32>
    %349 = arith.mulf %346, %348 : vector<16x256xf32>
    %c1_i32_101 = arith.constant 1 : i32
    %350 = tpu.dynamic_rotate %337 by %c1_i32_101 dim 1 : vector<16x256xf32>, i32 -> vector<16x256xf32>
    %351 = vector.extract_strided_slice %0 {offsets = [3, 0], sizes = [1, 256], strides = [1, 1]} : vector<9x256xf32> to vector<1x256xf32>
    %352 = vector.broadcast %351 : vector<1x256xf32> to vector<16x256xf32>
    %353 = arith.mulf %350, %352 : vector<16x256xf32>
    %354 = vector.extract_strided_slice %0 {offsets = [4, 0], sizes = [1, 256], strides = [1, 1]} : vector<9x256xf32> to vector<1x256xf32>
    %355 = vector.broadcast %354 : vector<1x256xf32> to vector<16x256xf32>
    %356 = arith.mulf %337, %355 : vector<16x256xf32>
    %c255_i32_102 = arith.constant 255 : i32
    %357 = tpu.dynamic_rotate %337 by %c255_i32_102 dim 1 : vector<16x256xf32>, i32 -> vector<16x256xf32>
    %358 = vector.extract_strided_slice %0 {offsets = [5, 0], sizes = [1, 256], strides = [1, 1]} : vector<9x256xf32> to vector<1x256xf32>
    %359 = vector.broadcast %358 : vector<1x256xf32> to vector<16x256xf32>
    %360 = arith.mulf %357, %359 : vector<16x256xf32>
    %c241_i32_103 = arith.constant 241 : i32
    %361 = tpu.dynamic_rotate %337 by %c241_i32_103 dim 1 : vector<16x256xf32>, i32 -> vector<16x256xf32>
    %362 = vector.extract_strided_slice %0 {offsets = [6, 0], sizes = [1, 256], strides = [1, 1]} : vector<9x256xf32> to vector<1x256xf32>
    %363 = vector.broadcast %362 : vector<1x256xf32> to vector<16x256xf32>
    %364 = arith.mulf %361, %363 : vector<16x256xf32>
    %c240_i32_104 = arith.constant 240 : i32
    %365 = tpu.dynamic_rotate %337 by %c240_i32_104 dim 1 : vector<16x256xf32>, i32 -> vector<16x256xf32>
    %366 = vector.extract_strided_slice %0 {offsets = [7, 0], sizes = [1, 256], strides = [1, 1]} : vector<9x256xf32> to vector<1x256xf32>
    %367 = vector.broadcast %366 : vector<1x256xf32> to vector<16x256xf32>
    %368 = arith.mulf %365, %367 : vector<16x256xf32>
    %c239_i32_105 = arith.constant 239 : i32
    %369 = tpu.dynamic_rotate %337 by %c239_i32_105 dim 1 : vector<16x256xf32>, i32 -> vector<16x256xf32>
    %370 = vector.extract_strided_slice %0 {offsets = [8, 0], sizes = [1, 256], strides = [1, 1]} : vector<9x256xf32> to vector<1x256xf32>
    %371 = vector.broadcast %370 : vector<1x256xf32> to vector<16x256xf32>
    %372 = arith.mulf %369, %371 : vector<16x256xf32>
    %373 = tpu.concatenate %341, %345, %349, %353, %356, %360, %364, %368, %372 in 0 : vector<16x256xf32>, vector<16x256xf32>, vector<16x256xf32>, vector<16x256xf32>, vector<16x256xf32>, vector<16x256xf32>, vector<16x256xf32>, vector<16x256xf32>, vector<16x256xf32> -> vector<144x256xf32>
    %c0_106 = arith.constant 0 : index
    %c0_107 = arith.constant 0 : index
    %374 = vector.load %arg22[%c0_106, %c0_107] : memref<16x144xf32, #tpu.memory_space<vmem>>, vector<16x144xf32>
    %cst_108 = arith.constant dense<0.000000e+00> : vector<16x256xf32>
    %375 = tpu.matmul %374, %373, %cst_108 {dimension_numbers = #tpu.dot_dimension_numbers<[1], [0], [0], [1], [0, 0, 1, 1], [], []>} : vector<16x144xf32>, vector<144x256xf32>, vector<16x256xf32> -> vector<16x256xf32>
    %c0_109 = arith.constant 0 : index
    %c0_110 = arith.constant 0 : index
    %376 = vector.load %arg23[%c0_109, %c0_110] : memref<16x1xf32, #tpu.memory_space<vmem>>, vector<16x1xf32>
    %377 = vector.broadcast %376 : vector<16x1xf32> to vector<16x256xf32>
    %378 = arith.mulf %375, %377 : vector<16x256xf32>
    %c0_111 = arith.constant 0 : index
    %c0_112 = arith.constant 0 : index
    %379 = vector.load %arg24[%c0_111, %c0_112] : memref<16x1xf32, #tpu.memory_space<vmem>>, vector<16x1xf32>
    %380 = vector.broadcast %379 : vector<16x1xf32> to vector<16x256xf32>
    %381 = arith.addf %378, %380 : vector<16x256xf32>
    %cst_113 = arith.constant 0.000000e+00 : f32
    %382 = vector.broadcast %cst_113 : f32 to vector<16x256xf32>
    %383 = arith.maximumf %381, %382 : vector<16x256xf32>
    %c17_i32_114 = arith.constant 17 : i32
    %384 = tpu.dynamic_rotate %383 by %c17_i32_114 dim 1 : vector<16x256xf32>, i32 -> vector<16x256xf32>
    %385 = vector.extract_strided_slice %0 {offsets = [0, 0], sizes = [1, 256], strides = [1, 1]} : vector<9x256xf32> to vector<1x256xf32>
    %386 = vector.broadcast %385 : vector<1x256xf32> to vector<16x256xf32>
    %387 = arith.mulf %384, %386 : vector<16x256xf32>
    %c16_i32_115 = arith.constant 16 : i32
    %388 = tpu.dynamic_rotate %383 by %c16_i32_115 dim 1 : vector<16x256xf32>, i32 -> vector<16x256xf32>
    %389 = vector.extract_strided_slice %0 {offsets = [1, 0], sizes = [1, 256], strides = [1, 1]} : vector<9x256xf32> to vector<1x256xf32>
    %390 = vector.broadcast %389 : vector<1x256xf32> to vector<16x256xf32>
    %391 = arith.mulf %388, %390 : vector<16x256xf32>
    %c15_i32_116 = arith.constant 15 : i32
    %392 = tpu.dynamic_rotate %383 by %c15_i32_116 dim 1 : vector<16x256xf32>, i32 -> vector<16x256xf32>
    %393 = vector.extract_strided_slice %0 {offsets = [2, 0], sizes = [1, 256], strides = [1, 1]} : vector<9x256xf32> to vector<1x256xf32>
    %394 = vector.broadcast %393 : vector<1x256xf32> to vector<16x256xf32>
    %395 = arith.mulf %392, %394 : vector<16x256xf32>
    %c1_i32_117 = arith.constant 1 : i32
    %396 = tpu.dynamic_rotate %383 by %c1_i32_117 dim 1 : vector<16x256xf32>, i32 -> vector<16x256xf32>
    %397 = vector.extract_strided_slice %0 {offsets = [3, 0], sizes = [1, 256], strides = [1, 1]} : vector<9x256xf32> to vector<1x256xf32>
    %398 = vector.broadcast %397 : vector<1x256xf32> to vector<16x256xf32>
    %399 = arith.mulf %396, %398 : vector<16x256xf32>
    %400 = vector.extract_strided_slice %0 {offsets = [4, 0], sizes = [1, 256], strides = [1, 1]} : vector<9x256xf32> to vector<1x256xf32>
    %401 = vector.broadcast %400 : vector<1x256xf32> to vector<16x256xf32>
    %402 = arith.mulf %383, %401 : vector<16x256xf32>
    %c255_i32_118 = arith.constant 255 : i32
    %403 = tpu.dynamic_rotate %383 by %c255_i32_118 dim 1 : vector<16x256xf32>, i32 -> vector<16x256xf32>
    %404 = vector.extract_strided_slice %0 {offsets = [5, 0], sizes = [1, 256], strides = [1, 1]} : vector<9x256xf32> to vector<1x256xf32>
    %405 = vector.broadcast %404 : vector<1x256xf32> to vector<16x256xf32>
    %406 = arith.mulf %403, %405 : vector<16x256xf32>
    %c241_i32_119 = arith.constant 241 : i32
    %407 = tpu.dynamic_rotate %383 by %c241_i32_119 dim 1 : vector<16x256xf32>, i32 -> vector<16x256xf32>
    %408 = vector.extract_strided_slice %0 {offsets = [6, 0], sizes = [1, 256], strides = [1, 1]} : vector<9x256xf32> to vector<1x256xf32>
    %409 = vector.broadcast %408 : vector<1x256xf32> to vector<16x256xf32>
    %410 = arith.mulf %407, %409 : vector<16x256xf32>
    %c240_i32_120 = arith.constant 240 : i32
    %411 = tpu.dynamic_rotate %383 by %c240_i32_120 dim 1 : vector<16x256xf32>, i32 -> vector<16x256xf32>
    %412 = vector.extract_strided_slice %0 {offsets = [7, 0], sizes = [1, 256], strides = [1, 1]} : vector<9x256xf32> to vector<1x256xf32>
    %413 = vector.broadcast %412 : vector<1x256xf32> to vector<16x256xf32>
    %414 = arith.mulf %411, %413 : vector<16x256xf32>
    %c239_i32_121 = arith.constant 239 : i32
    %415 = tpu.dynamic_rotate %383 by %c239_i32_121 dim 1 : vector<16x256xf32>, i32 -> vector<16x256xf32>
    %416 = vector.extract_strided_slice %0 {offsets = [8, 0], sizes = [1, 256], strides = [1, 1]} : vector<9x256xf32> to vector<1x256xf32>
    %417 = vector.broadcast %416 : vector<1x256xf32> to vector<16x256xf32>
    %418 = arith.mulf %415, %417 : vector<16x256xf32>
    %419 = tpu.concatenate %387, %391, %395, %399, %402, %406, %410, %414, %418 in 0 : vector<16x256xf32>, vector<16x256xf32>, vector<16x256xf32>, vector<16x256xf32>, vector<16x256xf32>, vector<16x256xf32>, vector<16x256xf32>, vector<16x256xf32>, vector<16x256xf32> -> vector<144x256xf32>
    %c0_122 = arith.constant 0 : index
    %c0_123 = arith.constant 0 : index
    %420 = vector.load %arg25[%c0_122, %c0_123] : memref<8x144xf32, #tpu.memory_space<vmem>>, vector<8x144xf32>
    %cst_124 = arith.constant dense<0.000000e+00> : vector<8x256xf32>
    %421 = tpu.matmul %420, %419, %cst_124 {dimension_numbers = #tpu.dot_dimension_numbers<[1], [0], [0], [1], [0, 0, 1, 1], [], []>} : vector<8x144xf32>, vector<144x256xf32>, vector<8x256xf32> -> vector<8x256xf32>
    %c0_125 = arith.constant 0 : index
    %c0_126 = arith.constant 0 : index
    %422 = vector.load %arg26[%c0_125, %c0_126] : memref<8x1xf32, #tpu.memory_space<vmem>>, vector<8x1xf32>
    %423 = vector.broadcast %422 : vector<8x1xf32> to vector<8x256xf32>
    %424 = arith.mulf %421, %423 : vector<8x256xf32>
    %c0_127 = arith.constant 0 : index
    %c0_128 = arith.constant 0 : index
    %425 = vector.load %arg27[%c0_127, %c0_128] : memref<8x1xf32, #tpu.memory_space<vmem>>, vector<8x1xf32>
    %426 = vector.broadcast %425 : vector<8x1xf32> to vector<8x256xf32>
    %427 = arith.addf %424, %426 : vector<8x256xf32>
    %cst_129 = arith.constant 0.000000e+00 : f32
    %428 = vector.broadcast %cst_129 : f32 to vector<8x256xf32>
    %429 = arith.maximumf %427, %428 : vector<8x256xf32>
    %c0_130 = arith.constant 0 : index
    %c0_131 = arith.constant 0 : index
    %430 = vector.load %arg28[%c0_130, %c0_131] : memref<8x8xf32, #tpu.memory_space<vmem>>, vector<8x8xf32>
    %cst_132 = arith.constant dense<0.000000e+00> : vector<8x256xf32>
    %431 = tpu.matmul %430, %429, %cst_132 {dimension_numbers = #tpu.dot_dimension_numbers<[1], [0], [0], [1], [0, 0, 1, 1], [], []>} : vector<8x8xf32>, vector<8x256xf32>, vector<8x256xf32> -> vector<8x256xf32>
    %cst_133 = arith.constant dense<0.000000e+00> : vector<8xf32>
    %432 = vector.multi_reduction <add>, %431, %cst_133 [1] : vector<8x256xf32> to vector<8xf32>
    %433 = vector.shape_cast %432 : vector<8xf32> to vector<8x1xf32>
    %cst_134 = arith.constant 3.906250e-03 : f32
    %434 = vector.broadcast %cst_134 : f32 to vector<8x1xf32>
    %435 = arith.mulf %433, %434 : vector<8x1xf32>
    %c0_135 = arith.constant 0 : index
    %c0_136 = arith.constant 0 : index
    %436 = vector.load %arg29[%c0_135, %c0_136] : memref<8x1xf32, #tpu.memory_space<vmem>>, vector<8x1xf32>
    %437 = arith.addf %435, %436 : vector<8x1xf32>
    %c0_137 = arith.constant 0 : index
    %c0_138 = arith.constant 0 : index
    %c0_139 = arith.constant 0 : index
    %438 = vector.load %arg31[%c0_137, %c0_138, %c0_139] : memref<1x8x1xf32, #tpu.memory_space<vmem>>, vector<1x8x1xf32>
    %439 = vector.shape_cast %438 : vector<1x8x1xf32> to vector<8x1xf32>
    %440 = vector.shape_cast %437 : vector<8x1xf32> to vector<1x8x1xf32>
    tpu.vector_store %arg31[%c0_137, %c0_138, %c0_139], %440 {strides = array<i32>} : memref<1x8x1xf32, #tpu.memory_space<vmem>>, vector<1x8x1xf32>,
    return
  }
  func.func @transform_0(%arg0: i32) -> (i32, i32, i32) {
    %c0_i32 = arith.constant 0 : i32
    %c0_i32_0 = arith.constant 0 : i32
    %c0_i32_1 = arith.constant 0 : i32
    return %arg0, %c0_i32, %c0_i32_0 : i32, i32, i32
  }
  func.func @transform_1(%arg0: i32) -> (i32, i32, i32) {
    %c0_i32 = arith.constant 0 : i32
    %c0_i32_0 = arith.constant 0 : i32
    %c0_i32_1 = arith.constant 0 : i32
    return %arg0, %c0_i32, %c0_i32_0 : i32, i32, i32
  }
  func.func @transform_2(%arg0: i32) -> (i32, i32) {
    %c0_i32 = arith.constant 0 : i32
    %c0_i32_0 = arith.constant 0 : i32
    %c0_i32_1 = arith.constant 0 : i32
    return %c0_i32, %c0_i32_0 : i32, i32
  }
  func.func @transform_3(%arg0: i32) -> (i32, i32) {
    %c0_i32 = arith.constant 0 : i32
    %c0_i32_0 = arith.constant 0 : i32
    %c0_i32_1 = arith.constant 0 : i32
    return %c0_i32, %c0_i32_0 : i32, i32
  }
  func.func @transform_4(%arg0: i32) -> (i32, i32) {
    %c0_i32 = arith.constant 0 : i32
    %c0_i32_0 = arith.constant 0 : i32
    %c0_i32_1 = arith.constant 0 : i32
    return %c0_i32, %c0_i32_0 : i32, i32
  }
  func.func @transform_5(%arg0: i32) -> (i32, i32) {
    %c0_i32 = arith.constant 0 : i32
    %c0_i32_0 = arith.constant 0 : i32
    %c0_i32_1 = arith.constant 0 : i32
    return %c0_i32, %c0_i32_0 : i32, i32
  }
  func.func @transform_6(%arg0: i32) -> (i32, i32) {
    %c0_i32 = arith.constant 0 : i32
    %c0_i32_0 = arith.constant 0 : i32
    %c0_i32_1 = arith.constant 0 : i32
    return %c0_i32, %c0_i32_0 : i32, i32
  }
  func.func @transform_7(%arg0: i32) -> (i32, i32) {
    %c0_i32 = arith.constant 0 : i32
    %c0_i32_0 = arith.constant 0 : i32
    %c0_i32_1 = arith.constant 0 : i32
    return %c0_i32, %c0_i32_0 : i32, i32
  }
  func.func @transform_8(%arg0: i32) -> (i32, i32) {
    %c0_i32 = arith.constant 0 : i32
    %c0_i32_0 = arith.constant 0 : i32
    %c0_i32_1 = arith.constant 0 : i32
    return %c0_i32, %c0_i32_0 : i32, i32
  }
  func.func @transform_9(%arg0: i32) -> (i32, i32) {
    %c0_i32 = arith.constant 0 : i32
    %c0_i32_0 = arith.constant 0 : i32
    %c0_i32_1 = arith.constant 0 : i32
    return %c0_i32, %c0_i32_0 : i32, i32
  }
  func.func @transform_10(%arg0: i32) -> (i32, i32) {
    %c0_i32 = arith.constant 0 : i32
    %c0_i32_0 = arith.constant 0 : i32
    %c0_i32_1 = arith.constant 0 : i32
    return %c0_i32, %c0_i32_0 : i32, i32
  }
  func.func @transform_11(%arg0: i32) -> (i32, i32) {
    %c0_i32 = arith.constant 0 : i32
    %c0_i32_0 = arith.constant 0 : i32
    %c0_i32_1 = arith.constant 0 : i32
    return %c0_i32, %c0_i32_0 : i32, i32
  }
  func.func @transform_12(%arg0: i32) -> (i32, i32) {
    %c0_i32 = arith.constant 0 : i32
    %c0_i32_0 = arith.constant 0 : i32
    %c0_i32_1 = arith.constant 0 : i32
    return %c0_i32, %c0_i32_0 : i32, i32
  }
  func.func @transform_13(%arg0: i32) -> (i32, i32) {
    %c0_i32 = arith.constant 0 : i32
    %c0_i32_0 = arith.constant 0 : i32
    %c0_i32_1 = arith.constant 0 : i32
    return %c0_i32, %c0_i32_0 : i32, i32
  }
  func.func @transform_14(%arg0: i32) -> (i32, i32) {
    %c0_i32 = arith.constant 0 : i32
    %c0_i32_0 = arith.constant 0 : i32
    %c0_i32_1 = arith.constant 0 : i32
    return %c0_i32, %c0_i32_0 : i32, i32
  }
  func.func @transform_15(%arg0: i32) -> (i32, i32) {
    %c0_i32 = arith.constant 0 : i32
    %c0_i32_0 = arith.constant 0 : i32
    %c0_i32_1 = arith.constant 0 : i32
    return %c0_i32, %c0_i32_0 : i32, i32
  }
  func.func @transform_16(%arg0: i32) -> (i32, i32) {
    %c0_i32 = arith.constant 0 : i32
    %c0_i32_0 = arith.constant 0 : i32
    %c0_i32_1 = arith.constant 0 : i32
    return %c0_i32, %c0_i32_0 : i32, i32
  }
  func.func @transform_17(%arg0: i32) -> (i32, i32) {
    %c0_i32 = arith.constant 0 : i32
    %c0_i32_0 = arith.constant 0 : i32
    %c0_i32_1 = arith.constant 0 : i32
    return %c0_i32, %c0_i32_0 : i32, i32
  }
  func.func @transform_18(%arg0: i32) -> (i32, i32) {
    %c0_i32 = arith.constant 0 : i32
    %c0_i32_0 = arith.constant 0 : i32
    %c0_i32_1 = arith.constant 0 : i32
    return %c0_i32, %c0_i32_0 : i32, i32
  }
  func.func @transform_19(%arg0: i32) -> (i32, i32) {
    %c0_i32 = arith.constant 0 : i32
    %c0_i32_0 = arith.constant 0 : i32
    %c0_i32_1 = arith.constant 0 : i32
    return %c0_i32, %c0_i32_0 : i32, i32
  }
  func.func @transform_20(%arg0: i32) -> (i32, i32) {
    %c0_i32 = arith.constant 0 : i32
    %c0_i32_0 = arith.constant 0 : i32
    %c0_i32_1 = arith.constant 0 : i32
    return %c0_i32, %c0_i32_0 : i32, i32
  }
  func.func @transform_21(%arg0: i32) -> (i32, i32) {
    %c0_i32 = arith.constant 0 : i32
    %c0_i32_0 = arith.constant 0 : i32
    %c0_i32_1 = arith.constant 0 : i32
    return %c0_i32, %c0_i32_0 : i32, i32
  }
  func.func @transform_22(%arg0: i32) -> (i32, i32) {
    %c0_i32 = arith.constant 0 : i32
    %c0_i32_0 = arith.constant 0 : i32
    %c0_i32_1 = arith.constant 0 : i32
    return %c0_i32, %c0_i32_0 : i32, i32
  }
  func.func @transform_23(%arg0: i32) -> (i32, i32) {
    %c0_i32 = arith.constant 0 : i32
    %c0_i32_0 = arith.constant 0 : i32
    %c0_i32_1 = arith.constant 0 : i32
    return %c0_i32, %c0_i32_0 : i32, i32
  }
  func.func @transform_24(%arg0: i32) -> (i32, i32) {
    %c0_i32 = arith.constant 0 : i32
    %c0_i32_0 = arith.constant 0 : i32
    %c0_i32_1 = arith.constant 0 : i32
    return %c0_i32, %c0_i32_0 : i32, i32
  }
  func.func @transform_25(%arg0: i32) -> (i32, i32) {
    %c0_i32 = arith.constant 0 : i32
    %c0_i32_0 = arith.constant 0 : i32
    %c0_i32_1 = arith.constant 0 : i32
    return %c0_i32, %c0_i32_0 : i32, i32
  }
  func.func @transform_26(%arg0: i32) -> (i32, i32) {
    %c0_i32 = arith.constant 0 : i32
    %c0_i32_0 = arith.constant 0 : i32
    %c0_i32_1 = arith.constant 0 : i32
    return %c0_i32, %c0_i32_0 : i32, i32
  }
  func.func @transform_27(%arg0: i32) -> (i32, i32) {
    %c0_i32 = arith.constant 0 : i32
    %c0_i32_0 = arith.constant 0 : i32
    %c0_i32_1 = arith.constant 0 : i32
    return %c0_i32, %c0_i32_0 : i32, i32
  }
  func.func @transform_28(%arg0: i32) -> (i32, i32) {
    %c0_i32 = arith.constant 0 : i32
    %c0_i32_0 = arith.constant 0 : i32
    %c0_i32_1 = arith.constant 0 : i32
    return %c0_i32, %c0_i32_0 : i32, i32
  }
  func.func @transform_29(%arg0: i32) -> (i32, i32, i32) {
    %c0_i32 = arith.constant 0 : i32
    %c0_i32_0 = arith.constant 0 : i32
    %c0_i32_1 = arith.constant 0 : i32
    return %arg0, %c0_i32, %c0_i32_0 : i32, i32, i32
  }
  func.func @transform_30(%arg0: i32) -> (i32, i32, i32) {
    %c0_i32 = arith.constant 0 : i32
    %c0_i32_0 = arith.constant 0 : i32
    %c0_i32_1 = arith.constant 0 : i32
    return %arg0, %c0_i32, %c0_i32_0 : i32, i32, i32
  }
}

</mosaic_0001>

<llo_original>
// kernel: encoder_decoder_forward.1
$region0: #{encoder_decoder_forward.1}
  #allocation0 [shape = 'u32[]', space=smem, size = 0x4, offset = 0x4, fixed_abs, tag = 'smem constant byte address 0x4 - core index']
  #allocation1 [shape = 'u32[144,128]{1,0:T(1,128)}', space=vmem, size = 0x12000, scoped, tag = 'internal scratch']
  %s0 = inlined_call_operand.smem [shape: u32[31], index: -1, kind: input, shape index: {}]
  %s1 = sld [smem:[%s0]]
  %s2 = scalar_lea.smem %s0, 1
  %s3 = sld [smem:[%s2]]
  %s4 = scalar_lea.smem %s0, 2
  %s5 = sld [smem:[%s4]]
  %s6 = scalar_lea.smem %s0, 3
  %s7 = sld [smem:[%s6]]
  %s8 = scalar_lea.smem %s0, 4
  %s9 = sld [smem:[%s8]]
  %s10 = scalar_lea.smem %s0, 5
  %s11 = sld [smem:[%s10]]
  %s12 = scalar_lea.smem %s0, 6
  %s13 = sld [smem:[%s12]]
  %s14 = scalar_lea.smem %s0, 7
  %s15 = sld [smem:[%s14]]
  %s16 = scalar_lea.smem %s0, 8
  %s17 = sld [smem:[%s16]]
  %s18 = scalar_lea.smem %s0, 9
  %s19 = sld [smem:[%s18]]
  %s20 = scalar_lea.smem %s0, 10
  %s21 = sld [smem:[%s20]]
  %s22 = scalar_lea.smem %s0, 11
  %s23 = sld [smem:[%s22]]
  %s24 = scalar_lea.smem %s0, 12
  %s25 = sld [smem:[%s24]]
  %s26 = scalar_lea.smem %s0, 13
  %s27 = sld [smem:[%s26]]
  %s28 = scalar_lea.smem %s0, 14
  %s29 = sld [smem:[%s28]]
  %s30 = scalar_lea.smem %s0, 15
  %s31 = sld [smem:[%s30]]
  %s32 = scalar_lea.smem %s0, 16
  %s33 = sld [smem:[%s32]]
  %s34 = scalar_lea.smem %s0, 17
  %s35 = sld [smem:[%s34]]
  %s36 = scalar_lea.smem %s0, 18
  %s37 = sld [smem:[%s36]]
  %s38 = scalar_lea.smem %s0, 19
  %s39 = sld [smem:[%s38]]
  %s40 = scalar_lea.smem %s0, 20
  %s41 = sld [smem:[%s40]]
  %s42 = scalar_lea.smem %s0, 21
  %s43 = sld [smem:[%s42]]
  %s44 = scalar_lea.smem %s0, 22
  %s45 = sld [smem:[%s44]]
  %s46 = scalar_lea.smem %s0, 23
  %s47 = sld [smem:[%s46]]
  %s48 = scalar_lea.smem %s0, 24
  %s49 = sld [smem:[%s48]]
  %s50 = scalar_lea.smem %s0, 25
  %s51 = sld [smem:[%s50]]
  %s52 = scalar_lea.smem %s0, 26
  %s53 = sld [smem:[%s52]]
  %s54 = scalar_lea.smem %s0, 27
  %s55 = sld [smem:[%s54]]
  %s56 = scalar_lea.smem %s0, 28
  %s57 = sld [smem:[%s56]]
  %s58 = scalar_lea.smem %s0, 29
  %s59 = sld [smem:[%s58]]
  %s60 = scalar_lea.smem %s0, 30
  %s61 = sld [smem:[%s60]]
  %62 = xla_tuple %s59, %s61
  %s63 = sld [smem:[#allocation0]]
  $region157: #{encoder_decoder_forward.1} parent=0
    _
  %s65 = ssub.s32 1, %s63
  %s66 = scalar_select 0, %s65, %s63
  loop: start=0, step=1, limit=4
  $region2: #{encoder_decoder_forward.1} parent=0 // loop_pre_header
    _
  $region3: #{encoder_decoder_forward.1} parent=0 // loop_header
    %s68 = sphi 0, %s72
    %p69 = scmp.ge.s32.totalorder %s68, 4
    %s78 = sphi 0, %s80
    %s81 = sphi 0, %s78
    %s82 = sphi 0, %s81
    %s98 = sphi 0, %s82
    %s104 = sphi 0, %s106
    %s107 = sphi 0, %s104
    %s108 = sphi 0, %s107
    %s124 = sphi 0, %s108
    %s128 = sphi 0, %s128
    %s130 = sphi 0, %s128
    %s131 = sphi 0, %s130
    %s145 = sphi 0, %s131
    %s149 = sphi 0, %s149
    %s151 = sphi 0, %s149
    %s152 = sphi 0, %s151
    %s166 = sphi 0, %s152
    %s170 = sphi 0, %s170
    %s172 = sphi 0, %s170
    %s173 = sphi 0, %s172
    %s187 = sphi 0, %s173
    %s191 = sphi 0, %s191
    %s193 = sphi 0, %s191
    %s194 = sphi 0, %s193
    %s208 = sphi 0, %s194
    %s212 = sphi 0, %s212
    %s214 = sphi 0, %s212
    %s215 = sphi 0, %s214
    %s229 = sphi 0, %s215
    %s233 = sphi 0, %s233
    %s235 = sphi 0, %s233
    %s236 = sphi 0, %s235
    %s250 = sphi 0, %s236
    %s254 = sphi 0, %s254
    %s256 = sphi 0, %s254
    %s257 = sphi 0, %s256
    %s271 = sphi 0, %s257
    %s275 = sphi 0, %s275
    %s277 = sphi 0, %s275
    %s278 = sphi 0, %s277
    %s292 = sphi 0, %s278
    %s296 = sphi 0, %s296
    %s298 = sphi 0, %s296
    %s299 = sphi 0, %s298
    %s313 = sphi 0, %s299
    %s317 = sphi 0, %s317
    %s319 = sphi 0, %s317
    %s320 = sphi 0, %s319
    %s334 = sphi 0, %s320
    %s338 = sphi 0, %s338
    %s340 = sphi 0, %s338
    %s341 = sphi 0, %s340
    %s355 = sphi 0, %s341
    %s359 = sphi 0, %s359
    %s361 = sphi 0, %s359
    %s362 = sphi 0, %s361
    %s376 = sphi 0, %s362
    %s380 = sphi 0, %s380
    %s382 = sphi 0, %s380
    %s383 = sphi 0, %s382
    %s397 = sphi 0, %s383
    %s401 = sphi 0, %s401
    %s403 = sphi 0, %s401
    %s404 = sphi 0, %s403
    %s418 = sphi 0, %s404
    %s422 = sphi 0, %s422
    %s424 = sphi 0, %s422
    %s425 = sphi 0, %s424
    %s439 = sphi 0, %s425
    %s443 = sphi 0, %s443
    %s445 = sphi 0, %s443
    %s446 = sphi 0, %s445
    %s460 = sphi 0, %s446
    %s464 = sphi 0, %s464
    %s466 = sphi 0, %s464
    %s467 = sphi 0, %s466
    %s481 = sphi 0, %s467
    %s485 = sphi 0, %s485
    %s487 = sphi 0, %s485
    %s488 = sphi 0, %s487
    %s502 = sphi 0, %s488
    %s506 = sphi 0, %s506
    %s508 = sphi 0, %s506
    %s509 = sphi 0, %s508
    %s523 = sphi 0, %s509
    %s527 = sphi 0, %s527
    %s529 = sphi 0, %s527
    %s530 = sphi 0, %s529
    %s544 = sphi 0, %s530
    %s548 = sphi 0, %s548
    %s550 = sphi 0, %s548
    %s551 = sphi 0, %s550
    %s565 = sphi 0, %s551
    %s569 = sphi 0, %s569
    %s571 = sphi 0, %s569
    %s572 = sphi 0, %s571
    %s586 = sphi 0, %s572
    %s590 = sphi 0, %s590
    %s592 = sphi 0, %s590
    %s593 = sphi 0, %s592
    %s607 = sphi 0, %s593
    %s611 = sphi 0, %s611
    %s613 = sphi 0, %s611
    %s614 = sphi 0, %s613
    %s628 = sphi 0, %s614
    %s632 = sphi 0, %s632
    %s634 = sphi 0, %s632
    %s635 = sphi 0, %s634
    %s649 = sphi 0, %s635
    %s653 = sphi 0, %s653
    %s655 = sphi 0, %s653
    %s656 = sphi 0, %s655
    %s670 = sphi 0, %s656
    %s674 = sphi 0, %s674
    %s676 = sphi 0, %s674
    %s677 = sphi 0, %s676
    %s691 = sphi 0, %s677
    %s697 = sphi 0, %s699
    %s700 = sphi 0, %s697
    %s701 = sphi 0, %s700
    %s717 = sphi 0, %s701
    %s723 = sphi 0, %s725
    %s726 = sphi 0, %s723
    %s727 = sphi 0, %s726
    %s743 = sphi 0, %s727
  $region4: #{encoder_decoder_forward.1} parent=0 // loop_header_branch
    %71 = sbr.rel (%p69) target = $region8
  $region5: #{encoder_decoder_forward.1} parent=0 // loop_body
    %s73 = ssub.s32 %s68, 1
    %s74 = ssub.s32 %s68, 2
    %s75 = sadd.s32 %s68, 1
    %s76 = ssub.s32 %s68, %s75
    %p77 = scmp.eq.s32.totalorder %s76, 0
    %s79 = sadd.s32 %s78, 1
    %s80 = scalar_select %p77, %s78, %s79
    %p83 = pneg %p77
    %p84 = scmp.eq.s32.totalorder %s68, 1
    %p85 = por %p83, %p84
    %p86 = scmp.ne.s32.totalorder %s78, %s81
    %p87 = scmp.eq.s32.totalorder %s68, 0
    %p88 = por %p86, %p87
    %p89 = scmp.ne.s32.totalorder %s78, %s81
    %p90 = scmp.eq.s32.totalorder %s73, 1
    %p91 = por %p89, %p90
    %p92 = scmp.ne.s32.totalorder %s81, %s82
    %p93 = scmp.eq.s32.totalorder %s73, 0
    %p94 = por %p92, %p93
    %p95 = scmp.ne.s32.totalorder %s81, %s82
    %p96 = scmp.eq.s32.totalorder %s74, 1
    %p97 = por %p95, %p96
    %p99 = scmp.ne.s32.totalorder %s82, %s98
    %p100 = scmp.eq.s32.totalorder %s74, 0
    %p101 = por %p99, %p100
    %s102 = ssub.s32 %s68, %s75
    %p103 = scmp.eq.s32.totalorder %s102, 0
    %s105 = sadd.s32 %s104, 1
    %s106 = scalar_select %p103, %s104, %s105
    %p109 = pneg %p103
    %p110 = scmp.eq.s32.totalorder %s68, 1
    %p111 = por %p109, %p110
    %p112 = scmp.ne.s32.totalorder %s104, %s107
    %p113 = scmp.eq.s32.totalorder %s68, 0
    %p114 = por %p112, %p113
    %p115 = scmp.ne.s32.totalorder %s104, %s107
    %p116 = scmp.eq.s32.totalorder %s73, 1
    %p117 = por %p115, %p116
    %p118 = scmp.ne.s32.totalorder %s107, %s108
    %p119 = scmp.eq.s32.totalorder %s73, 0
    %p120 = por %p118, %p119
    %p121 = scmp.ne.s32.totalorder %s107, %s108
    %p122 = scmp.eq.s32.totalorder %s74, 1
    %p123 = por %p121, %p122
    %p125 = scmp.ne.s32.totalorder %s108, %s124
    %p126 = scmp.eq.s32.totalorder %s74, 0
    %p127 = por %p125, %p126
    %s129 = sadd.s32 %s128, 1
    %p132 = scmp.eq.s32.totalorder %s68, 1
    %p133 = scmp.ne.s32.totalorder %s128, %s130
    %p134 = scmp.eq.s32.totalorder %s68, 0
    %p135 = por %p133, %p134
    %p136 = scmp.ne.s32.totalorder %s128, %s130
    %p137 = scmp.eq.s32.totalorder %s73, 1
    %p138 = por %p136, %p137
    %p139 = scmp.ne.s32.totalorder %s130, %s131
    %p140 = scmp.eq.s32.totalorder %s73, 0
    %p141 = por %p139, %p140
    %p142 = scmp.ne.s32.totalorder %s130, %s131
    %p143 = scmp.eq.s32.totalorder %s74, 1
    %p144 = por %p142, %p143
    %p146 = scmp.ne.s32.totalorder %s131, %s145
    %p147 = scmp.eq.s32.totalorder %s74, 0
    %p148 = por %p146, %p147
    %s150 = sadd.s32 %s149, 1
    %p153 = scmp.eq.s32.totalorder %s68, 1
    %p154 = scmp.ne.s32.totalorder %s149, %s151
    %p155 = scmp.eq.s32.totalorder %s68, 0
    %p156 = por %p154, %p155
    %p157 = scmp.ne.s32.totalorder %s149, %s151
    %p158 = scmp.eq.s32.totalorder %s73, 1
    %p159 = por %p157, %p158
    %p160 = scmp.ne.s32.totalorder %s151, %s152
    %p161 = scmp.eq.s32.totalorder %s73, 0
    %p162 = por %p160, %p161
    %p163 = scmp.ne.s32.totalorder %s151, %s152
    %p164 = scmp.eq.s32.totalorder %s74, 1
    %p165 = por %p163, %p164
    %p167 = scmp.ne.s32.totalorder %s152, %s166
    %p168 = scmp.eq.s32.totalorder %s74, 0
    %p169 = por %p167, %p168
    %s171 = sadd.s32 %s170, 1
    %p174 = scmp.eq.s32.totalorder %s68, 1
    %p175 = scmp.ne.s32.totalorder %s170, %s172
    %p176 = scmp.eq.s32.totalorder %s68, 0
    %p177 = por %p175, %p176
    %p178 = scmp.ne.s32.totalorder %s170, %s172
    %p179 = scmp.eq.s32.totalorder %s73, 1
    %p180 = por %p178, %p179
    %p181 = scmp.ne.s32.totalorder %s172, %s173
    %p182 = scmp.eq.s32.totalorder %s73, 0
    %p183 = por %p181, %p182
    %p184 = scmp.ne.s32.totalorder %s172, %s173
    %p185 = scmp.eq.s32.totalorder %s74, 1
    %p186 = por %p184, %p185
    %p188 = scmp.ne.s32.totalorder %s173, %s187
    %p189 = scmp.eq.s32.totalorder %s74, 0
    %p190 = por %p188, %p189
    %s192 = sadd.s32 %s191, 1
    %p195 = scmp.eq.s32.totalorder %s68, 1
    %p196 = scmp.ne.s32.totalorder %s191, %s193
    %p197 = scmp.eq.s32.totalorder %s68, 0
    %p198 = por %p196, %p197
    %p199 = scmp.ne.s32.totalorder %s191, %s193
    %p200 = scmp.eq.s32.totalorder %s73, 1
    %p201 = por %p199, %p200
    %p202 = scmp.ne.s32.totalorder %s193, %s194
    %p203 = scmp.eq.s32.totalorder %s73, 0
    %p204 = por %p202, %p203
    %p205 = scmp.ne.s32.totalorder %s193, %s194
    %p206 = scmp.eq.s32.totalorder %s74, 1
    %p207 = por %p205, %p206
    %p209 = scmp.ne.s32.totalorder %s194, %s208
    %p210 = scmp.eq.s32.totalorder %s74, 0
    %p211 = por %p209, %p210
    %s213 = sadd.s32 %s212, 1
    %p216 = scmp.eq.s32.totalorder %s68, 1
    %p217 = scmp.ne.s32.totalorder %s212, %s214
    %p218 = scmp.eq.s32.totalorder %s68, 0
    %p219 = por %p217, %p218
    %p220 = scmp.ne.s32.totalorder %s212, %s214
    %p221 = scmp.eq.s32.totalorder %s73, 1
    %p222 = por %p220, %p221
    %p223 = scmp.ne.s32.totalorder %s214, %s215
    %p224 = scmp.eq.s32.totalorder %s73, 0
    %p225 = por %p223, %p224
    %p226 = scmp.ne.s32.totalorder %s214, %s215
    %p227 = scmp.eq.s32.totalorder %s74, 1
    %p228 = por %p226, %p227
    %p230 = scmp.ne.s32.totalorder %s215, %s229
    %p231 = scmp.eq.s32.totalorder %s74, 0
    %p232 = por %p230, %p231
    %s234 = sadd.s32 %s233, 1
    %p237 = scmp.eq.s32.totalorder %s68, 1
    %p238 = scmp.ne.s32.totalorder %s233, %s235
    %p239 = scmp.eq.s32.totalorder %s68, 0
    %p240 = por %p238, %p239
    %p241 = scmp.ne.s32.totalorder %s233, %s235
    %p242 = scmp.eq.s32.totalorder %s73, 1
    %p243 = por %p241, %p242
    %p244 = scmp.ne.s32.totalorder %s235, %s236
    %p245 = scmp.eq.s32.totalorder %s73, 0
    %p246 = por %p244, %p245
    %p247 = scmp.ne.s32.totalorder %s235, %s236
    %p248 = scmp.eq.s32.totalorder %s74, 1
    %p249 = por %p247, %p248
    %p251 = scmp.ne.s32.totalorder %s236, %s250
    %p252 = scmp.eq.s32.totalorder %s74, 0
    %p253 = por %p251, %p252
    %s255 = sadd.s32 %s254, 1
    %p258 = scmp.eq.s32.totalorder %s68, 1
    %p259 = scmp.ne.s32.totalorder %s254, %s256
    %p260 = scmp.eq.s32.totalorder %s68, 0
    %p261 = por %p259, %p260
    %p262 = scmp.ne.s32.totalorder %s254, %s256
    %p263 = scmp.eq.s32.totalorder %s73, 1
    %p264 = por %p262, %p263
    %p265 = scmp.ne.s32.totalorder %s256, %s257
    %p266 = scmp.eq.s32.totalorder %s73, 0
    %p267 = por %p265, %p266
    %p268 = scmp.ne.s32.totalorder %s256, %s257
    %p269 = scmp.eq.s32.totalorder %s74, 1
    %p270 = por %p268, %p269
    %p272 = scmp.ne.s32.totalorder %s257, %s271
    %p273 = scmp.eq.s32.totalorder %s74, 0
    %p274 = por %p272, %p273
    %s276 = sadd.s32 %s275, 1
    %p279 = scmp.eq.s32.totalorder %s68, 1
    %p280 = scmp.ne.s32.totalorder %s275, %s277
    %p281 = scmp.eq.s32.totalorder %s68, 0
    %p282 = por %p280, %p281
    %p283 = scmp.ne.s32.totalorder %s275, %s277
    %p284 = scmp.eq.s32.totalorder %s73, 1
    %p285 = por %p283, %p284
    %p286 = scmp.ne.s32.totalorder %s277, %s278
    %p287 = scmp.eq.s32.totalorder %s73, 0
    %p288 = por %p286, %p287
    %p289 = scmp.ne.s32.totalorder %s277, %s278
    %p290 = scmp.eq.s32.totalorder %s74, 1
    %p291 = por %p289, %p290
    %p293 = scmp.ne.s32.totalorder %s278, %s292
    %p294 = scmp.eq.s32.totalorder %s74, 0
    %p295 = por %p293, %p294
    %s297 = sadd.s32 %s296, 1
    %p300 = scmp.eq.s32.totalorder %s68, 1
    %p301 = scmp.ne.s32.totalorder %s296, %s298
    %p302 = scmp.eq.s32.totalorder %s68, 0
    %p303 = por %p301, %p302
    %p304 = scmp.ne.s32.totalorder %s296, %s298
    %p305 = scmp.eq.s32.totalorder %s73, 1
    %p306 = por %p304, %p305
    %p307 = scmp.ne.s32.totalorder %s298, %s299
    %p308 = scmp.eq.s32.totalorder %s73, 0
    %p309 = por %p307, %p308
    %p310 = scmp.ne.s32.totalorder %s298, %s299
    %p311 = scmp.eq.s32.totalorder %s74, 1
    %p312 = por %p310, %p311
    %p314 = scmp.ne.s32.totalorder %s299, %s313
    %p315 = scmp.eq.s32.totalorder %s74, 0
    %p316 = por %p314, %p315
    %s318 = sadd.s32 %s317, 1
    %p321 = scmp.eq.s32.totalorder %s68, 1
    %p322 = scmp.ne.s32.totalorder %s317, %s319
    %p323 = scmp.eq.s32.totalorder %s68, 0
    %p324 = por %p322, %p323
    %p325 = scmp.ne.s32.totalorder %s317, %s319
    %p326 = scmp.eq.s32.totalorder %s73, 1
    %p327 = por %p325, %p326
    %p328 = scmp.ne.s32.totalorder %s319, %s320
    %p329 = scmp.eq.s32.totalorder %s73, 0
    %p330 = por %p328, %p329
    %p331 = scmp.ne.s32.totalorder %s319, %s320
    %p332 = scmp.eq.s32.totalorder %s74, 1
    %p333 = por %p331, %p332
    %p335 = scmp.ne.s32.totalorder %s320, %s334
    %p336 = scmp.eq.s32.totalorder %s74, 0
    %p337 = por %p335, %p336
    %s339 = sadd.s32 %s338, 1
    %p342 = scmp.eq.s32.totalorder %s68, 1
    %p343 = scmp.ne.s32.totalorder %s338, %s340
    %p344 = scmp.eq.s32.totalorder %s68, 0
    %p345 = por %p343, %p344
    %p346 = scmp.ne.s32.totalorder %s338, %s340
    %p347 = scmp.eq.s32.totalorder %s73, 1
    %p348 = por %p346, %p347
    %p349 = scmp.ne.s32.totalorder %s340, %s341
    %p350 = scmp.eq.s32.totalorder %s73, 0
    %p351 = por %p349, %p350
    %p352 = scmp.ne.s32.totalorder %s340, %s341
    %p353 = scmp.eq.s32.totalorder %s74, 1
    %p354 = por %p352, %p353
    %p356 = scmp.ne.s32.totalorder %s341, %s355
    %p357 = scmp.eq.s32.totalorder %s74, 0
    %p358 = por %p356, %p357
    %s360 = sadd.s32 %s359, 1
    %p363 = scmp.eq.s32.totalorder %s68, 1
    %p364 = scmp.ne.s32.totalorder %s359, %s361
    %p365 = scmp.eq.s32.totalorder %s68, 0
    %p366 = por %p364, %p365
    %p367 = scmp.ne.s32.totalorder %s359, %s361
    %p368 = scmp.eq.s32.totalorder %s73, 1
    %p369 = por %p367, %p368
    %p370 = scmp.ne.s32.totalorder %s361, %s362
    %p371 = scmp.eq.s32.totalorder %s73, 0
    %p372 = por %p370, %p371
    %p373 = scmp.ne.s32.totalorder %s361, %s362
    %p374 = scmp.eq.s32.totalorder %s74, 1
    %p375 = por %p373, %p374
    %p377 = scmp.ne.s32.totalorder %s362, %s376
    %p378 = scmp.eq.s32.totalorder %s74, 0
    %p379 = por %p377, %p378
    %s381 = sadd.s32 %s380, 1
    %p384 = scmp.eq.s32.totalorder %s68, 1
    %p385 = scmp.ne.s32.totalorder %s380, %s382
    %p386 = scmp.eq.s32.totalorder %s68, 0
    %p387 = por %p385, %p386
    %p388 = scmp.ne.s32.totalorder %s380, %s382
    %p389 = scmp.eq.s32.totalorder %s73, 1
    %p390 = por %p388, %p389
    %p391 = scmp.ne.s32.totalorder %s382, %s383
    %p392 = scmp.eq.s32.totalorder %s73, 0
    %p393 = por %p391, %p392
    %p394 = scmp.ne.s32.totalorder %s382, %s383
    %p395 = scmp.eq.s32.totalorder %s74, 1
    %p396 = por %p394, %p395
    %p398 = scmp.ne.s32.totalorder %s383, %s397
    %p399 = scmp.eq.s32.totalorder %s74, 0
    %p400 = por %p398, %p399
    %s402 = sadd.s32 %s401, 1
    %p405 = scmp.eq.s32.totalorder %s68, 1
    %p406 = scmp.ne.s32.totalorder %s401, %s403
    %p407 = scmp.eq.s32.totalorder %s68, 0
    %p408 = por %p406, %p407
    %p409 = scmp.ne.s32.totalorder %s401, %s403
    %p410 = scmp.eq.s32.totalorder %s73, 1
    %p411 = por %p409, %p410
    %p412 = scmp.ne.s32.totalorder %s403, %s404
    %p413 = scmp.eq.s32.totalorder %s73, 0
    %p414 = por %p412, %p413
    %p415 = scmp.ne.s32.totalorder %s403, %s404
    %p416 = scmp.eq.s32.totalorder %s74, 1
    %p417 = por %p415, %p416
    %p419 = scmp.ne.s32.totalorder %s404, %s418
    %p420 = scmp.eq.s32.totalorder %s74, 0
    %p421 = por %p419, %p420
    %s423 = sadd.s32 %s422, 1
    %p426 = scmp.eq.s32.totalorder %s68, 1
    %p427 = scmp.ne.s32.totalorder %s422, %s424
    %p428 = scmp.eq.s32.totalorder %s68, 0
    %p429 = por %p427, %p428
    %p430 = scmp.ne.s32.totalorder %s422, %s424
    %p431 = scmp.eq.s32.totalorder %s73, 1
    %p432 = por %p430, %p431
    %p433 = scmp.ne.s32.totalorder %s424, %s425
    %p434 = scmp.eq.s32.totalorder %s73, 0
    %p435 = por %p433, %p434
    %p436 = scmp.ne.s32.totalorder %s424, %s425
    %p437 = scmp.eq.s32.totalorder %s74, 1
    %p438 = por %p436, %p437
    %p440 = scmp.ne.s32.totalorder %s425, %s439
    %p441 = scmp.eq.s32.totalorder %s74, 0
    %p442 = por %p440, %p441
    %s444 = sadd.s32 %s443, 1
    %p447 = scmp.eq.s32.totalorder %s68, 1
    %p448 = scmp.ne.s32.totalorder %s443, %s445
    %p449 = scmp.eq.s32.totalorder %s68, 0
    %p450 = por %p448, %p449
    %p451 = scmp.ne.s32.totalorder %s443, %s445
    %p452 = scmp.eq.s32.totalorder %s73, 1
    %p453 = por %p451, %p452
    %p454 = scmp.ne.s32.totalorder %s445, %s446
    %p455 = scmp.eq.s32.totalorder %s73, 0
    %p456 = por %p454, %p455
    %p457 = scmp.ne.s32.totalorder %s445, %s446
    %p458 = scmp.eq.s32.totalorder %s74, 1
    %p459 = por %p457, %p458
    %p461 = scmp.ne.s32.totalorder %s446, %s460
    %p462 = scmp.eq.s32.totalorder %s74, 0
    %p463 = por %p461, %p462
    %s465 = sadd.s32 %s464, 1
    %p468 = scmp.eq.s32.totalorder %s68, 1
    %p469 = scmp.ne.s32.totalorder %s464, %s466
    %p470 = scmp.eq.s32.totalorder %s68, 0
    %p471 = por %p469, %p470
    %p472 = scmp.ne.s32.totalorder %s464, %s466
    %p473 = scmp.eq.s32.totalorder %s73, 1
    %p474 = por %p472, %p473
    %p475 = scmp.ne.s32.totalorder %s466, %s467
    %p476 = scmp.eq.s32.totalorder %s73, 0
    %p477 = por %p475, %p476
    %p478 = scmp.ne.s32.totalorder %s466, %s467
    %p479 = scmp.eq.s32.totalorder %s74, 1
    %p480 = por %p478, %p479
    %p482 = scmp.ne.s32.totalorder %s467, %s481
    %p483 = scmp.eq.s32.totalorder %s74, 0
    %p484 = por %p482, %p483
    %s486 = sadd.s32 %s485, 1
    %p489 = scmp.eq.s32.totalorder %s68, 1
    %p490 = scmp.ne.s32.totalorder %s485, %s487
    %p491 = scmp.eq.s32.totalorder %s68, 0
    %p492 = por %p490, %p491
    %p493 = scmp.ne.s32.totalorder %s485, %s487
    %p494 = scmp.eq.s32.totalorder %s73, 1
    %p495 = por %p493, %p494
    %p496 = scmp.ne.s32.totalorder %s487, %s488
    %p497 = scmp.eq.s32.totalorder %s73, 0
    %p498 = por %p496, %p497
    %p499 = scmp.ne.s32.totalorder %s487, %s488
    %p500 = scmp.eq.s32.totalorder %s74, 1
    %p501 = por %p499, %p500
    %p503 = scmp.ne.s32.totalorder %s488, %s502
    %p504 = scmp.eq.s32.totalorder %s74, 0
    %p505 = por %p503, %p504
    %s507 = sadd.s32 %s506, 1
    %p510 = scmp.eq.s32.totalorder %s68, 1
    %p511 = scmp.ne.s32.totalorder %s506, %s508
    %p512 = scmp.eq.s32.totalorder %s68, 0
    %p513 = por %p511, %p512
    %p514 = scmp.ne.s32.totalorder %s506, %s508
    %p515 = scmp.eq.s32.totalorder %s73, 1
    %p516 = por %p514, %p515
    %p517 = scmp.ne.s32.totalorder %s508, %s509
    %p518 = scmp.eq.s32.totalorder %s73, 0
    %p519 = por %p517, %p518
    %p520 = scmp.ne.s32.totalorder %s508, %s509
    %p521 = scmp.eq.s32.totalorder %s74, 1
    %p522 = por %p520, %p521
    %p524 = scmp.ne.s32.totalorder %s509, %s523
    %p525 = scmp.eq.s32.totalorder %s74, 0
    %p526 = por %p524, %p525
    %s528 = sadd.s32 %s527, 1
    %p531 = scmp.eq.s32.totalorder %s68, 1
    %p532 = scmp.ne.s32.totalorder %s527, %s529
    %p533 = scmp.eq.s32.totalorder %s68, 0
    %p534 = por %p532, %p533
    %p535 = scmp.ne.s32.totalorder %s527, %s529
    %p536 = scmp.eq.s32.totalorder %s73, 1
    %p537 = por %p535, %p536
    %p538 = scmp.ne.s32.totalorder %s529, %s530
    %p539 = scmp.eq.s32.totalorder %s73, 0
    %p540 = por %p538, %p539
    %p541 = scmp.ne.s32.totalorder %s529, %s530
    %p542 = scmp.eq.s32.totalorder %s74, 1
    %p543 = por %p541, %p542
    %p545 = scmp.ne.s32.totalorder %s530, %s544
    %p546 = scmp.eq.s32.totalorder %s74, 0
    %p547 = por %p545, %p546
    %s549 = sadd.s32 %s548, 1
    %p552 = scmp.eq.s32.totalorder %s68, 1
    %p553 = scmp.ne.s32.totalorder %s548, %s550
    %p554 = scmp.eq.s32.totalorder %s68, 0
    %p555 = por %p553, %p554
    %p556 = scmp.ne.s32.totalorder %s548, %s550
    %p557 = scmp.eq.s32.totalorder %s73, 1
    %p558 = por %p556, %p557
    %p559 = scmp.ne.s32.totalorder %s550, %s551
    %p560 = scmp.eq.s32.totalorder %s73, 0
    %p561 = por %p559, %p560
    %p562 = scmp.ne.s32.totalorder %s550, %s551
    %p563 = scmp.eq.s32.totalorder %s74, 1
    %p564 = por %p562, %p563
    %p566 = scmp.ne.s32.totalorder %s551, %s565
    %p567 = scmp.eq.s32.totalorder %s74, 0
    %p568 = por %p566, %p567
    %s570 = sadd.s32 %s569, 1
    %p573 = scmp.eq.s32.totalorder %s68, 1
    %p574 = scmp.ne.s32.totalorder %s569, %s571
    %p575 = scmp.eq.s32.totalorder %s68, 0
    %p576 = por %p574, %p575
    %p577 = scmp.ne.s32.totalorder %s569, %s571
    %p578 = scmp.eq.s32.totalorder %s73, 1
    %p579 = por %p577, %p578
    %p580 = scmp.ne.s32.totalorder %s571, %s572
    %p581 = scmp.eq.s32.totalorder %s73, 0
    %p582 = por %p580, %p581
    %p583 = scmp.ne.s32.totalorder %s571, %s572
    %p584 = scmp.eq.s32.totalorder %s74, 1
    %p585 = por %p583, %p584
    %p587 = scmp.ne.s32.totalorder %s572, %s586
    %p588 = scmp.eq.s32.totalorder %s74, 0
    %p589 = por %p587, %p588
    %s591 = sadd.s32 %s590, 1
    %p594 = scmp.eq.s32.totalorder %s68, 1
    %p595 = scmp.ne.s32.totalorder %s590, %s592
    %p596 = scmp.eq.s32.totalorder %s68, 0
    %p597 = por %p595, %p596
    %p598 = scmp.ne.s32.totalorder %s590, %s592
    %p599 = scmp.eq.s32.totalorder %s73, 1
    %p600 = por %p598, %p599
    %p601 = scmp.ne.s32.totalorder %s592, %s593
    %p602 = scmp.eq.s32.totalorder %s73, 0
    %p603 = por %p601, %p602
    %p604 = scmp.ne.s32.totalorder %s592, %s593
    %p605 = scmp.eq.s32.totalorder %s74, 1
    %p606 = por %p604, %p605
    %p608 = scmp.ne.s32.totalorder %s593, %s607
    %p609 = scmp.eq.s32.totalorder %s74, 0
    %p610 = por %p608, %p609
    %s612 = sadd.s32 %s611, 1
    %p615 = scmp.eq.s32.totalorder %s68, 1
    %p616 = scmp.ne.s32.totalorder %s611, %s613
    %p617 = scmp.eq.s32.totalorder %s68, 0
    %p618 = por %p616, %p617
    %p619 = scmp.ne.s32.totalorder %s611, %s613
    %p620 = scmp.eq.s32.totalorder %s73, 1
    %p621 = por %p619, %p620
    %p622 = scmp.ne.s32.totalorder %s613, %s614
    %p623 = scmp.eq.s32.totalorder %s73, 0
    %p624 = por %p622, %p623
    %p625 = scmp.ne.s32.totalorder %s613, %s614
    %p626 = scmp.eq.s32.totalorder %s74, 1
    %p627 = por %p625, %p626
    %p629 = scmp.ne.s32.totalorder %s614, %s628
    %p630 = scmp.eq.s32.totalorder %s74, 0
    %p631 = por %p629, %p630
    %s633 = sadd.s32 %s632, 1
    %p636 = scmp.eq.s32.totalorder %s68, 1
    %p637 = scmp.ne.s32.totalorder %s632, %s634
    %p638 = scmp.eq.s32.totalorder %s68, 0
    %p639 = por %p637, %p638
    %p640 = scmp.ne.s32.totalorder %s632, %s634
    %p641 = scmp.eq.s32.totalorder %s73, 1
    %p642 = por %p640, %p641
    %p643 = scmp.ne.s32.totalorder %s634, %s635
    %p644 = scmp.eq.s32.totalorder %s73, 0
    %p645 = por %p643, %p644
    %p646 = scmp.ne.s32.totalorder %s634, %s635
    %p647 = scmp.eq.s32.totalorder %s74, 1
    %p648 = por %p646, %p647
    %p650 = scmp.ne.s32.totalorder %s635, %s649
    %p651 = scmp.eq.s32.totalorder %s74, 0
    %p652 = por %p650, %p651
    %s654 = sadd.s32 %s653, 1
    %p657 = scmp.eq.s32.totalorder %s68, 1
    %p658 = scmp.ne.s32.totalorder %s653, %s655
    %p659 = scmp.eq.s32.totalorder %s68, 0
    %p660 = por %p658, %p659
    %p661 = scmp.ne.s32.totalorder %s653, %s655
    %p662 = scmp.eq.s32.totalorder %s73, 1
    %p663 = por %p661, %p662
    %p664 = scmp.ne.s32.totalorder %s655, %s656
    %p665 = scmp.eq.s32.totalorder %s73, 0
    %p666 = por %p664, %p665
    %p667 = scmp.ne.s32.totalorder %s655, %s656
    %p668 = scmp.eq.s32.totalorder %s74, 1
    %p669 = por %p667, %p668
    %p671 = scmp.ne.s32.totalorder %s656, %s670
    %p672 = scmp.eq.s32.totalorder %s74, 0
    %p673 = por %p671, %p672
    %s675 = sadd.s32 %s674, 1
    %p678 = scmp.eq.s32.totalorder %s68, 1
    %p679 = scmp.ne.s32.totalorder %s674, %s676
    %p680 = scmp.eq.s32.totalorder %s68, 0
    %p681 = por %p679, %p680
    %p682 = scmp.ne.s32.totalorder %s674, %s676
    %p683 = scmp.eq.s32.totalorder %s73, 1
    %p684 = por %p682, %p683
    %p685 = scmp.ne.s32.totalorder %s676, %s677
    %p686 = scmp.eq.s32.totalorder %s73, 0
    %p687 = por %p685, %p686
    %p688 = scmp.ne.s32.totalorder %s676, %s677
    %p689 = scmp.eq.s32.totalorder %s74, 1
    %p690 = por %p688, %p689
    %p692 = scmp.ne.s32.totalorder %s677, %s691
    %p693 = scmp.eq.s32.totalorder %s74, 0
    %p694 = por %p692, %p693
    %s695 = ssub.s32 %s68, %s75
    %p696 = scmp.eq.s32.totalorder %s695, 0
    %s698 = sadd.s32 %s697, 1
    %s699 = scalar_select %p696, %s697, %s698
    %p702 = pneg %p696
    %p703 = scmp.eq.s32.totalorder %s68, 1
    %p704 = por %p702, %p703
    %p705 = scmp.ne.s32.totalorder %s697, %s700
    %p706 = scmp.eq.s32.totalorder %s68, 0
    %p707 = por %p705, %p706
    %p708 = scmp.ne.s32.totalorder %s697, %s700
    %p709 = scmp.eq.s32.totalorder %s73, 1
    %p710 = por %p708, %p709
    %p711 = scmp.ne.s32.totalorder %s700, %s701
    %p712 = scmp.eq.s32.totalorder %s73, 0
    %p713 = por %p711, %p712
    %p714 = scmp.ne.s32.totalorder %s700, %s701
    %p715 = scmp.eq.s32.totalorder %s74, 1
    %p716 = por %p714, %p715
    %p718 = scmp.ne.s32.totalorder %s701, %s717
    %p719 = scmp.eq.s32.totalorder %s74, 0
    %p720 = por %p718, %p719
    %s721 = ssub.s32 %s68, %s75
    %p722 = scmp.eq.s32.totalorder %s721, 0
    %s724 = sadd.s32 %s723, 1
    %s725 = scalar_select %p722, %s723, %s724
    %p728 = pneg %p722
    %p729 = scmp.eq.s32.totalorder %s68, 1
    %p730 = por %p728, %p729
    %p731 = scmp.ne.s32.totalorder %s723, %s726
    %p732 = scmp.eq.s32.totalorder %s68, 0
    %p733 = por %p731, %p732
    %p734 = scmp.ne.s32.totalorder %s723, %s726
    %p735 = scmp.eq.s32.totalorder %s73, 1
    %p736 = por %p734, %p735
    %p737 = scmp.ne.s32.totalorder %s726, %s727
    %p738 = scmp.eq.s32.totalorder %s73, 0
    %p739 = por %p737, %p738
    %p740 = scmp.ne.s32.totalorder %s726, %s727
    %p741 = scmp.eq.s32.totalorder %s74, 1
    %p742 = por %p740, %p741
    %p744 = scmp.ne.s32.totalorder %s727, %s743
    %p745 = scmp.eq.s32.totalorder %s74, 0
    %p746 = por %p744, %p745
    %p747 = scmp.le.s32.totalorder 1, %s68
    %p748 = scmp.lt.s32.totalorder %s68, 3
    %p749 = pnand %p747, %p748
    %p750 = pneg %p749
    // Predicated region
    $region9: #{encoder_decoder_forward.1} parent=5 // pred_check
      _
    $region10: #{encoder_decoder_forward.1} parent=5 // pred_check_branch
      %752 = sbr.rel (%p749) target = $region12
    $region11: #{encoder_decoder_forward.1} parent=5 // pred_region
      %s753 = ssub.s32 %s68, 1
      // Predicated region
      $region13: #{encoder_decoder_forward.1} parent=11 // pred_check
        %p754 = pneg %p141
      $region14: #{encoder_decoder_forward.1} parent=11 // pred_check_branch
        %756 = sbr.rel (%p754) target = $region16
      $region15: #{encoder_decoder_forward.1} parent=11 // pred_region
        _
      $region16: #{encoder_decoder_forward.1} parent=11 // pred_fallthru
        _
      // Predicated region
      $region17: #{encoder_decoder_forward.1} parent=11 // pred_check
        %p757 = pneg %p162
      $region18: #{encoder_decoder_forward.1} parent=11 // pred_check_branch
        %759 = sbr.rel (%p757) target = $region20
      $region19: #{encoder_decoder_forward.1} parent=11 // pred_region
        _
      $region20: #{encoder_decoder_forward.1} parent=11 // pred_fallthru
        _
      // Predicated region
      $region21: #{encoder_decoder_forward.1} parent=11 // pred_check
        %p760 = pneg %p183
      $region22: #{encoder_decoder_forward.1} parent=11 // pred_check_branch
        %762 = sbr.rel (%p760) target = $region24
      $region23: #{encoder_decoder_forward.1} parent=11 // pred_region
        _
      $region24: #{encoder_decoder_forward.1} parent=11 // pred_fallthru
        _
      // Predicated region
      $region25: #{encoder_decoder_forward.1} parent=11 // pred_check
        %p763 = pneg %p204
      $region26: #{encoder_decoder_forward.1} parent=11 // pred_check_branch
        %765 = sbr.rel (%p763) target = $region28
      $region27: #{encoder_decoder_forward.1} parent=11 // pred_region
        _
      $region28: #{encoder_decoder_forward.1} parent=11 // pred_fallthru
        _
      // Predicated region
      $region29: #{encoder_decoder_forward.1} parent=11 // pred_check
        %p766 = pneg %p225
      $region30: #{encoder_decoder_forward.1} parent=11 // pred_check_branch
        %768 = sbr.rel (%p766) target = $region32
      $region31: #{encoder_decoder_forward.1} parent=11 // pred_region
        _
      $region32: #{encoder_decoder_forward.1} parent=11 // pred_fallthru
        _
      // Predicated region
      $region33: #{encoder_decoder_forward.1} parent=11 // pred_check
        %p769 = pneg %p246
      $region34: #{encoder_decoder_forward.1} parent=11 // pred_check_branch
        %771 = sbr.rel (%p769) target = $region36
      $region35: #{encoder_decoder_forward.1} parent=11 // pred_region
        _
      $region36: #{encoder_decoder_forward.1} parent=11 // pred_fallthru
        _
      // Predicated region
      $region37: #{encoder_decoder_forward.1} parent=11 // pred_check
        %p772 = pneg %p267
      $region38: #{encoder_decoder_forward.1} parent=11 // pred_check_branch
        %774 = sbr.rel (%p772) target = $region40
      $region39: #{encoder_decoder_forward.1} parent=11 // pred_region
        _
      $region40: #{encoder_decoder_forward.1} parent=11 // pred_fallthru
        _
      // Predicated region
      $region41: #{encoder_decoder_forward.1} parent=11 // pred_check
        %p775 = pneg %p288
      $region42: #{encoder_decoder_forward.1} parent=11 // pred_check_branch
        %777 = sbr.rel (%p775) target = $region44
      $region43: #{encoder_decoder_forward.1} parent=11 // pred_region
        _
      $region44: #{encoder_decoder_forward.1} parent=11 // pred_fallthru
        _
      // Predicated region
      $region45: #{encoder_decoder_forward.1} parent=11 // pred_check
        %p778 = pneg %p309
      $region46: #{encoder_decoder_forward.1} parent=11 // pred_check_branch
        %780 = sbr.rel (%p778) target = $region48
      $region47: #{encoder_decoder_forward.1} parent=11 // pred_region
        _
      $region48: #{encoder_decoder_forward.1} parent=11 // pred_fallthru
        _
      // Predicated region
      $region49: #{encoder_decoder_forward.1} parent=11 // pred_check
        %p781 = pneg %p330
      $region50: #{encoder_decoder_forward.1} parent=11 // pred_check_branch
        %783 = sbr.rel (%p781) target = $region52
      $region51: #{encoder_decoder_forward.1} parent=11 // pred_region
        _
      $region52: #{encoder_decoder_forward.1} parent=11 // pred_fallthru
        _
      // Predicated region
      $region53: #{encoder_decoder_forward.1} parent=11 // pred_check
        %p784 = pneg %p351
      $region54: #{encoder_decoder_forward.1} parent=11 // pred_check_branch
        %786 = sbr.rel (%p784) target = $region56
      $region55: #{encoder_decoder_forward.1} parent=11 // pred_region
        _
      $region56: #{encoder_decoder_forward.1} parent=11 // pred_fallthru
        _
      // Predicated region
      $region57: #{encoder_decoder_forward.1} parent=11 // pred_check
        %p787 = pneg %p372
      $region58: #{encoder_decoder_forward.1} parent=11 // pred_check_branch
        %789 = sbr.rel (%p787) target = $region60
      $region59: #{encoder_decoder_forward.1} parent=11 // pred_region
        _
      $region60: #{encoder_decoder_forward.1} parent=11 // pred_fallthru
        _
      // Predicated region
      $region61: #{encoder_decoder_forward.1} parent=11 // pred_check
        %p790 = pneg %p393
      $region62: #{encoder_decoder_forward.1} parent=11 // pred_check_branch
        %792 = sbr.rel (%p790) target = $region64
      $region63: #{encoder_decoder_forward.1} parent=11 // pred_region
        _
      $region64: #{encoder_decoder_forward.1} parent=11 // pred_fallthru
        _
      // Predicated region
      $region65: #{encoder_decoder_forward.1} parent=11 // pred_check
        %p793 = pneg %p414
      $region66: #{encoder_decoder_forward.1} parent=11 // pred_check_branch
        %795 = sbr.rel (%p793) target = $region68
      $region67: #{encoder_decoder_forward.1} parent=11 // pred_region
        _
      $region68: #{encoder_decoder_forward.1} parent=11 // pred_fallthru
        _
      // Predicated region
      $region69: #{encoder_decoder_forward.1} parent=11 // pred_check
        %p796 = pneg %p435
      $region70: #{encoder_decoder_forward.1} parent=11 // pred_check_branch
        %798 = sbr.rel (%p796) target = $region72
      $region71: #{encoder_decoder_forward.1} parent=11 // pred_region
        _
      $region72: #{encoder_decoder_forward.1} parent=11 // pred_fallthru
        _
      // Predicated region
      $region73: #{encoder_decoder_forward.1} parent=11 // pred_check
        %p799 = pneg %p456
      $region74: #{encoder_decoder_forward.1} parent=11 // pred_check_branch
        %801 = sbr.rel (%p799) target = $region76
      $region75: #{encoder_decoder_forward.1} parent=11 // pred_region
        _
      $region76: #{encoder_decoder_forward.1} parent=11 // pred_fallthru
        _
      // Predicated region
      $region77: #{encoder_decoder_forward.1} parent=11 // pred_check
        %p802 = pneg %p477
      $region78: #{encoder_decoder_forward.1} parent=11 // pred_check_branch
        %804 = sbr.rel (%p802) target = $region80
      $region79: #{encoder_decoder_forward.1} parent=11 // pred_region
        _
      $region80: #{encoder_decoder_forward.1} parent=11 // pred_fallthru
        _
      // Predicated region
      $region81: #{encoder_decoder_forward.1} parent=11 // pred_check
        %p805 = pneg %p498
      $region82: #{encoder_decoder_forward.1} parent=11 // pred_check_branch
        %807 = sbr.rel (%p805) target = $region84
      $region83: #{encoder_decoder_forward.1} parent=11 // pred_region
        _
      $region84: #{encoder_decoder_forward.1} parent=11 // pred_fallthru
        _
      // Predicated region
      $region85: #{encoder_decoder_forward.1} parent=11 // pred_check
        %p808 = pneg %p519
      $region86: #{encoder_decoder_forward.1} parent=11 // pred_check_branch
        %810 = sbr.rel (%p808) target = $region88
      $region87: #{encoder_decoder_forward.1} parent=11 // pred_region
        _
      $region88: #{encoder_decoder_forward.1} parent=11 // pred_fallthru
        _
      // Predicated region
      $region89: #{encoder_decoder_forward.1} parent=11 // pred_check
        %p811 = pneg %p540
      $region90: #{encoder_decoder_forward.1} parent=11 // pred_check_branch
        %813 = sbr.rel (%p811) target = $region92
      $region91: #{encoder_decoder_forward.1} parent=11 // pred_region
        _
      $region92: #{encoder_decoder_forward.1} parent=11 // pred_fallthru
        _
      // Predicated region
      $region93: #{encoder_decoder_forward.1} parent=11 // pred_check
        %p814 = pneg %p561
      $region94: #{encoder_decoder_forward.1} parent=11 // pred_check_branch
        %816 = sbr.rel (%p814) target = $region96
      $region95: #{encoder_decoder_forward.1} parent=11 // pred_region
        _
      $region96: #{encoder_decoder_forward.1} parent=11 // pred_fallthru
        _
      // Predicated region
      $region97: #{encoder_decoder_forward.1} parent=11 // pred_check
        %p817 = pneg %p582
      $region98: #{encoder_decoder_forward.1} parent=11 // pred_check_branch
        %819 = sbr.rel (%p817) target = $region100
      $region99: #{encoder_decoder_forward.1} parent=11 // pred_region
        _
      $region100: #{encoder_decoder_forward.1} parent=11 // pred_fallthru
        _
      // Predicated region
      $region101: #{encoder_decoder_forward.1} parent=11 // pred_check
        %p820 = pneg %p603
      $region102: #{encoder_decoder_forward.1} parent=11 // pred_check_branch
        %822 = sbr.rel (%p820) target = $region104
      $region103: #{encoder_decoder_forward.1} parent=11 // pred_region
        _
      $region104: #{encoder_decoder_forward.1} parent=11 // pred_fallthru
        _
      // Predicated region
      $region105: #{encoder_decoder_forward.1} parent=11 // pred_check
        %p823 = pneg %p624
      $region106: #{encoder_decoder_forward.1} parent=11 // pred_check_branch
        %825 = sbr.rel (%p823) target = $region108
      $region107: #{encoder_decoder_forward.1} parent=11 // pred_region
        _
      $region108: #{encoder_decoder_forward.1} parent=11 // pred_fallthru
        _
      // Predicated region
      $region109: #{encoder_decoder_forward.1} parent=11 // pred_check
        %p826 = pneg %p645
      $region110: #{encoder_decoder_forward.1} parent=11 // pred_check_branch
        %828 = sbr.rel (%p826) target = $region112
      $region111: #{encoder_decoder_forward.1} parent=11 // pred_region
        _
      $region112: #{encoder_decoder_forward.1} parent=11 // pred_fallthru
        _
      // Predicated region
      $region113: #{encoder_decoder_forward.1} parent=11 // pred_check
        %p829 = pneg %p666
      $region114: #{encoder_decoder_forward.1} parent=11 // pred_check_branch
        %831 = sbr.rel (%p829) target = $region116
      $region115: #{encoder_decoder_forward.1} parent=11 // pred_region
        _
      $region116: #{encoder_decoder_forward.1} parent=11 // pred_fallthru
        _
      // Predicated region
      $region117: #{encoder_decoder_forward.1} parent=11 // pred_check
        %p832 = pneg %p687
      $region118: #{encoder_decoder_forward.1} parent=11 // pred_check_branch
        %834 = sbr.rel (%p832) target = $region120
      $region119: #{encoder_decoder_forward.1} parent=11 // pred_region
        _
      $region120: #{encoder_decoder_forward.1} parent=11 // pred_fallthru
        _
    $region12: #{encoder_decoder_forward.1} parent=5 // pred_fallthru
      _
    %p835 = scmp.lt.s32.totalorder %s68, 2
    // Predicated region
    $region121: #{encoder_decoder_forward.1} parent=5 // pred_check
      %p836 = pneg %p835
    $region122: #{encoder_decoder_forward.1} parent=5 // pred_check_branch
      %838 = sbr.rel (%p836) target = $region124
    $region123: #{encoder_decoder_forward.1} parent=5 // pred_region
      // Predicated region
      $region125: #{encoder_decoder_forward.1} parent=123 // pred_check
        %p839 = pneg %p88
      $region126: #{encoder_decoder_forward.1} parent=123 // pred_check_branch
        %841 = sbr.rel (%p839) target = $region128
      $region127: #{encoder_decoder_forward.1} parent=123 // pred_region
        %p842 = scmp.lt.s32.totalorder %s68, 1
        %s843 = scalar_select %p842, %s68, 1
        %s844 = smul.addr %s843, 2
        %s845 = smul.addr %s844, 8
        %s846 = scalar_lea.vmem %s1, %s845
      $region128: #{encoder_decoder_forward.1} parent=123 // pred_fallthru
        _
      // Predicated region
      $region129: #{encoder_decoder_forward.1} parent=123 // pred_check
        %p847 = pneg %p114
      $region130: #{encoder_decoder_forward.1} parent=123 // pred_check_branch
        %849 = sbr.rel (%p847) target = $region132
      $region131: #{encoder_decoder_forward.1} parent=123 // pred_region
        %p850 = scmp.lt.s32.totalorder %s68, 1
        %s851 = scalar_select %p850, %s68, 1
        %s852 = scalar_lea.vmem %s3, %s851
      $region132: #{encoder_decoder_forward.1} parent=123 // pred_fallthru
        _
    $region124: #{encoder_decoder_forward.1} parent=5 // pred_fallthru
      _
    %p853 = scmp.le.s32.totalorder 1, %s68
    %p854 = scmp.lt.s32.totalorder %s68, 3
    %p855 = pnand %p853, %p854
    %p856 = pneg %p855
    // Predicated region
    $region133: #{encoder_decoder_forward.1} parent=5 // pred_check
      _
    $region134: #{encoder_decoder_forward.1} parent=5 // pred_check_branch
      %858 = sbr.rel (%p855) target = $region136
    $region135: #{encoder_decoder_forward.1} parent=5 // pred_region
      %s859 = ssub.s32 %s68, 1
      %p860 = scmp.lt.s32.totalorder %s73, 1
      %s861 = scalar_select %p860, %s73, 1
      %s862 = smul.addr %s861, 2
      %s863 = smul.addr %s862, 8
      %s864 = scalar_lea.vmem %s1, %s863
      %p865 = pneg %p94
      %p866 = pneg %p91
      %p867 = scmp.lt.s32.totalorder %s73, 1
      %s868 = scalar_select %p867, %s73, 1
      %s869 = scalar_lea.vmem %s3, %s868
      %p870 = pneg %p120
      %p871 = pneg %p117
      %p872 = pneg %p141
      %p873 = pneg %p138
      %p874 = pneg %p162
      %p875 = pneg %p159
      %p876 = pneg %p183
      %p877 = pneg %p180
      %p878 = pneg %p204
      %p879 = pneg %p201
      %p880 = pneg %p225
      %p881 = pneg %p222
      %p882 = pneg %p246
      %p883 = pneg %p243
      %p884 = pneg %p267
      %p885 = pneg %p264
      %p886 = pneg %p288
      %p887 = pneg %p285
      %p888 = pneg %p309
      %p889 = pneg %p306
      %p890 = pneg %p330
      %p891 = pneg %p327
      %p892 = pneg %p351
      %p893 = pneg %p348
      %p894 = pneg %p372
      %p895 = pneg %p369
      %p896 = pneg %p393
      %p897 = pneg %p390
      %p898 = pneg %p414
      %p899 = pneg %p411
      %p900 = pneg %p435
      %p901 = pneg %p432
      %p902 = pneg %p456
      %p903 = pneg %p453
      %p904 = pneg %p477
      %p905 = pneg %p474
      %p906 = pneg %p498
      %p907 = pneg %p495
      %p908 = pneg %p519
      %p909 = pneg %p516
      %p910 = pneg %p540
      %p911 = pneg %p537
      %p912 = pneg %p561
      %p913 = pneg %p558
      %p914 = pneg %p582
      %p915 = pneg %p579
      %p916 = pneg %p603
      %p917 = pneg %p600
      %p918 = pneg %p624
      %p919 = pneg %p621
      %p920 = pneg %p645
      %p921 = pneg %p642
      %p922 = pneg %p666
      %p923 = pneg %p663
      %p924 = pneg %p687
      %p925 = pneg %p684
      %p926 = pneg %p713
      %p927 = pneg %p710
      %p928 = scmp.lt.s32.totalorder %s73, 1
      %s929 = scalar_select %p928, %s73, 1
      %s930 = smul.addr %s929, 2
      %s931 = smul.addr %s930, 4
      %s932 = scalar_lea.vmem %s59, %s931
      %p933 = pneg %p739
      %p934 = pneg %p736
      %p935 = scmp.lt.s32.totalorder %s73, 1
      %s936 = scalar_select %p935, %s73, 1
      %s937 = smul.addr %s936, 8
      %s938 = scalar_lea.vmem %s61, %s937
      %p939 = scmp.lt.s32.totalorder %s73, 1
      %s940 = scalar_select %p939, %s73, 1
      %s941 = smul.addr %s940, 2
      %s942 = smul.addr %s941, 8
      %s943 = scalar_lea.vmem %s1, %s942
      %p944 = scmp.lt.s32.totalorder %s73, 1
      %s945 = scalar_select %p944, %s73, 1
      %s946 = scalar_lea.vmem %s3, %s945
      %p947 = scmp.lt.s32.totalorder %s73, 1
      %s948 = scalar_select %p947, %s73, 1
      %s949 = smul.addr %s948, 2
      %s950 = smul.addr %s949, 4
      %s951 = scalar_lea.vmem %s59, %s950
      %p952 = scmp.lt.s32.totalorder %s73, 1
      %s953 = scalar_select %p952, %s73, 1
      %s954 = smul.addr %s953, 8
      %s955 = scalar_lea.vmem %s61, %s954
      %v956 = vld [vmem:[%s5] sm:$0xff]
      %v957 = vld [vmem:[%s5 + $0x8] sm:$0xff]
      %v958 = vld [vmem:[%s5 + $0x10] sm:$0x1]
      %v959 = vld [vmem:[%s5 + $0x18] sm:$0x1]
      %v960 = vld [vmem:[%s943] sm:$0xff]
      %v961 = vld [vmem:[%s943 + $0x8] sm:$0xff]
      %962 = vrot.lane.b32.xlu0 %v960, 17
      %v963 = vpop.permute.xlu0 %962
      %964 = vrot.lane.b32.xlu0 %v961, 17
      %v965 = vpop.permute.xlu0 %964
      %v966 = vlaneseq
      %v967 = vand.u32 %v966, 127
      %vm968 = vcmp.lt.s32.totalorder %v967, 17
      %v969 = vsel %vm968, %v963, %v965
      %v970 = vsel %vm968, %v965, %v963
      %v971 = vlaneseq
      %v972 = vshrl.u32 %v971, 7
      %v973 = vsub.s32 0, %v972
      %v974 = vrot.slane %v956, %v973
      %v975 = vlaneseq
      %v976 = vshrl.u32 %v975, 7
      %v977 = vsub.s32 0, %v976
      %v978 = vrot.slane %v957, %v977
      %v979 = vmul.f32 %v970, %v974
      %v980 = vmul.f32 %v969, %v978
      %981 = vrot.lane.b32.xlu0 %v960, 16
      %v982 = vpop.permute.xlu0 %981
      %983 = vrot.lane.b32.xlu0 %v961, 16
      %v984 = vpop.permute.xlu0 %983
      %vm985 = vcmp.lt.s32.totalorder %v967, 16
      %v986 = vsel %vm985, %v982, %v984
      %v987 = vsel %vm985, %v984, %v982
      %v988 = vlaneseq
      %v989 = vshrl.u32 %v988, 7
      %v990 = vsub.s32 1, %v989
      %v991 = vrot.slane %v956, %v990
      %v992 = vlaneseq
      %v993 = vshrl.u32 %v992, 7
      %v994 = vsub.s32 1, %v993
      %v995 = vrot.slane %v957, %v994
      %v996 = vmul.f32 %v987, %v991
      %v997 = vmul.f32 %v986, %v995
      %998 = vrot.lane.b32.xlu0 %v960, 15
      %v999 = vpop.permute.xlu0 %998
      %1000 = vrot.lane.b32.xlu0 %v961, 15
      %v1001 = vpop.permute.xlu0 %1000
      %vm1002 = vcmp.lt.s32.totalorder %v967, 15
      %v1003 = vsel %vm1002, %v999, %v1001
      %v1004 = vsel %vm1002, %v1001, %v999
      %v1005 = vlaneseq
      %v1006 = vshrl.u32 %v1005, 7
      %v1007 = vsub.s32 2, %v1006
      %v1008 = vrot.slane %v956, %v1007
      %v1009 = vlaneseq
      %v1010 = vshrl.u32 %v1009, 7
      %v1011 = vsub.s32 2, %v1010
      %v1012 = vrot.slane %v957, %v1011
      %v1013 = vmul.f32 %v1004, %v1008
      %v1014 = vmul.f32 %v1003, %v1012
      %1015 = vrot.lane.b32.xlu0 %v960, 1
      %v1016 = vpop.permute.xlu0 %1015
      %1017 = vrot.lane.b32.xlu0 %v961, 1
      %v1018 = vpop.permute.xlu0 %1017
      %vm1019 = vcmp.lt.s32.totalorder %v967, 1
      %v1020 = vsel %vm1019, %v1016, %v1018
      %v1021 = vsel %vm1019, %v1018, %v1016
      %v1022 = vlaneseq
      %v1023 = vshrl.u32 %v1022, 7
      %v1024 = vsub.s32 3, %v1023
      %v1025 = vrot.slane %v956, %v1024
      %v1026 = vlaneseq
      %v1027 = vshrl.u32 %v1026, 7
      %v1028 = vsub.s32 3, %v1027
      %v1029 = vrot.slane %v957, %v1028
      %v1030 = vmul.f32 %v1021, %v1025
      %v1031 = vmul.f32 %v1020, %v1029
      %v1032 = vlaneseq
      %v1033 = vshrl.u32 %v1032, 7
      %v1034 = vsub.s32 4, %v1033
      %v1035 = vrot.slane %v956, %v1034
      %v1036 = vlaneseq
      %v1037 = vshrl.u32 %v1036, 7
      %v1038 = vsub.s32 4, %v1037
      %v1039 = vrot.slane %v957, %v1038
      %v1040 = vmul.f32 %v960, %v1035
      %v1041 = vmul.f32 %v961, %v1039
      %1042 = vrot.lane.b32.xlu0 %v960, 127
      %v1043 = vpop.permute.xlu0 %1042
      %1044 = vrot.lane.b32.xlu0 %v961, 127
      %v1045 = vpop.permute.xlu0 %1044
      %vm1046 = vcmp.lt.s32.totalorder %v967, 127
      %v1047 = vsel %vm1046, %v1043, %v1045
      %v1048 = vsel %vm1046, %v1045, %v1043
      %v1049 = vlaneseq
      %v1050 = vshrl.u32 %v1049, 7
      %v1051 = vsub.s32 5, %v1050
      %v1052 = vrot.slane %v956, %v1051
      %v1053 = vlaneseq
      %v1054 = vshrl.u32 %v1053, 7
      %v1055 = vsub.s32 5, %v1054
      %v1056 = vrot.slane %v957, %v1055
      %v1057 = vmul.f32 %v1047, %v1052
      %v1058 = vmul.f32 %v1048, %v1056
      %1059 = vrot.lane.b32.xlu0 %v960, 113
      %v1060 = vpop.permute.xlu0 %1059
      %1061 = vrot.lane.b32.xlu0 %v961, 113
      %v1062 = vpop.permute.xlu0 %1061
      %vm1063 = vcmp.lt.s32.totalorder %v967, 113
      %v1064 = vsel %vm1063, %v1060, %v1062
      %v1065 = vsel %vm1063, %v1062, %v1060
      %v1066 = vlaneseq
      %v1067 = vshrl.u32 %v1066, 7
      %v1068 = vsub.s32 6, %v1067
      %v1069 = vrot.slane %v956, %v1068
      %v1070 = vlaneseq
      %v1071 = vshrl.u32 %v1070, 7
      %v1072 = vsub.s32 6, %v1071
      %v1073 = vrot.slane %v957, %v1072
      %v1074 = vmul.f32 %v1064, %v1069
      %v1075 = vmul.f32 %v1065, %v1073
      %1076 = vrot.lane.b32.xlu0 %v960, 112
      %v1077 = vpop.permute.xlu0 %1076
      %1078 = vrot.lane.b32.xlu0 %v961, 112
      %v1079 = vpop.permute.xlu0 %1078
      %vm1080 = vcmp.lt.s32.totalorder %v967, 112
      %v1081 = vsel %vm1080, %v1077, %v1079
      %v1082 = vsel %vm1080, %v1079, %v1077
      %v1083 = vlaneseq
      %v1084 = vshrl.u32 %v1083, 7
      %v1085 = vsub.s32 7, %v1084
      %v1086 = vrot.slane %v956, %v1085
      %v1087 = vlaneseq
      %v1088 = vshrl.u32 %v1087, 7
      %v1089 = vsub.s32 7, %v1088
      %v1090 = vrot.slane %v957, %v1089
      %v1091 = vmul.f32 %v1081, %v1086
      %v1092 = vmul.f32 %v1082, %v1090
      %1093 = vrot.lane.b32.xlu0 %v960, 111
      %v1094 = vpop.permute.xlu0 %1093
      %1095 = vrot.lane.b32.xlu0 %v961, 111
      %v1096 = vpop.permute.xlu0 %1095
      %vm1097 = vcmp.lt.s32.totalorder %v967, 111
      %v1098 = vsel %vm1097, %v1094, %v1096
      %v1099 = vsel %vm1097, %v1096, %v1094
      %v1100 = vlaneseq
      %v1101 = vshrl.u32 %v1100, 7
      %v1102 = vsub.s32 0, %v1101
      %v1103 = vrot.slane %v958, %v1102
      %v1104 = vlaneseq
      %v1105 = vshrl.u32 %v1104, 7
      %v1106 = vsub.s32 0, %v1105
      %v1107 = vrot.slane %v959, %v1106
      %v1108 = vmul.f32 %v1098, %v1103
      %v1109 = vmul.f32 %v1099, %v1107
      %v1110 = vld [vmem:[%s7] sm:$0xff]
      %v1111 = vld [vmem:[%s7 + $0x8] sm:$0xff]
      %vm1112 = vcmask 588800
      %v1114 = vsel %vm1112, %v1110, 0
      %v1117 = vsel %vm1112, %v1111, 0
      %1119 = vmatprep.subr.mxu0 %v980
      %1120 = vmatpush1.msra.mxu0 %v979
      %1121 = vmatprep.subr.mxu0 %v997
      %1122 = vmatpush1.msra.mxu0 %v996
      %1123 = vmatprep.subr.mxu0 %v1014
      %1124 = vmatpush1.msra.mxu0 %v1013
      %1125 = vmatprep.subr.mxu0 %v1031
      %1126 = vmatpush1.msra.mxu0 %v1030
      %1127 = vmatprep.subr.mxu0 %v1041
      %1128 = vmatpush1.msra.mxu0 %v1040
      %1129 = vmatprep.subr.mxu0 %v1058
      %1130 = vmatpush1.msra.mxu0 %v1057
      %1131 = vmatprep.subr.mxu0 %v1075
      %1132 = vmatpush1.msra.mxu0 %v1074
      %1133 = vmatprep.subr.mxu0 %v1092
      %1134 = vmatpush1.msra.mxu0 %v1091
      %1135 = vmatprep.subr.mxu0 %v1109
      %1136 = vmatpush1.msra.mxu0 %v1108
      %1137 = vmatprep.subr.mxu0 0.0
      %1138 = vmatpush1.msra.mxu0 0.0
      %1139 = vmatprep.subr.mxu0 0.0
      %1140 = vmatpush1.msra.mxu0 0.0
      %1141 = vmatprep.subr.mxu0 0.0
      %1142 = vmatpush1.msra.mxu0 0.0
      %1143 = vmatprep.subr.mxu0 0.0
      %1144 = vmatpush1.msra.mxu0 0.0
      %1145 = vmatprep.subr.mxu0 0.0
      %1146 = vmatpush1.msra.mxu0 0.0
      %1147 = vmatprep.subr.mxu0 0.0
      %1148 = vmatpush1.msra.mxu0 0.0
      %1149 = vmatprep.subr.mxu0 0.0
      %1150 = vmatpush1.msra.mxu0 0.0
      %1151 = vmatprep.subr.mxu0 0.0
      %1152 = vmatpush1.msra.mxu0 0.0
      %1153 = vmatprep.subr.mxu0 0.0
      %1154 = vmatpush1.msra.mxu0 0.0
      %1155 = vmatprep.subr.mxu0 0.0
      %1156 = vmatpush1.msra.mxu0 0.0
      %1157 = vmatprep.subr.mxu0 0.0
      %1158 = vmatpush1.msra.mxu0 0.0
      %1159 = vmatprep.subr.mxu0 0.0
      %1160 = vmatpush1.msra.mxu0 0.0
      %1161 = vmatprep.subr.mxu0 0.0
      %1162 = vmatpush1.msra.mxu0 0.0
      %1163 = vmatprep.subr.mxu0 0.0
      %1164 = vmatpush1.msra.mxu0 0.0
      %1165 = vmatprep.subr.mxu0 0.0
      %1166 = vmatpush1.msra.mxu0 0.0
      %1167 = vmatprep.subr.mxu0 0.0
      %1168 = vmatpush1.msra.mxu0 0.0
      %1169 = vmatprep.subr.mxu0 0.0
      %1170 = vmatpush1.msra.mxu0 0.0
      %1171 = vmatprep.subr.mxu0 0.0
      %1172 = vmatpush1.msra.mxu0 0.0
      %1173 = vmatprep.subr.mxu0 0.0
      %1174 = vmatpush1.msra.mxu0 0.0
      %1175 = vmatprep.subr.mxu0 0.0
      %1176 = vmatpush1.msra.mxu0 0.0
      %1177 = vmatprep.subr.mxu0 0.0
      %1178 = vmatpush1.msra.mxu0 0.0
      %1179 = vmatprep.subr.mxu0 0.0
      %1180 = vmatpush1.msra.mxu0 0.0
      %1181 = vmatprep.subr.mxu0 0.0
      %1182 = vmatpush1.msra.mxu0 0.0
      %1183 = vmatprep.mubr.f32.mxu0 0.0
      %1184 = vmatmul.mubr.f32.gmra.mrb[0].mxu0 %v1114
      %v1185 = vpop.f32.mrb[0].mxu0
      %v1186 = vadd.f32 0.0, %v1185
      %v1187 = vpop.f32.mrb[0].mxu0
      %v1188 = vadd.f32 0.0, %v1187
      %1189 = vmatprep.mubr.f32.mxu0 0.0
      %1190 = vmatmul.mubr.f32.gmra.mrb[0].mxu0 %v1117
      %v1191 = vpop.f32.mrb[0].mxu0
      %v1192 = vadd.f32 0.0, %v1191
      %v1193 = vpop.f32.mrb[0].mxu0
      %v1194 = vadd.f32 0.0, %v1193
      %1195 = vdwg.mxu0
      %v1196 = vld [vmem:[%s9] sm:$0xff]
      %v1197 = vld [vmem:[%s9 + $0x8] sm:$0xff]
      %1199 = vset.pattern.permute.xlu0 0
      %1200 = vperm.xlu0 %1199, %v1196
      %v1201 = vpop.permute.xlu0 %1200
      %1204 = vset.pattern.permute.xlu0 0
      %1205 = vperm.xlu0 %1204, %v1197
      %v1206 = vpop.permute.xlu0 %1205
      %v1208 = vmul.f32 %v1186, %v1201
      %v1209 = vmul.f32 %v1188, %v1201
      %v1210 = vmul.f32 %v1192, %v1206
      %v1211 = vmul.f32 %v1194, %v1206
      %v1212 = vld [vmem:[%s11] sm:$0xff]
      %v1213 = vld [vmem:[%s11 + $0x8] sm:$0xff]
      %1215 = vset.pattern.permute.xlu0 0
      %1216 = vperm.xlu0 %1215, %v1212
      %v1217 = vpop.permute.xlu0 %1216
      %1220 = vset.pattern.permute.xlu0 0
      %1221 = vperm.xlu0 %1220, %v1213
      %v1222 = vpop.permute.xlu0 %1221
      %v1224 = vadd.f32 %v1208, %v1217
      %v1225 = vadd.f32 %v1209, %v1217
      %v1226 = vadd.f32 %v1210, %v1222
      %v1227 = vadd.f32 %v1211, %v1222
      %v1228 = vmax.f32 %v1224, 0.0
      %v1229 = vmax.f32 %v1225, 0.0
      %v1230 = vmax.f32 %v1226, 0.0
      %v1231 = vmax.f32 %v1227, 0.0
      %1232 = vrot.lane.b32.xlu0 %v1228, 17
      %v1233 = vpop.permute.xlu0 %1232
      %1234 = vrot.lane.b32.xlu0 %v1230, 17
      %v1235 = vpop.permute.xlu0 %1234
      %1236 = vrot.lane.b32.xlu0 %v1229, 17
      %v1237 = vpop.permute.xlu0 %1236
      %1238 = vrot.lane.b32.xlu0 %v1231, 17
      %v1239 = vpop.permute.xlu0 %1238
      %v1240 = vsel %vm968, %v1233, %v1237
      %v1241 = vsel %vm968, %v1235, %v1239
      %v1242 = vsel %vm968, %v1237, %v1233
      %v1243 = vsel %vm968, %v1239, %v1235
      %v1244 = vmul.f32 %v1242, %v974
      %v1245 = vmul.f32 %v1240, %v978
      %v1246 = vmul.f32 %v1243, %v974
      %v1247 = vmul.f32 %v1241, %v978
      %1248 = vrot.lane.b32.xlu0 %v1228, 16
      %v1249 = vpop.permute.xlu0 %1248
      %1250 = vrot.lane.b32.xlu0 %v1230, 16
      %v1251 = vpop.permute.xlu0 %1250
      %1252 = vrot.lane.b32.xlu0 %v1229, 16
      %v1253 = vpop.permute.xlu0 %1252
      %1254 = vrot.lane.b32.xlu0 %v1231, 16
      %v1255 = vpop.permute.xlu0 %1254
      %v1256 = vsel %vm985, %v1249, %v1253
      %v1257 = vsel %vm985, %v1251, %v1255
      %v1258 = vsel %vm985, %v1253, %v1249
      %v1259 = vsel %vm985, %v1255, %v1251
      %v1260 = vmul.f32 %v1258, %v991
      %v1261 = vmul.f32 %v1256, %v995
      %v1262 = vmul.f32 %v1259, %v991
      %v1263 = vmul.f32 %v1257, %v995
      %1264 = vrot.lane.b32.xlu0 %v1228, 15
      %v1265 = vpop.permute.xlu0 %1264
      %1266 = vrot.lane.b32.xlu0 %v1230, 15
      %v1267 = vpop.permute.xlu0 %1266
      %1268 = vrot.lane.b32.xlu0 %v1229, 15
      %v1269 = vpop.permute.xlu0 %1268
      %1270 = vrot.lane.b32.xlu0 %v1231, 15
      %v1271 = vpop.permute.xlu0 %1270
      %v1272 = vsel %vm1002, %v1265, %v1269
      %v1273 = vsel %vm1002, %v1267, %v1271
      %v1274 = vsel %vm1002, %v1269, %v1265
      %v1275 = vsel %vm1002, %v1271, %v1267
      %v1276 = vmul.f32 %v1274, %v1008
      %v1277 = vmul.f32 %v1272, %v1012
      %v1278 = vmul.f32 %v1275, %v1008
      %v1279 = vmul.f32 %v1273, %v1012
      %1280 = vrot.lane.b32.xlu0 %v1228, 1
      %v1281 = vpop.permute.xlu0 %1280
      %1282 = vrot.lane.b32.xlu0 %v1230, 1
      %v1283 = vpop.permute.xlu0 %1282
      %1284 = vrot.lane.b32.xlu0 %v1229, 1
      %v1285 = vpop.permute.xlu0 %1284
      %1286 = vrot.lane.b32.xlu0 %v1231, 1
      %v1287 = vpop.permute.xlu0 %1286
      %v1288 = vsel %vm1019, %v1281, %v1285
      %v1289 = vsel %vm1019, %v1283, %v1287
      %v1290 = vsel %vm1019, %v1285, %v1281
      %v1291 = vsel %vm1019, %v1287, %v1283
      %v1292 = vmul.f32 %v1290, %v1025
      %v1293 = vmul.f32 %v1288, %v1029
      %v1294 = vmul.f32 %v1291, %v1025
      %v1295 = vmul.f32 %v1289, %v1029
      %v1296 = vmul.f32 %v1228, %v1035
      %v1297 = vmul.f32 %v1229, %v1039
      %v1298 = vmul.f32 %v1230, %v1035
      %v1299 = vmul.f32 %v1231, %v1039
      %1300 = vrot.lane.b32.xlu0 %v1228, 127
      %v1301 = vpop.permute.xlu0 %1300
      %1302 = vrot.lane.b32.xlu0 %v1230, 127
      %v1303 = vpop.permute.xlu0 %1302
      %1304 = vrot.lane.b32.xlu0 %v1229, 127
      %v1305 = vpop.permute.xlu0 %1304
      %1306 = vrot.lane.b32.xlu0 %v1231, 127
      %v1307 = vpop.permute.xlu0 %1306
      %v1308 = vsel %vm1046, %v1301, %v1305
      %v1309 = vsel %vm1046, %v1303, %v1307
      %v1310 = vsel %vm1046, %v1305, %v1301
      %v1311 = vsel %vm1046, %v1307, %v1303
      %v1312 = vmul.f32 %v1308, %v1052
      %v1313 = vmul.f32 %v1310, %v1056
      %v1314 = vmul.f32 %v1309, %v1052
      %v1315 = vmul.f32 %v1311, %v1056
      %1316 = vrot.lane.b32.xlu0 %v1228, 113
      %v1317 = vpop.permute.xlu0 %1316
      %1318 = vrot.lane.b32.xlu0 %v1230, 113
      %v1319 = vpop.permute.xlu0 %1318
      %1320 = vrot.lane.b32.xlu0 %v1229, 113
      %v1321 = vpop.permute.xlu0 %1320
      %1322 = vrot.lane.b32.xlu0 %v1231, 113
      %v1323 = vpop.permute.xlu0 %1322
      %v1324 = vsel %vm1063, %v1317, %v1321
      %v1325 = vsel %vm1063, %v1319, %v1323
      %v1326 = vsel %vm1063, %v1321, %v1317
      %v1327 = vsel %vm1063, %v1323, %v1319
      %v1328 = vmul.f32 %v1324, %v1069
      %v1329 = vmul.f32 %v1326, %v1073
      %v1330 = vmul.f32 %v1325, %v1069
      %v1331 = vmul.f32 %v1327, %v1073
      %1332 = vrot.lane.b32.xlu0 %v1228, 112
      %v1333 = vpop.permute.xlu0 %1332
      %1334 = vrot.lane.b32.xlu0 %v1230, 112
      %v1335 = vpop.permute.xlu0 %1334
      %1336 = vrot.lane.b32.xlu0 %v1229, 112
      %v1337 = vpop.permute.xlu0 %1336
      %1338 = vrot.lane.b32.xlu0 %v1231, 112
      %v1339 = vpop.permute.xlu0 %1338
      %v1340 = vsel %vm1080, %v1333, %v1337
      %v1341 = vsel %vm1080, %v1335, %v1339
      %v1342 = vsel %vm1080, %v1337, %v1333
      %v1343 = vsel %vm1080, %v1339, %v1335
      %v1344 = vmul.f32 %v1340, %v1086
      %v1345 = vmul.f32 %v1342, %v1090
      %v1346 = vmul.f32 %v1341, %v1086
      %v1347 = vmul.f32 %v1343, %v1090
      %1348 = vrot.lane.b32.xlu0 %v1228, 111
      %v1349 = vpop.permute.xlu0 %1348
      %1350 = vrot.lane.b32.xlu0 %v1230, 111
      %v1351 = vpop.permute.xlu0 %1350
      %1352 = vrot.lane.b32.xlu0 %v1229, 111
      %v1353 = vpop.permute.xlu0 %1352
      %1354 = vrot.lane.b32.xlu0 %v1231, 111
      %v1355 = vpop.permute.xlu0 %1354
      %v1356 = vsel %vm1097, %v1349, %v1353
      %v1357 = vsel %vm1097, %v1351, %v1355
      %v1358 = vsel %vm1097, %v1353, %v1349
      %v1359 = vsel %vm1097, %v1355, %v1351
      %v1360 = vmul.f32 %v1356, %v1103
      %v1361 = vmul.f32 %v1358, %v1107
      %v1362 = vmul.f32 %v1357, %v1103
      %v1363 = vmul.f32 %v1359, %v1107
      %v1364 = vld [vmem:[%s13] sm:$0xff]
      %v1365 = vld [vmem:[%s13 + $0x8] sm:$0xff]
      %v1366 = vld [vmem:[%s13 + $0x10] sm:$0xff]
      %v1367 = vld [vmem:[%s13 + $0x18] sm:$0xff]
      %vm1368 = vcmask 130048
      %v1370 = vsel %vm1368, %v1365, 0
      %v1373 = vsel %vm1368, %v1367, 0
      %1375 = vmatprep.subr.mxu0 %v1245
      %1376 = vmatpush1.msra.mxu0 %v1244
      %1377 = vmatprep.subr.mxu0 %v1247
      %1378 = vmatpush1.msra.mxu0 %v1246
      %1379 = vmatprep.subr.mxu0 %v1261
      %1380 = vmatpush1.msra.mxu0 %v1260
      %1381 = vmatprep.subr.mxu0 %v1263
      %1382 = vmatpush1.msra.mxu0 %v1262
      %1383 = vmatprep.subr.mxu0 %v1277
      %1384 = vmatpush1.msra.mxu0 %v1276
      %1385 = vmatprep.subr.mxu0 %v1279
      %1386 = vmatpush1.msra.mxu0 %v1278
      %1387 = vmatprep.subr.mxu0 %v1293
      %1388 = vmatpush1.msra.mxu0 %v1292
      %1389 = vmatprep.subr.mxu0 %v1295
      %1390 = vmatpush1.msra.mxu0 %v1294
      %1391 = vmatprep.subr.mxu0 %v1297
      %1392 = vmatpush1.msra.mxu0 %v1296
      %1393 = vmatprep.subr.mxu0 %v1299
      %1394 = vmatpush1.msra.mxu0 %v1298
      %1395 = vmatprep.subr.mxu0 %v1313
      %1396 = vmatpush1.msra.mxu0 %v1312
      %1397 = vmatprep.subr.mxu0 %v1315
      %1398 = vmatpush1.msra.mxu0 %v1314
      %1399 = vmatprep.subr.mxu0 %v1329
      %1400 = vmatpush1.msra.mxu0 %v1328
      %1401 = vmatprep.subr.mxu0 %v1331
      %1402 = vmatpush1.msra.mxu0 %v1330
      %1403 = vmatprep.subr.mxu0 %v1345
      %1404 = vmatpush1.msra.mxu0 %v1344
      %1405 = vmatprep.subr.mxu0 %v1347
      %1406 = vmatpush1.msra.mxu0 %v1346
      %1407 = vmatprep.subr.mxu0 %v1361
      %1408 = vmatpush1.msra.mxu0 %v1360
      %1409 = vmatprep.subr.mxu0 %v1363
      %1410 = vmatpush1.msra.mxu0 %v1362
      %1411 = vmatprep.subr.mxu0 0.0
      %1412 = vmatpush1.msra.mxu0 0.0
      %1413 = vmatprep.subr.mxu0 0.0
      %1414 = vmatpush1.msra.mxu0 0.0
      %1415 = vmatprep.subr.mxu0 0.0
      %1416 = vmatpush1.msra.mxu0 0.0
      %1417 = vmatprep.subr.mxu0 0.0
      %1418 = vmatpush1.msra.mxu0 0.0
      %1419 = vmatprep.subr.mxu0 0.0
      %1420 = vmatpush1.msra.mxu0 0.0
      %1421 = vmatprep.subr.mxu0 0.0
      %1422 = vmatpush1.msra.mxu0 0.0
      %1423 = vmatprep.subr.mxu0 0.0
      %1424 = vmatpush1.msra.mxu0 0.0
      %1425 = vmatprep.subr.mxu0 0.0
      %1426 = vmatpush1.msra.mxu0 0.0
      %1427 = vmatprep.subr.mxu0 0.0
      %1428 = vmatpush1.msra.mxu0 0.0
      %1429 = vmatprep.subr.mxu0 0.0
      %1430 = vmatpush1.msra.mxu0 0.0
      %1431 = vmatprep.subr.mxu0 0.0
      %1432 = vmatpush1.msra.mxu0 0.0
      %1433 = vmatprep.subr.mxu0 0.0
      %1434 = vmatpush1.msra.mxu0 0.0
      %1435 = vmatprep.subr.mxu0 0.0
      %1436 = vmatpush1.msra.mxu0 0.0
      %1437 = vmatprep.subr.mxu0 0.0
      %1438 = vmatpush1.msra.mxu0 0.0
      %1439 = vmatprep.mubr.f32.mxu0 %v1370
      %1440 = vmatmul.mubr.f32.gmra.mrb[0].mxu0 %v1364
      %v1441 = vpop.f32.mrb[0].mxu0
      %v1442 = vadd.f32 0.0, %v1441
      %v1443 = vpop.f32.mrb[0].mxu0
      %v1444 = vadd.f32 0.0, %v1443
      %1445 = vmatprep.mubr.f32.mxu0 %v1373
      %1446 = vmatmul.mubr.f32.gmra.mrb[0].mxu0 %v1366
      %v1447 = vpop.f32.mrb[0].mxu0
      %v1448 = vadd.f32 0.0, %v1447
      %v1449 = vpop.f32.mrb[0].mxu0
      %v1450 = vadd.f32 0.0, %v1449
      %1451 = vdwg.mxu0
      %v1452 = vld [vmem:[%s15] sm:$0xff]
      %v1453 = vld [vmem:[%s15 + $0x8] sm:$0xff]
      %1455 = vset.pattern.permute.xlu0 0
      %1456 = vperm.xlu0 %1455, %v1452
      %v1457 = vpop.permute.xlu0 %1456
      %1460 = vset.pattern.permute.xlu0 0
      %1461 = vperm.xlu0 %1460, %v1453
      %v1462 = vpop.permute.xlu0 %1461
      %v1464 = vmul.f32 %v1442, %v1457
      %v1465 = vmul.f32 %v1444, %v1457
      %v1466 = vmul.f32 %v1448, %v1462
      %v1467 = vmul.f32 %v1450, %v1462
      %v1468 = vld [vmem:[%s17] sm:$0xff]
      %v1469 = vld [vmem:[%s17 + $0x8] sm:$0xff]
      %1471 = vset.pattern.permute.xlu0 0
      %1472 = vperm.xlu0 %1471, %v1468
      %v1473 = vpop.permute.xlu0 %1472
      %1476 = vset.pattern.permute.xlu0 0
      %1477 = vperm.xlu0 %1476, %v1469
      %v1478 = vpop.permute.xlu0 %1477
      %v1480 = vadd.f32 %v1464, %v1473
      %v1481 = vadd.f32 %v1465, %v1473
      %v1482 = vadd.f32 %v1466, %v1478
      %v1483 = vadd.f32 %v1467, %v1478
      %v1484 = vmax.f32 %v1480, 0.0
      %v1485 = vmax.f32 %v1481, 0.0
      %v1486 = vmax.f32 %v1482, 0.0
      %v1487 = vmax.f32 %v1483, 0.0
      %v1488 = vld [vmem:[%s946] sm:$0x1]
      %v1489 = vld [vmem:[%s25] sm:$0xff]
      %v1490 = vld [vmem:[%s25 + $0x8] sm:$0xff]
      %v1491 = vld [vmem:[%s25 + $0x10] sm:$0xff]
      %v1492 = vld [vmem:[%s25 + $0x18] sm:$0xff]
      %v1493 = vld [vmem:[%s25 + $0x20] sm:$0xff]
      %v1494 = vld [vmem:[%s25 + $0x28] sm:$0xff]
      %v1495 = vld [vmem:[%s25 + $0x30] sm:$0xff]
      %v1496 = vld [vmem:[%s25 + $0x38] sm:$0xff]
      %v1497 = vld [vmem:[%s25 + $0x40] sm:$0xff]
      %v1498 = vld [vmem:[%s25 + $0x48] sm:$0xff]
      %v1499 = vld [vmem:[%s25 + $0x50] sm:$0xff]
      %v1500 = vld [vmem:[%s25 + $0x58] sm:$0xff]
      %v1501 = vld [vmem:[%s25 + $0x60] sm:$0xff]
      %v1502 = vld [vmem:[%s25 + $0x68] sm:$0xff]
      %v1503 = vld [vmem:[%s25 + $0x70] sm:$0xff]
      %v1504 = vld [vmem:[%s25 + $0x78] sm:$0xff]
      %v1505 = vld [vmem:[%s25 + $0x80] sm:$0xff]
      %v1506 = vld [vmem:[%s25 + $0x88] sm:$0xff]
      %v1508 = vlaneseq
      %v1509 = vshrl.u32 %v1508, 7
      %v1510 = vsub.s32 0, %v1509
      %v1511 = vrot.slane %v1488, %v1510
      %v1513 = vmul.f32 %v1489, %v1511
      %v1514 = vmul.f32 %v1490, %v1511
      %vm1515 = vcmask 64512
      %v1516 = vsel %vm1515, %v1513, 0.0
      %1517 = vadd.xlane.f32.xlu0 %v1516
      %v1518 = vpop.xlane.xlu0 %1517
      %v1519 = vsel %vm1515, %v1514, 0.0
      %1520 = vadd.xlane.f32.xlu0 %v1519
      %v1521 = vpop.xlane.xlu0 %1520
      %v1522 = vmul.f32 %v1518, %v974
      %v1523 = vmul.f32 %v1518, %v978
      %v1524 = vmul.f32 %v1521, %v974
      %v1525 = vmul.f32 %v1521, %v978
      %v1526 = vadd.f32 %v1522, 0.0
      %v1527 = vadd.f32 %v1523, 0.0
      %v1528 = vadd.f32 %v1524, 0.0
      %v1529 = vadd.f32 %v1525, 0.0
      %v1530 = vmul.f32 %v1491, %v1511
      %v1531 = vmul.f32 %v1492, %v1511
      %v1532 = vsel %vm1515, %v1530, 0.0
      %1533 = vadd.xlane.f32.xlu0 %v1532
      %v1534 = vpop.xlane.xlu0 %1533
      %v1535 = vsel %vm1515, %v1531, 0.0
      %1536 = vadd.xlane.f32.xlu0 %v1535
      %v1537 = vpop.xlane.xlu0 %1536
      %v1538 = vmul.f32 %v1534, %v991
      %v1539 = vmul.f32 %v1534, %v995
      %v1540 = vmul.f32 %v1537, %v991
      %v1541 = vmul.f32 %v1537, %v995
      %v1542 = vadd.f32 %v1526, %v1538
      %v1543 = vadd.f32 %v1527, %v1539
      %v1544 = vadd.f32 %v1528, %v1540
      %v1545 = vadd.f32 %v1529, %v1541
      %v1546 = vmul.f32 %v1493, %v1511
      %v1547 = vmul.f32 %v1494, %v1511
      %v1548 = vsel %vm1515, %v1546, 0.0
      %1549 = vadd.xlane.f32.xlu0 %v1548
      %v1550 = vpop.xlane.xlu0 %1549
      %v1551 = vsel %vm1515, %v1547, 0.0
      %1552 = vadd.xlane.f32.xlu0 %v1551
      %v1553 = vpop.xlane.xlu0 %1552
      %v1554 = vmul.f32 %v1550, %v1008
      %v1555 = vmul.f32 %v1550, %v1012
      %v1556 = vmul.f32 %v1553, %v1008
      %v1557 = vmul.f32 %v1553, %v1012
      %v1558 = vadd.f32 %v1542, %v1554
      %v1559 = vadd.f32 %v1543, %v1555
      %v1560 = vadd.f32 %v1544, %v1556
      %v1561 = vadd.f32 %v1545, %v1557
      %v1562 = vmul.f32 %v1495, %v1511
      %v1563 = vmul.f32 %v1496, %v1511
      %v1564 = vsel %vm1515, %v1562, 0.0
      %1565 = vadd.xlane.f32.xlu0 %v1564
      %v1566 = vpop.xlane.xlu0 %1565
      %v1567 = vsel %vm1515, %v1563, 0.0
      %1568 = vadd.xlane.f32.xlu0 %v1567
      %v1569 = vpop.xlane.xlu0 %1568
      %v1570 = vmul.f32 %v1566, %v1025
      %v1571 = vmul.f32 %v1566, %v1029
      %v1572 = vmul.f32 %v1569, %v1025
      %v1573 = vmul.f32 %v1569, %v1029
      %v1574 = vadd.f32 %v1558, %v1570
      %v1575 = vadd.f32 %v1559, %v1571
      %v1576 = vadd.f32 %v1560, %v1572
      %v1577 = vadd.f32 %v1561, %v1573
      %v1578 = vmul.f32 %v1497, %v1511
      %v1579 = vmul.f32 %v1498, %v1511
      %v1580 = vsel %vm1515, %v1578, 0.0
      %1581 = vadd.xlane.f32.xlu0 %v1580
      %v1582 = vpop.xlane.xlu0 %1581
      %v1583 = vsel %vm1515, %v1579, 0.0
      %1584 = vadd.xlane.f32.xlu0 %v1583
      %v1585 = vpop.xlane.xlu0 %1584
      %v1586 = vmul.f32 %v1582, %v1035
      %v1587 = vmul.f32 %v1582, %v1039
      %v1588 = vmul.f32 %v1585, %v1035
      %v1589 = vmul.f32 %v1585, %v1039
      %v1590 = vadd.f32 %v1574, %v1586
      %v1591 = vadd.f32 %v1575, %v1587
      %v1592 = vadd.f32 %v1576, %v1588
      %v1593 = vadd.f32 %v1577, %v1589
      %v1594 = vmul.f32 %v1499, %v1511
      %v1595 = vmul.f32 %v1500, %v1511
      %v1596 = vsel %vm1515, %v1594, 0.0
      %1597 = vadd.xlane.f32.xlu0 %v1596
      %v1598 = vpop.xlane.xlu0 %1597
      %v1599 = vsel %vm1515, %v1595, 0.0
      %1600 = vadd.xlane.f32.xlu0 %v1599
      %v1601 = vpop.xlane.xlu0 %1600
      %v1602 = vmul.f32 %v1598, %v1052
      %v1603 = vmul.f32 %v1598, %v1056
      %v1604 = vmul.f32 %v1601, %v1052
      %v1605 = vmul.f32 %v1601, %v1056
      %v1606 = vadd.f32 %v1590, %v1602
      %v1607 = vadd.f32 %v1591, %v1603
      %v1608 = vadd.f32 %v1592, %v1604
      %v1609 = vadd.f32 %v1593, %v1605
      %v1610 = vmul.f32 %v1501, %v1511
      %v1611 = vmul.f32 %v1502, %v1511
      %v1612 = vsel %vm1515, %v1610, 0.0
      %1613 = vadd.xlane.f32.xlu0 %v1612
      %v1614 = vpop.xlane.xlu0 %1613
      %v1615 = vsel %vm1515, %v1611, 0.0
      %1616 = vadd.xlane.f32.xlu0 %v1615
      %v1617 = vpop.xlane.xlu0 %1616
      %v1618 = vmul.f32 %v1614, %v1069
      %v1619 = vmul.f32 %v1614, %v1073
      %v1620 = vmul.f32 %v1617, %v1069
      %v1621 = vmul.f32 %v1617, %v1073
      %v1622 = vadd.f32 %v1606, %v1618
      %v1623 = vadd.f32 %v1607, %v1619
      %v1624 = vadd.f32 %v1608, %v1620
      %v1625 = vadd.f32 %v1609, %v1621
      %v1626 = vmul.f32 %v1503, %v1511
      %v1627 = vmul.f32 %v1504, %v1511
      %v1628 = vsel %vm1515, %v1626, 0.0
      %1629 = vadd.xlane.f32.xlu0 %v1628
      %v1630 = vpop.xlane.xlu0 %1629
      %v1631 = vsel %vm1515, %v1627, 0.0
      %1632 = vadd.xlane.f32.xlu0 %v1631
      %v1633 = vpop.xlane.xlu0 %1632
      %v1634 = vmul.f32 %v1630, %v1086
      %v1635 = vmul.f32 %v1630, %v1090
      %v1636 = vmul.f32 %v1633, %v1086
      %v1637 = vmul.f32 %v1633, %v1090
      %v1638 = vadd.f32 %v1622, %v1634
      %v1639 = vadd.f32 %v1623, %v1635
      %v1640 = vadd.f32 %v1624, %v1636
      %v1641 = vadd.f32 %v1625, %v1637
      %v1642 = vmul.f32 %v1505, %v1511
      %v1643 = vmul.f32 %v1506, %v1511
      %v1644 = vsel %vm1515, %v1642, 0.0
      %1645 = vadd.xlane.f32.xlu0 %v1644
      %v1646 = vpop.xlane.xlu0 %1645
      %v1647 = vsel %vm1515, %v1643, 0.0
      %1648 = vadd.xlane.f32.xlu0 %v1647
      %v1649 = vpop.xlane.xlu0 %1648
      %v1650 = vmul.f32 %v1646, %v1103
      %v1651 = vmul.f32 %v1646, %v1107
      %v1652 = vmul.f32 %v1649, %v1103
      %v1653 = vmul.f32 %v1649, %v1107
      %v1654 = vadd.f32 %v1638, %v1650
      %v1655 = vadd.f32 %v1639, %v1651
      %v1656 = vadd.f32 %v1640, %v1652
      %v1657 = vadd.f32 %v1641, %v1653
      %1658 = vrot.lane.b32.xlu0 %v1484, 17
      %v1659 = vpop.permute.xlu0 %1658
      %1660 = vrot.lane.b32.xlu0 %v1486, 17
      %v1661 = vpop.permute.xlu0 %1660
      %1662 = vrot.lane.b32.xlu0 %v1485, 17
      %v1663 = vpop.permute.xlu0 %1662
      %1664 = vrot.lane.b32.xlu0 %v1487, 17
      %v1665 = vpop.permute.xlu0 %1664
      %v1666 = vsel %vm968, %v1659, %v1663
      %v1667 = vsel %vm968, %v1661, %v1665
      %v1668 = vsel %vm968, %v1663, %v1659
      %v1669 = vsel %vm968, %v1665, %v1661
      %v1670 = vmul.f32 %v1668, %v974
      %v1671 = vmul.f32 %v1666, %v978
      %v1672 = vmul.f32 %v1669, %v974
      %v1673 = vmul.f32 %v1667, %v978
      %1674 = vrot.lane.b32.xlu0 %v1484, 16
      %v1675 = vpop.permute.xlu0 %1674
      %1676 = vrot.lane.b32.xlu0 %v1486, 16
      %v1677 = vpop.permute.xlu0 %1676
      %1678 = vrot.lane.b32.xlu0 %v1485, 16
      %v1679 = vpop.permute.xlu0 %1678
      %1680 = vrot.lane.b32.xlu0 %v1487, 16
      %v1681 = vpop.permute.xlu0 %1680
      %v1682 = vsel %vm985, %v1675, %v1679
      %v1683 = vsel %vm985, %v1677, %v1681
      %v1684 = vsel %vm985, %v1679, %v1675
      %v1685 = vsel %vm985, %v1681, %v1677
      %v1686 = vmul.f32 %v1684, %v991
      %v1687 = vmul.f32 %v1682, %v995
      %v1688 = vmul.f32 %v1685, %v991
      %v1689 = vmul.f32 %v1683, %v995
      %1690 = vrot.lane.b32.xlu0 %v1484, 15
      %v1691 = vpop.permute.xlu0 %1690
      %1692 = vrot.lane.b32.xlu0 %v1486, 15
      %v1693 = vpop.permute.xlu0 %1692
      %1694 = vrot.lane.b32.xlu0 %v1485, 15
      %v1695 = vpop.permute.xlu0 %1694
      %1696 = vrot.lane.b32.xlu0 %v1487, 15
      %v1697 = vpop.permute.xlu0 %1696
      %v1698 = vsel %vm1002, %v1691, %v1695
      %v1699 = vsel %vm1002, %v1693, %v1697
      %v1700 = vsel %vm1002, %v1695, %v1691
      %v1701 = vsel %vm1002, %v1697, %v1693
      %v1702 = vmul.f32 %v1700, %v1008
      %v1703 = vmul.f32 %v1698, %v1012
      %v1704 = vmul.f32 %v1701, %v1008
      %v1705 = vmul.f32 %v1699, %v1012
      %1706 = vrot.lane.b32.xlu0 %v1484, 1
      %v1707 = vpop.permute.xlu0 %1706
      %1708 = vrot.lane.b32.xlu0 %v1486, 1
      %v1709 = vpop.permute.xlu0 %1708
      %1710 = vrot.lane.b32.xlu0 %v1485, 1
      %v1711 = vpop.permute.xlu0 %1710
      %1712 = vrot.lane.b32.xlu0 %v1487, 1
      %v1713 = vpop.permute.xlu0 %1712
      %v1714 = vsel %vm1019, %v1707, %v1711
      %v1715 = vsel %vm1019, %v1709, %v1713
      %v1716 = vsel %vm1019, %v1711, %v1707
      %v1717 = vsel %vm1019, %v1713, %v1709
      %v1718 = vmul.f32 %v1716, %v1025
      %v1719 = vmul.f32 %v1714, %v1029
      %v1720 = vmul.f32 %v1717, %v1025
      %v1721 = vmul.f32 %v1715, %v1029
      %v1722 = vmul.f32 %v1484, %v1035
      %v1723 = vmul.f32 %v1485, %v1039
      %v1724 = vmul.f32 %v1486, %v1035
      %v1725 = vmul.f32 %v1487, %v1039
      %1726 = vrot.lane.b32.xlu0 %v1484, 127
      %v1727 = vpop.permute.xlu0 %1726
      %1728 = vrot.lane.b32.xlu0 %v1486, 127
      %v1729 = vpop.permute.xlu0 %1728
      %1730 = vrot.lane.b32.xlu0 %v1485, 127
      %v1731 = vpop.permute.xlu0 %1730
      %1732 = vrot.lane.b32.xlu0 %v1487, 127
      %v1733 = vpop.permute.xlu0 %1732
      %v1734 = vsel %vm1046, %v1727, %v1731
      %v1735 = vsel %vm1046, %v1729, %v1733
      %v1736 = vsel %vm1046, %v1731, %v1727
      %v1737 = vsel %vm1046, %v1733, %v1729
      %v1738 = vmul.f32 %v1734, %v1052
      %v1739 = vmul.f32 %v1736, %v1056
      %v1740 = vmul.f32 %v1735, %v1052
      %v1741 = vmul.f32 %v1737, %v1056
      %1742 = vrot.lane.b32.xlu0 %v1484, 113
      %v1743 = vpop.permute.xlu0 %1742
      %1744 = vrot.lane.b32.xlu0 %v1486, 113
      %v1745 = vpop.permute.xlu0 %1744
      %1746 = vrot.lane.b32.xlu0 %v1485, 113
      %v1747 = vpop.permute.xlu0 %1746
      %1748 = vrot.lane.b32.xlu0 %v1487, 113
      %v1749 = vpop.permute.xlu0 %1748
      %v1750 = vsel %vm1063, %v1743, %v1747
      %v1751 = vsel %vm1063, %v1745, %v1749
      %v1752 = vsel %vm1063, %v1747, %v1743
      %v1753 = vsel %vm1063, %v1749, %v1745
      %v1754 = vmul.f32 %v1750, %v1069
      %v1755 = vmul.f32 %v1752, %v1073
      %v1756 = vmul.f32 %v1751, %v1069
      %v1757 = vmul.f32 %v1753, %v1073
      %1758 = vrot.lane.b32.xlu0 %v1484, 112
      %v1759 = vpop.permute.xlu0 %1758
      %1760 = vrot.lane.b32.xlu0 %v1486, 112
      %v1761 = vpop.permute.xlu0 %1760
      %1762 = vrot.lane.b32.xlu0 %v1485, 112
      %v1763 = vpop.permute.xlu0 %1762
      %1764 = vrot.lane.b32.xlu0 %v1487, 112
      %v1765 = vpop.permute.xlu0 %1764
      %v1766 = vsel %vm1080, %v1759, %v1763
      %v1767 = vsel %vm1080, %v1761, %v1765
      %v1768 = vsel %vm1080, %v1763, %v1759
      %v1769 = vsel %vm1080, %v1765, %v1761
      %v1770 = vmul.f32 %v1766, %v1086
      %v1771 = vmul.f32 %v1768, %v1090
      %v1772 = vmul.f32 %v1767, %v1086
      %v1773 = vmul.f32 %v1769, %v1090
      %1774 = vrot.lane.b32.xlu0 %v1484, 111
      %v1775 = vpop.permute.xlu0 %1774
      %1776 = vrot.lane.b32.xlu0 %v1486, 111
      %v1777 = vpop.permute.xlu0 %1776
      %1778 = vrot.lane.b32.xlu0 %v1485, 111
      %v1779 = vpop.permute.xlu0 %1778
      %1780 = vrot.lane.b32.xlu0 %v1487, 111
      %v1781 = vpop.permute.xlu0 %1780
      %v1782 = vsel %vm1097, %v1775, %v1779
      %v1783 = vsel %vm1097, %v1777, %v1781
      %v1784 = vsel %vm1097, %v1779, %v1775
      %v1785 = vsel %vm1097, %v1781, %v1777
      %v1786 = vmul.f32 %v1782, %v1103
      %v1787 = vmul.f32 %v1784, %v1107
      %v1788 = vmul.f32 %v1783, %v1103
      %v1789 = vmul.f32 %v1785, %v1107
      %v1790 = vld [vmem:[%s19] sm:$0xff]
      %v1791 = vld [vmem:[%s19 + $0x8] sm:$0xff]
      %v1792 = vld [vmem:[%s19 + $0x10] sm:$0xff]
      %v1793 = vld [vmem:[%s19 + $0x18] sm:$0xff]
      %vm1794 = vcmask 719872
      %v1796 = vsel %vm1794, %v1791, 0
      %v1799 = vsel %vm1794, %v1793, 0
      %1801 = vmatprep.subr.mxu0 %v1671
      %1802 = vmatpush1.msra.mxu0 %v1670
      %1803 = vmatprep.subr.mxu0 %v1673
      %1804 = vmatpush1.msra.mxu0 %v1672
      %1805 = vmatprep.subr.mxu0 %v1687
      %1806 = vmatpush1.msra.mxu0 %v1686
      %1807 = vmatprep.subr.mxu0 %v1689
      %1808 = vmatpush1.msra.mxu0 %v1688
      %1809 = vmatprep.subr.mxu0 %v1703
      %1810 = vmatpush1.msra.mxu0 %v1702
      %1811 = vmatprep.subr.mxu0 %v1705
      %1812 = vmatpush1.msra.mxu0 %v1704
      %1813 = vmatprep.subr.mxu0 %v1719
      %1814 = vmatpush1.msra.mxu0 %v1718
      %1815 = vmatprep.subr.mxu0 %v1721
      %1816 = vmatpush1.msra.mxu0 %v1720
      %1817 = vmatprep.subr.mxu0 %v1723
      %1818 = vmatpush1.msra.mxu0 %v1722
      %1819 = vmatprep.subr.mxu0 %v1725
      %1820 = vmatpush1.msra.mxu0 %v1724
      %1821 = vmatprep.subr.mxu0 %v1739
      %1822 = vmatpush1.msra.mxu0 %v1738
      %1823 = vmatprep.subr.mxu0 %v1741
      %1824 = vmatpush1.msra.mxu0 %v1740
      %1825 = vmatprep.subr.mxu0 %v1755
      %1826 = vmatpush1.msra.mxu0 %v1754
      %1827 = vmatprep.subr.mxu0 %v1757
      %1828 = vmatpush1.msra.mxu0 %v1756
      %1829 = vmatprep.subr.mxu0 %v1771
      %1830 = vmatpush1.msra.mxu0 %v1770
      %1831 = vmatprep.subr.mxu0 %v1773
      %1832 = vmatpush1.msra.mxu0 %v1772
      %1833 = vmatprep.subr.mxu0 %v1787
      %1834 = vmatpush1.msra.mxu0 %v1786
      %1835 = vmatprep.subr.mxu0 %v1789
      %1836 = vmatpush1.msra.mxu0 %v1788
      %1837 = vmatprep.subr.mxu0 %v980
      %1838 = vmatpush1.msra.mxu0 %v979
      %1839 = vmatprep.subr.mxu0 %v997
      %1840 = vmatpush1.msra.mxu0 %v996
      %1841 = vmatprep.subr.mxu0 %v1014
      %1842 = vmatpush1.msra.mxu0 %v1013
      %1843 = vmatprep.subr.mxu0 %v1031
      %1844 = vmatpush1.msra.mxu0 %v1030
      %1845 = vmatprep.subr.mxu0 %v1041
      %1846 = vmatpush1.msra.mxu0 %v1040
      %1847 = vmatprep.subr.mxu0 %v1058
      %1848 = vmatpush1.msra.mxu0 %v1057
      %1849 = vmatprep.subr.mxu0 %v1075
      %1850 = vmatpush1.msra.mxu0 %v1074
      %1851 = vmatprep.subr.mxu0 %v1092
      %1852 = vmatpush1.msra.mxu0 %v1091
      %1853 = vmatprep.subr.mxu0 %v1109
      %1854 = vmatpush1.msra.mxu0 %v1108
      %1855 = vmatprep.subr.mxu0 0.0
      %1856 = vmatpush1.msra.mxu0 0.0
      %1857 = vmatprep.subr.mxu0 0.0
      %1858 = vmatpush1.msra.mxu0 0.0
      %1859 = vmatprep.subr.mxu0 0.0
      %1860 = vmatpush1.msra.mxu0 0.0
      %1861 = vmatprep.subr.mxu0 0.0
      %1862 = vmatpush1.msra.mxu0 0.0
      %1863 = vmatprep.subr.mxu0 0.0
      %1864 = vmatpush1.msra.mxu0 0.0
      %1865 = vmatprep.mubr.f32.mxu0 %v1796
      %1866 = vmatmul.mubr.f32.gmra.mrb[0].mxu0 %v1790
      %v1867 = vpop.f32.mrb[0].mxu0
      %v1868 = vadd.f32 %v1654, %v1867
      %v1869 = vpop.f32.mrb[0].mxu0
      %v1870 = vadd.f32 %v1655, %v1869
      %1871 = vmatprep.mubr.f32.mxu0 %v1799
      %1872 = vmatmul.mubr.f32.gmra.mrb[0].mxu0 %v1792
      %v1873 = vpop.f32.mrb[0].mxu0
      %v1874 = vadd.f32 %v1656, %v1873
      %v1875 = vpop.f32.mrb[0].mxu0
      %v1876 = vadd.f32 %v1657, %v1875
      %1877 = vdwg.mxu0
      %v1878 = vld [vmem:[%s21] sm:$0xff]
      %v1879 = vld [vmem:[%s21 + $0x8] sm:$0xff]
      %1881 = vset.pattern.permute.xlu0 0
      %1882 = vperm.xlu0 %1881, %v1878
      %v1883 = vpop.permute.xlu0 %1882
      %1886 = vset.pattern.permute.xlu0 0
      %1887 = vperm.xlu0 %1886, %v1879
      %v1888 = vpop.permute.xlu0 %1887
      %v1890 = vmul.f32 %v1868, %v1883
      %v1891 = vmul.f32 %v1870, %v1883
      %v1892 = vmul.f32 %v1874, %v1888
      %v1893 = vmul.f32 %v1876, %v1888
      %v1894 = vld [vmem:[%s23] sm:$0xff]
      %v1895 = vld [vmem:[%s23 + $0x8] sm:$0xff]
      %1897 = vset.pattern.permute.xlu0 0
      %1898 = vperm.xlu0 %1897, %v1894
      %v1899 = vpop.permute.xlu0 %1898
      %1902 = vset.pattern.permute.xlu0 0
      %1903 = vperm.xlu0 %1902, %v1895
      %v1904 = vpop.permute.xlu0 %1903
      %v1906 = vadd.f32 %v1890, %v1899
      %v1907 = vadd.f32 %v1891, %v1899
      %v1908 = vadd.f32 %v1892, %v1904
      %v1909 = vadd.f32 %v1893, %v1904
      %v1910 = vmax.f32 %v1906, 0.0
      %v1911 = vmax.f32 %v1907, 0.0
      %v1912 = vmax.f32 %v1908, 0.0
      %v1913 = vmax.f32 %v1909, 0.0
      %v1914 = vld [vmem:[%s27] sm:$0xff]
      %v1915 = vld [vmem:[%s29] sm:$0xff]
      %1917 = vset.pattern.permute.xlu0 0
      %1918 = vperm.xlu0 %1917, %v1915
      %v1919 = vpop.permute.xlu0 %1918
      %v1922 = vsel %vm1368, %v1914, 0
      %1924 = vmatprep.subr.mxu0 %v1911
      %1925 = vmatpush1.msra.mxu0 %v1910
      %1926 = vmatprep.subr.mxu0 %v1913
      %1927 = vmatpush1.msra.mxu0 %v1912
      %1928 = vmatprep.subr.mxu0 0.0
      %1929 = vmatpush1.msra.mxu0 0.0
      %1930 = vmatprep.subr.mxu0 0.0
      %1931 = vmatpush1.msra.mxu0 0.0
      %1932 = vmatprep.subr.mxu0 0.0
      %1933 = vmatpush1.msra.mxu0 0.0
      %1934 = vmatprep.subr.mxu0 0.0
      %1935 = vmatpush1.msra.mxu0 0.0
      %1936 = vmatprep.subr.mxu0 0.0
      %1937 = vmatpush1.msra.mxu0 0.0
      %1938 = vmatprep.subr.mxu0 0.0
      %1939 = vmatpush1.msra.mxu0 0.0
      %1940 = vmatprep.subr.mxu0 0.0
      %1941 = vmatpush1.msra.mxu0 0.0
      %1942 = vmatprep.subr.mxu0 0.0
      %1943 = vmatpush1.msra.mxu0 0.0
      %1944 = vmatprep.subr.mxu0 0.0
      %1945 = vmatpush1.msra.mxu0 0.0
      %1946 = vmatprep.subr.mxu0 0.0
      %1947 = vmatpush1.msra.mxu0 0.0
      %1948 = vmatprep.subr.mxu0 0.0
      %1949 = vmatpush1.msra.mxu0 0.0
      %1950 = vmatprep.subr.mxu0 0.0
      %1951 = vmatpush1.msra.mxu0 0.0
      %1952 = vmatprep.subr.mxu0 0.0
      %1953 = vmatpush1.msra.mxu0 0.0
      %1954 = vmatprep.subr.mxu0 0.0
      %1955 = vmatpush1.msra.mxu0 0.0
      %1956 = vmatprep.subr.mxu0 0.0
      %1957 = vmatpush1.msra.mxu0 0.0
      %1958 = vmatprep.subr.mxu0 0.0
      %1959 = vmatpush1.msra.mxu0 0.0
      %1960 = vmatprep.subr.mxu0 0.0
      %1961 = vmatpush1.msra.mxu0 0.0
      %1962 = vmatprep.subr.mxu0 0.0
      %1963 = vmatpush1.msra.mxu0 0.0
      %1964 = vmatprep.subr.mxu0 0.0
      %1965 = vmatpush1.msra.mxu0 0.0
      %1966 = vmatprep.subr.mxu0 0.0
      %1967 = vmatpush1.msra.mxu0 0.0
      %1968 = vmatprep.subr.mxu0 0.0
      %1969 = vmatpush1.msra.mxu0 0.0
      %1970 = vmatprep.subr.mxu0 0.0
      %1971 = vmatpush1.msra.mxu0 0.0
      %1972 = vmatprep.subr.mxu0 0.0
      %1973 = vmatpush1.msra.mxu0 0.0
      %1974 = vmatprep.subr.mxu0 0.0
      %1975 = vmatpush1.msra.mxu0 0.0
      %1976 = vmatprep.subr.mxu0 0.0
      %1977 = vmatpush1.msra.mxu0 0.0
      %1978 = vmatprep.subr.mxu0 0.0
      %1979 = vmatpush1.msra.mxu0 0.0
      %1980 = vmatprep.subr.mxu0 0.0
      %1981 = vmatpush1.msra.mxu0 0.0
      %1982 = vmatprep.subr.mxu0 0.0
      %1983 = vmatpush1.msra.mxu0 0.0
      %1984 = vmatprep.subr.mxu0 0.0
      %1985 = vmatpush1.msra.mxu0 0.0
      %1986 = vmatprep.subr.mxu0 0.0
      %1987 = vmatpush1.msra.mxu0 0.0
      %1988 = vmatprep.mubr.f32.mxu0 0.0
      %1989 = vmatmul.mubr.f32.gmra.mrb[0].mxu0 %v1922
      %v1990 = vpop.f32.mrb[0].mxu0
      %v1991 = vadd.f32 %v1919, %v1990
      %v1992 = vpop.f32.mrb[0].mxu0
      %v1993 = vadd.f32 %v1919, %v1992
      %1994 = vdwg.mxu0
      %v1997 = vcombine.low %v1991, %v1993
      %1999 = vst [vmem:[%s951] sm:$0x77] %v1997
      %2000 = vrot.lane.b32.xlu0 %v1991, 17
      %v2001 = vpop.permute.xlu0 %2000
      %2002 = vrot.lane.b32.xlu0 %v1993, 17
      %v2003 = vpop.permute.xlu0 %2002
      %v2004 = vsel %vm968, %v2001, %v2003
      %v2005 = vsel %vm968, %v2003, %v2001
      %v2006 = vmul.f32 %v2005, %v974
      %v2007 = vmul.f32 %v2004, %v978
      %2008 = vrot.lane.b32.xlu0 %v1991, 16
      %v2009 = vpop.permute.xlu0 %2008
      %2010 = vrot.lane.b32.xlu0 %v1993, 16
      %v2011 = vpop.permute.xlu0 %2010
      %v2012 = vsel %vm985, %v2009, %v2011
      %v2013 = vsel %vm985, %v2011, %v2009
      %v2014 = vmul.f32 %v2013, %v991
      %v2015 = vmul.f32 %v2012, %v995
      %2016 = vrot.lane.b32.xlu0 %v1991, 15
      %v2017 = vpop.permute.xlu0 %2016
      %2018 = vrot.lane.b32.xlu0 %v1993, 15
      %v2019 = vpop.permute.xlu0 %2018
      %v2020 = vsel %vm1002, %v2017, %v2019
      %v2021 = vsel %vm1002, %v2019, %v2017
      %v2022 = vmul.f32 %v2021, %v1008
      %v2023 = vmul.f32 %v2020, %v1012
      %2024 = vrot.lane.b32.xlu0 %v1991, 1
      %v2025 = vpop.permute.xlu0 %2024
      %2026 = vrot.lane.b32.xlu0 %v1993, 1
      %v2027 = vpop.permute.xlu0 %2026
      %v2028 = vsel %vm1019, %v2025, %v2027
      %v2029 = vsel %vm1019, %v2027, %v2025
      %v2030 = vmul.f32 %v2029, %v1025
      %v2031 = vmul.f32 %v2028, %v1029
      %v2032 = vmul.f32 %v1991, %v1035
      %v2033 = vmul.f32 %v1993, %v1039
      %2034 = vrot.lane.b32.xlu0 %v1991, 127
      %v2035 = vpop.permute.xlu0 %2034
      %2036 = vrot.lane.b32.xlu0 %v1993, 127
      %v2037 = vpop.permute.xlu0 %2036
      %v2038 = vsel %vm1046, %v2035, %v2037
      %v2039 = vsel %vm1046, %v2037, %v2035
      %v2040 = vmul.f32 %v2038, %v1052
      %v2041 = vmul.f32 %v2039, %v1056
      %2042 = vrot.lane.b32.xlu0 %v1991, 113
      %v2043 = vpop.permute.xlu0 %2042
      %2044 = vrot.lane.b32.xlu0 %v1993, 113
      %v2045 = vpop.permute.xlu0 %2044
      %v2046 = vsel %vm1063, %v2043, %v2045
      %v2047 = vsel %vm1063, %v2045, %v2043
      %v2048 = vmul.f32 %v2046, %v1069
      %v2049 = vmul.f32 %v2047, %v1073
      %2050 = vrot.lane.b32.xlu0 %v1991, 112
      %v2051 = vpop.permute.xlu0 %2050
      %2052 = vrot.lane.b32.xlu0 %v1993, 112
      %v2053 = vpop.permute.xlu0 %2052
      %v2054 = vsel %vm1080, %v2051, %v2053
      %v2055 = vsel %vm1080, %v2053, %v2051
      %v2056 = vmul.f32 %v2054, %v1086
      %v2057 = vmul.f32 %v2055, %v1090
      %2058 = vrot.lane.b32.xlu0 %v1991, 111
      %v2059 = vpop.permute.xlu0 %2058
      %2060 = vrot.lane.b32.xlu0 %v1993, 111
      %v2061 = vpop.permute.xlu0 %2060
      %v2062 = vsel %vm1097, %v2059, %v2061
      %v2063 = vsel %vm1097, %v2061, %v2059
      %v2064 = vmul.f32 %v2062, %v1103
      %v2065 = vmul.f32 %v2063, %v1107
      %v2066 = vld [vmem:[%s31] sm:$0xff]
      %v2067 = vld [vmem:[%s31 + $0x8] sm:$0xff]
      %v2069 = vsel %vm1112, %v2066, 0
      %v2072 = vsel %vm1112, %v2067, 0
      %2074 = vmatprep.subr.mxu0 %v2007
      %2075 = vmatpush1.msra.mxu0 %v2006
      %2076 = vmatprep.subr.mxu0 %v2015
      %2077 = vmatpush1.msra.mxu0 %v2014
      %2078 = vmatprep.subr.mxu0 %v2023
      %2079 = vmatpush1.msra.mxu0 %v2022
      %2080 = vmatprep.subr.mxu0 %v2031
      %2081 = vmatpush1.msra.mxu0 %v2030
      %2082 = vmatprep.subr.mxu0 %v2033
      %2083 = vmatpush1.msra.mxu0 %v2032
      %2084 = vmatprep.subr.mxu0 %v2041
      %2085 = vmatpush1.msra.mxu0 %v2040
      %2086 = vmatprep.subr.mxu0 %v2049
      %2087 = vmatpush1.msra.mxu0 %v2048
      %2088 = vmatprep.subr.mxu0 %v2057
      %2089 = vmatpush1.msra.mxu0 %v2056
      %2090 = vmatprep.subr.mxu0 %v2065
      %2091 = vmatpush1.msra.mxu0 %v2064
      %2092 = vmatprep.subr.mxu0 0.0
      %2093 = vmatpush1.msra.mxu0 0.0
      %2094 = vmatprep.subr.mxu0 0.0
      %2095 = vmatpush1.msra.mxu0 0.0
      %2096 = vmatprep.subr.mxu0 0.0
      %2097 = vmatpush1.msra.mxu0 0.0
      %2098 = vmatprep.subr.mxu0 0.0
      %2099 = vmatpush1.msra.mxu0 0.0
      %2100 = vmatprep.subr.mxu0 0.0
      %2101 = vmatpush1.msra.mxu0 0.0
      %2102 = vmatprep.subr.mxu0 0.0
      %2103 = vmatpush1.msra.mxu0 0.0
      %2104 = vmatprep.subr.mxu0 0.0
      %2105 = vmatpush1.msra.mxu0 0.0
      %2106 = vmatprep.subr.mxu0 0.0
      %2107 = vmatpush1.msra.mxu0 0.0
      %2108 = vmatprep.subr.mxu0 0.0
      %2109 = vmatpush1.msra.mxu0 0.0
      %2110 = vmatprep.subr.mxu0 0.0
      %2111 = vmatpush1.msra.mxu0 0.0
      %2112 = vmatprep.subr.mxu0 0.0
      %2113 = vmatpush1.msra.mxu0 0.0
      %2114 = vmatprep.subr.mxu0 0.0
      %2115 = vmatpush1.msra.mxu0 0.0
      %2116 = vmatprep.subr.mxu0 0.0
      %2117 = vmatpush1.msra.mxu0 0.0
      %2118 = vmatprep.subr.mxu0 0.0
      %2119 = vmatpush1.msra.mxu0 0.0
      %2120 = vmatprep.subr.mxu0 0.0
      %2121 = vmatpush1.msra.mxu0 0.0
      %2122 = vmatprep.subr.mxu0 0.0
      %2123 = vmatpush1.msra.mxu0 0.0
      %2124 = vmatprep.subr.mxu0 0.0
      %2125 = vmatpush1.msra.mxu0 0.0
      %2126 = vmatprep.subr.mxu0 0.0
      %2127 = vmatpush1.msra.mxu0 0.0
      %2128 = vmatprep.subr.mxu0 0.0
      %2129 = vmatpush1.msra.mxu0 0.0
      %2130 = vmatprep.subr.mxu0 0.0
      %2131 = vmatpush1.msra.mxu0 0.0
      %2132 = vmatprep.subr.mxu0 0.0
      %2133 = vmatpush1.msra.mxu0 0.0
      %2134 = vmatprep.subr.mxu0 0.0
      %2135 = vmatpush1.msra.mxu0 0.0
      %2136 = vmatprep.subr.mxu0 0.0
      %2137 = vmatpush1.msra.mxu0 0.0
      %2138 = vmatprep.mubr.f32.mxu0 0.0
      %2139 = vmatmul.mubr.f32.gmra.mrb[0].mxu0 %v2069
      %v2140 = vpop.f32.mrb[0].mxu0
      %v2141 = vadd.f32 0.0, %v2140
      %v2142 = vpop.f32.mrb[0].mxu0
      %v2143 = vadd.f32 0.0, %v2142
      %2144 = vmatprep.mubr.f32.mxu0 0.0
      %2145 = vmatmul.mubr.f32.gmra.mrb[0].mxu0 %v2072
      %v2146 = vpop.f32.mrb[0].mxu0
      %v2147 = vadd.f32 0.0, %v2146
      %v2148 = vpop.f32.mrb[0].mxu0
      %v2149 = vadd.f32 0.0, %v2148
      %2150 = vdwg.mxu0
      %v2151 = vld [vmem:[%s33] sm:$0xff]
      %v2152 = vld [vmem:[%s33 + $0x8] sm:$0xff]
      %2154 = vset.pattern.permute.xlu0 0
      %2155 = vperm.xlu0 %2154, %v2151
      %v2156 = vpop.permute.xlu0 %2155
      %2159 = vset.pattern.permute.xlu0 0
      %2160 = vperm.xlu0 %2159, %v2152
      %v2161 = vpop.permute.xlu0 %2160
      %v2163 = vmul.f32 %v2141, %v2156
      %v2164 = vmul.f32 %v2143, %v2156
      %v2165 = vmul.f32 %v2147, %v2161
      %v2166 = vmul.f32 %v2149, %v2161
      %v2167 = vld [vmem:[%s35] sm:$0xff]
      %v2168 = vld [vmem:[%s35 + $0x8] sm:$0xff]
      %2170 = vset.pattern.permute.xlu0 0
      %2171 = vperm.xlu0 %2170, %v2167
      %v2172 = vpop.permute.xlu0 %2171
      %2175 = vset.pattern.permute.xlu0 0
      %2176 = vperm.xlu0 %2175, %v2168
      %v2177 = vpop.permute.xlu0 %2176
      %v2179 = vadd.f32 %v2163, %v2172
      %v2180 = vadd.f32 %v2164, %v2172
      %v2181 = vadd.f32 %v2165, %v2177
      %v2182 = vadd.f32 %v2166, %v2177
      %v2183 = vmax.f32 %v2179, 0.0
      %v2184 = vmax.f32 %v2180, 0.0
      %v2185 = vmax.f32 %v2181, 0.0
      %v2186 = vmax.f32 %v2182, 0.0
      %2187 = vrot.lane.b32.xlu0 %v2183, 17
      %v2188 = vpop.permute.xlu0 %2187
      %2189 = vrot.lane.b32.xlu0 %v2185, 17
      %v2190 = vpop.permute.xlu0 %2189
      %2191 = vrot.lane.b32.xlu0 %v2184, 17
      %v2192 = vpop.permute.xlu0 %2191
      %2193 = vrot.lane.b32.xlu0 %v2186, 17
      %v2194 = vpop.permute.xlu0 %2193
      %v2195 = vsel %vm968, %v2188, %v2192
      %v2196 = vsel %vm968, %v2190, %v2194
      %v2197 = vsel %vm968, %v2192, %v2188
      %v2198 = vsel %vm968, %v2194, %v2190
      %v2199 = vmul.f32 %v2197, %v974
      %v2200 = vmul.f32 %v2195, %v978
      %v2201 = vmul.f32 %v2198, %v974
      %v2202 = vmul.f32 %v2196, %v978
      %2203 = vrot.lane.b32.xlu0 %v2183, 16
      %v2204 = vpop.permute.xlu0 %2203
      %2205 = vrot.lane.b32.xlu0 %v2185, 16
      %v2206 = vpop.permute.xlu0 %2205
      %2207 = vrot.lane.b32.xlu0 %v2184, 16
      %v2208 = vpop.permute.xlu0 %2207
      %2209 = vrot.lane.b32.xlu0 %v2186, 16
      %v2210 = vpop.permute.xlu0 %2209
      %v2211 = vsel %vm985, %v2204, %v2208
      %v2212 = vsel %vm985, %v2206, %v2210
      %v2213 = vsel %vm985, %v2208, %v2204
      %v2214 = vsel %vm985, %v2210, %v2206
      %v2215 = vmul.f32 %v2213, %v991
      %v2216 = vmul.f32 %v2211, %v995
      %v2217 = vmul.f32 %v2214, %v991
      %v2218 = vmul.f32 %v2212, %v995
      %2219 = vrot.lane.b32.xlu0 %v2183, 15
      %v2220 = vpop.permute.xlu0 %2219
      %2221 = vrot.lane.b32.xlu0 %v2185, 15
      %v2222 = vpop.permute.xlu0 %2221
      %2223 = vrot.lane.b32.xlu0 %v2184, 15
      %v2224 = vpop.permute.xlu0 %2223
      %2225 = vrot.lane.b32.xlu0 %v2186, 15
      %v2226 = vpop.permute.xlu0 %2225
      %v2227 = vsel %vm1002, %v2220, %v2224
      %v2228 = vsel %vm1002, %v2222, %v2226
      %v2229 = vsel %vm1002, %v2224, %v2220
      %v2230 = vsel %vm1002, %v2226, %v2222
      %v2231 = vmul.f32 %v2229, %v1008
      %v2232 = vmul.f32 %v2227, %v1012
      %v2233 = vmul.f32 %v2230, %v1008
      %v2234 = vmul.f32 %v2228, %v1012
      %2235 = vrot.lane.b32.xlu0 %v2183, 1
      %v2236 = vpop.permute.xlu0 %2235
      %2237 = vrot.lane.b32.xlu0 %v2185, 1
      %v2238 = vpop.permute.xlu0 %2237
      %2239 = vrot.lane.b32.xlu0 %v2184, 1
      %v2240 = vpop.permute.xlu0 %2239
      %2241 = vrot.lane.b32.xlu0 %v2186, 1
      %v2242 = vpop.permute.xlu0 %2241
      %v2243 = vsel %vm1019, %v2236, %v2240
      %v2244 = vsel %vm1019, %v2238, %v2242
      %v2245 = vsel %vm1019, %v2240, %v2236
      %v2246 = vsel %vm1019, %v2242, %v2238
      %v2247 = vmul.f32 %v2245, %v1025
      %v2248 = vmul.f32 %v2243, %v1029
      %v2249 = vmul.f32 %v2246, %v1025
      %v2250 = vmul.f32 %v2244, %v1029
      %v2251 = vmul.f32 %v2183, %v1035
      %v2252 = vmul.f32 %v2184, %v1039
      %v2253 = vmul.f32 %v2185, %v1035
      %v2254 = vmul.f32 %v2186, %v1039
      %2255 = vrot.lane.b32.xlu0 %v2183, 127
      %v2256 = vpop.permute.xlu0 %2255
      %2257 = vrot.lane.b32.xlu0 %v2185, 127
      %v2258 = vpop.permute.xlu0 %2257
      %2259 = vrot.lane.b32.xlu0 %v2184, 127
      %v2260 = vpop.permute.xlu0 %2259
      %2261 = vrot.lane.b32.xlu0 %v2186, 127
      %v2262 = vpop.permute.xlu0 %2261
      %v2263 = vsel %vm1046, %v2256, %v2260
      %v2264 = vsel %vm1046, %v2258, %v2262
      %v2265 = vsel %vm1046, %v2260, %v2256
      %v2266 = vsel %vm1046, %v2262, %v2258
      %v2267 = vmul.f32 %v2263, %v1052
      %v2268 = vmul.f32 %v2265, %v1056
      %v2269 = vmul.f32 %v2264, %v1052
      %v2270 = vmul.f32 %v2266, %v1056
      %2271 = vrot.lane.b32.xlu0 %v2183, 113
      %v2272 = vpop.permute.xlu0 %2271
      %2273 = vrot.lane.b32.xlu0 %v2185, 113
      %v2274 = vpop.permute.xlu0 %2273
      %2275 = vrot.lane.b32.xlu0 %v2184, 113
      %v2276 = vpop.permute.xlu0 %2275
      %2277 = vrot.lane.b32.xlu0 %v2186, 113
      %v2278 = vpop.permute.xlu0 %2277
      %v2279 = vsel %vm1063, %v2272, %v2276
      %v2280 = vsel %vm1063, %v2274, %v2278
      %v2281 = vsel %vm1063, %v2276, %v2272
      %v2282 = vsel %vm1063, %v2278, %v2274
      %v2283 = vmul.f32 %v2279, %v1069
      %v2284 = vmul.f32 %v2281, %v1073
      %v2285 = vmul.f32 %v2280, %v1069
      %v2286 = vmul.f32 %v2282, %v1073
      %2287 = vrot.lane.b32.xlu0 %v2183, 112
      %v2288 = vpop.permute.xlu0 %2287
      %2289 = vrot.lane.b32.xlu0 %v2185, 112
      %v2290 = vpop.permute.xlu0 %2289
      %2291 = vrot.lane.b32.xlu0 %v2184, 112
      %v2292 = vpop.permute.xlu0 %2291
      %2293 = vrot.lane.b32.xlu0 %v2186, 112
      %v2294 = vpop.permute.xlu0 %2293
      %v2295 = vsel %vm1080, %v2288, %v2292
      %v2296 = vsel %vm1080, %v2290, %v2294
      %v2297 = vsel %vm1080, %v2292, %v2288
      %v2298 = vsel %vm1080, %v2294, %v2290
      %v2299 = vmul.f32 %v2295, %v1086
      %v2300 = vmul.f32 %v2297, %v1090
      %v2301 = vmul.f32 %v2296, %v1086
      %v2302 = vmul.f32 %v2298, %v1090
      %2303 = vrot.lane.b32.xlu0 %v2183, 111
      %v2304 = vpop.permute.xlu0 %2303
      %2305 = vrot.lane.b32.xlu0 %v2185, 111
      %v2306 = vpop.permute.xlu0 %2305
      %2307 = vrot.lane.b32.xlu0 %v2184, 111
      %v2308 = vpop.permute.xlu0 %2307
      %2309 = vrot.lane.b32.xlu0 %v2186, 111
      %v2310 = vpop.permute.xlu0 %2309
      %v2311 = vsel %vm1097, %v2304, %v2308
      %v2312 = vsel %vm1097, %v2306, %v2310
      %v2313 = vsel %vm1097, %v2308, %v2304
      %v2314 = vsel %vm1097, %v2310, %v2306
      %v2315 = vmul.f32 %v2311, %v1103
      %v2316 = vmul.f32 %v2313, %v1107
      %v2317 = vmul.f32 %v2312, %v1103
      %v2318 = vmul.f32 %v2314, %v1107
      %v2319 = vld [vmem:[%s37] sm:$0xff]
      %v2320 = vld [vmem:[%s37 + $0x8] sm:$0xff]
      %v2321 = vld [vmem:[%s37 + $0x10] sm:$0xff]
      %v2322 = vld [vmem:[%s37 + $0x18] sm:$0xff]
      %v2324 = vsel %vm1368, %v2320, 0
      %v2327 = vsel %vm1368, %v2322, 0
      %2329 = vmatprep.subr.mxu0 %v2200
      %2330 = vmatpush1.msra.mxu0 %v2199
      %2331 = vmatprep.subr.mxu0 %v2202
      %2332 = vmatpush1.msra.mxu0 %v2201
      %2333 = vmatprep.subr.mxu0 %v2216
      %2334 = vmatpush1.msra.mxu0 %v2215
      %2335 = vmatprep.subr.mxu0 %v2218
      %2336 = vmatpush1.msra.mxu0 %v2217
      %2337 = vmatprep.subr.mxu0 %v2232
      %2338 = vmatpush1.msra.mxu0 %v2231
      %2339 = vmatprep.subr.mxu0 %v2234
      %2340 = vmatpush1.msra.mxu0 %v2233
      %2341 = vmatprep.subr.mxu0 %v2248
      %2342 = vmatpush1.msra.mxu0 %v2247
      %2343 = vmatprep.subr.mxu0 %v2250
      %2344 = vmatpush1.msra.mxu0 %v2249
      %2345 = vmatprep.subr.mxu0 %v2252
      %2346 = vmatpush1.msra.mxu0 %v2251
      %2347 = vmatprep.subr.mxu0 %v2254
      %2348 = vmatpush1.msra.mxu0 %v2253
      %2349 = vmatprep.subr.mxu0 %v2268
      %2350 = vmatpush1.msra.mxu0 %v2267
      %2351 = vmatprep.subr.mxu0 %v2270
      %2352 = vmatpush1.msra.mxu0 %v2269
      %2353 = vmatprep.subr.mxu0 %v2284
      %2354 = vmatpush1.msra.mxu0 %v2283
      %2355 = vmatprep.subr.mxu0 %v2286
      %2356 = vmatpush1.msra.mxu0 %v2285
      %2357 = vmatprep.subr.mxu0 %v2300
      %2358 = vmatpush1.msra.mxu0 %v2299
      %2359 = vmatprep.subr.mxu0 %v2302
      %2360 = vmatpush1.msra.mxu0 %v2301
      %2361 = vmatprep.subr.mxu0 %v2316
      %2362 = vmatpush1.msra.mxu0 %v2315
      %2363 = vmatprep.subr.mxu0 %v2318
      %2364 = vmatpush1.msra.mxu0 %v2317
      %2365 = vmatprep.subr.mxu0 0.0
      %2366 = vmatpush1.msra.mxu0 0.0
      %2367 = vmatprep.subr.mxu0 0.0
      %2368 = vmatpush1.msra.mxu0 0.0
      %2369 = vmatprep.subr.mxu0 0.0
      %2370 = vmatpush1.msra.mxu0 0.0
      %2371 = vmatprep.subr.mxu0 0.0
      %2372 = vmatpush1.msra.mxu0 0.0
      %2373 = vmatprep.subr.mxu0 0.0
      %2374 = vmatpush1.msra.mxu0 0.0
      %2375 = vmatprep.subr.mxu0 0.0
      %2376 = vmatpush1.msra.mxu0 0.0
      %2377 = vmatprep.subr.mxu0 0.0
      %2378 = vmatpush1.msra.mxu0 0.0
      %2379 = vmatprep.subr.mxu0 0.0
      %2380 = vmatpush1.msra.mxu0 0.0
      %2381 = vmatprep.subr.mxu0 0.0
      %2382 = vmatpush1.msra.mxu0 0.0
      %2383 = vmatprep.subr.mxu0 0.0
      %2384 = vmatpush1.msra.mxu0 0.0
      %2385 = vmatprep.subr.mxu0 0.0
      %2386 = vmatpush1.msra.mxu0 0.0
      %2387 = vmatprep.subr.mxu0 0.0
      %2388 = vmatpush1.msra.mxu0 0.0
      %2389 = vmatprep.subr.mxu0 0.0
      %2390 = vmatpush1.msra.mxu0 0.0
      %2391 = vmatprep.subr.mxu0 0.0
      %2392 = vmatpush1.msra.mxu0 0.0
      %2393 = vmatprep.mubr.f32.mxu0 %v2324
      %2394 = vmatmul.mubr.f32.gmra.mrb[0].mxu0 %v2319
      %v2395 = vpop.f32.mrb[0].mxu0
      %v2396 = vadd.f32 0.0, %v2395
      %v2397 = vpop.f32.mrb[0].mxu0
      %v2398 = vadd.f32 0.0, %v2397
      %2399 = vmatprep.mubr.f32.mxu0 %v2327
      %2400 = vmatmul.mubr.f32.gmra.mrb[0].mxu0 %v2321
      %v2401 = vpop.f32.mrb[0].mxu0
      %v2402 = vadd.f32 0.0, %v2401
      %v2403 = vpop.f32.mrb[0].mxu0
      %v2404 = vadd.f32 0.0, %v2403
      %2405 = vdwg.mxu0
      %v2406 = vld [vmem:[%s39] sm:$0xff]
      %v2407 = vld [vmem:[%s39 + $0x8] sm:$0xff]
      %2409 = vset.pattern.permute.xlu0 0
      %2410 = vperm.xlu0 %2409, %v2406
      %v2411 = vpop.permute.xlu0 %2410
      %2414 = vset.pattern.permute.xlu0 0
      %2415 = vperm.xlu0 %2414, %v2407
      %v2416 = vpop.permute.xlu0 %2415
      %v2418 = vmul.f32 %v2396, %v2411
      %v2419 = vmul.f32 %v2398, %v2411
      %v2420 = vmul.f32 %v2402, %v2416
      %v2421 = vmul.f32 %v2404, %v2416
      %v2422 = vld [vmem:[%s41] sm:$0xff]
      %v2423 = vld [vmem:[%s41 + $0x8] sm:$0xff]
      %2425 = vset.pattern.permute.xlu0 0
      %2426 = vperm.xlu0 %2425, %v2422
      %v2427 = vpop.permute.xlu0 %2426
      %2430 = vset.pattern.permute.xlu0 0
      %2431 = vperm.xlu0 %2430, %v2423
      %v2432 = vpop.permute.xlu0 %2431
      %v2434 = vadd.f32 %v2418, %v2427
      %v2435 = vadd.f32 %v2419, %v2427
      %v2436 = vadd.f32 %v2420, %v2432
      %v2437 = vadd.f32 %v2421, %v2432
      %v2438 = vmax.f32 %v2434, 0.0
      %v2439 = vmax.f32 %v2435, 0.0
      %v2440 = vmax.f32 %v2436, 0.0
      %v2441 = vmax.f32 %v2437, 0.0
      %2442 = vrot.lane.b32.xlu0 %v2438, 17
      %v2443 = vpop.permute.xlu0 %2442
      %2444 = vrot.lane.b32.xlu0 %v2440, 17
      %v2445 = vpop.permute.xlu0 %2444
      %2446 = vrot.lane.b32.xlu0 %v2439, 17
      %v2447 = vpop.permute.xlu0 %2446
      %2448 = vrot.lane.b32.xlu0 %v2441, 17
      %v2449 = vpop.permute.xlu0 %2448
      %v2450 = vsel %vm968, %v2443, %v2447
      %v2451 = vsel %vm968, %v2445, %v2449
      %v2452 = vsel %vm968, %v2447, %v2443
      %v2453 = vsel %vm968, %v2449, %v2445
      %v2454 = vmul.f32 %v2452, %v974
      %v2455 = vmul.f32 %v2450, %v978
      %v2456 = vmul.f32 %v2453, %v974
      %v2457 = vmul.f32 %v2451, %v978
      %2458 = vrot.lane.b32.xlu0 %v2438, 16
      %v2459 = vpop.permute.xlu0 %2458
      %2460 = vrot.lane.b32.xlu0 %v2440, 16
      %v2461 = vpop.permute.xlu0 %2460
      %2462 = vrot.lane.b32.xlu0 %v2439, 16
      %v2463 = vpop.permute.xlu0 %2462
      %2464 = vrot.lane.b32.xlu0 %v2441, 16
      %v2465 = vpop.permute.xlu0 %2464
      %v2466 = vsel %vm985, %v2459, %v2463
      %v2467 = vsel %vm985, %v2461, %v2465
      %v2468 = vsel %vm985, %v2463, %v2459
      %v2469 = vsel %vm985, %v2465, %v2461
      %v2470 = vmul.f32 %v2468, %v991
      %v2471 = vmul.f32 %v2466, %v995
      %v2472 = vmul.f32 %v2469, %v991
      %v2473 = vmul.f32 %v2467, %v995
      %2474 = vrot.lane.b32.xlu0 %v2438, 15
      %v2475 = vpop.permute.xlu0 %2474
      %2476 = vrot.lane.b32.xlu0 %v2440, 15
      %v2477 = vpop.permute.xlu0 %2476
      %2478 = vrot.lane.b32.xlu0 %v2439, 15
      %v2479 = vpop.permute.xlu0 %2478
      %2480 = vrot.lane.b32.xlu0 %v2441, 15
      %v2481 = vpop.permute.xlu0 %2480
      %v2482 = vsel %vm1002, %v2475, %v2479
      %v2483 = vsel %vm1002, %v2477, %v2481
      %v2484 = vsel %vm1002, %v2479, %v2475
      %v2485 = vsel %vm1002, %v2481, %v2477
      %v2486 = vmul.f32 %v2484, %v1008
      %v2487 = vmul.f32 %v2482, %v1012
      %v2488 = vmul.f32 %v2485, %v1008
      %v2489 = vmul.f32 %v2483, %v1012
      %2490 = vrot.lane.b32.xlu0 %v2438, 1
      %v2491 = vpop.permute.xlu0 %2490
      %2492 = vrot.lane.b32.xlu0 %v2440, 1
      %v2493 = vpop.permute.xlu0 %2492
      %2494 = vrot.lane.b32.xlu0 %v2439, 1
      %v2495 = vpop.permute.xlu0 %2494
      %2496 = vrot.lane.b32.xlu0 %v2441, 1
      %v2497 = vpop.permute.xlu0 %2496
      %v2498 = vsel %vm1019, %v2491, %v2495
      %v2499 = vsel %vm1019, %v2493, %v2497
      %v2500 = vsel %vm1019, %v2495, %v2491
      %v2501 = vsel %vm1019, %v2497, %v2493
      %v2502 = vmul.f32 %v2500, %v1025
      %v2503 = vmul.f32 %v2498, %v1029
      %v2504 = vmul.f32 %v2501, %v1025
      %v2505 = vmul.f32 %v2499, %v1029
      %v2506 = vmul.f32 %v2438, %v1035
      %v2507 = vmul.f32 %v2439, %v1039
      %v2508 = vmul.f32 %v2440, %v1035
      %v2509 = vmul.f32 %v2441, %v1039
      %2510 = vrot.lane.b32.xlu0 %v2438, 127
      %v2511 = vpop.permute.xlu0 %2510
      %2512 = vrot.lane.b32.xlu0 %v2440, 127
      %v2513 = vpop.permute.xlu0 %2512
      %2514 = vrot.lane.b32.xlu0 %v2439, 127
      %v2515 = vpop.permute.xlu0 %2514
      %2516 = vrot.lane.b32.xlu0 %v2441, 127
      %v2517 = vpop.permute.xlu0 %2516
      %v2518 = vsel %vm1046, %v2511, %v2515
      %v2519 = vsel %vm1046, %v2513, %v2517
      %v2520 = vsel %vm1046, %v2515, %v2511
      %v2521 = vsel %vm1046, %v2517, %v2513
      %v2522 = vmul.f32 %v2518, %v1052
      %v2523 = vmul.f32 %v2520, %v1056
      %v2524 = vmul.f32 %v2519, %v1052
      %v2525 = vmul.f32 %v2521, %v1056
      %2526 = vrot.lane.b32.xlu0 %v2438, 113
      %v2527 = vpop.permute.xlu0 %2526
      %2528 = vrot.lane.b32.xlu0 %v2440, 113
      %v2529 = vpop.permute.xlu0 %2528
      %2530 = vrot.lane.b32.xlu0 %v2439, 113
      %v2531 = vpop.permute.xlu0 %2530
      %2532 = vrot.lane.b32.xlu0 %v2441, 113
      %v2533 = vpop.permute.xlu0 %2532
      %v2534 = vsel %vm1063, %v2527, %v2531
      %v2535 = vsel %vm1063, %v2529, %v2533
      %v2536 = vsel %vm1063, %v2531, %v2527
      %v2537 = vsel %vm1063, %v2533, %v2529
      %v2538 = vmul.f32 %v2534, %v1069
      %v2539 = vmul.f32 %v2536, %v1073
      %v2540 = vmul.f32 %v2535, %v1069
      %v2541 = vmul.f32 %v2537, %v1073
      %2542 = vrot.lane.b32.xlu0 %v2438, 112
      %v2543 = vpop.permute.xlu0 %2542
      %2544 = vrot.lane.b32.xlu0 %v2440, 112
      %v2545 = vpop.permute.xlu0 %2544
      %2546 = vrot.lane.b32.xlu0 %v2439, 112
      %v2547 = vpop.permute.xlu0 %2546
      %2548 = vrot.lane.b32.xlu0 %v2441, 112
      %v2549 = vpop.permute.xlu0 %2548
      %v2550 = vsel %vm1080, %v2543, %v2547
      %v2551 = vsel %vm1080, %v2545, %v2549
      %v2552 = vsel %vm1080, %v2547, %v2543
      %v2553 = vsel %vm1080, %v2549, %v2545
      %v2554 = vmul.f32 %v2550, %v1086
      %v2555 = vmul.f32 %v2552, %v1090
      %v2556 = vmul.f32 %v2551, %v1086
      %v2557 = vmul.f32 %v2553, %v1090
      %2558 = vrot.lane.b32.xlu0 %v2438, 111
      %v2559 = vpop.permute.xlu0 %2558
      %2560 = vrot.lane.b32.xlu0 %v2440, 111
      %v2561 = vpop.permute.xlu0 %2560
      %2562 = vrot.lane.b32.xlu0 %v2439, 111
      %v2563 = vpop.permute.xlu0 %2562
      %2564 = vrot.lane.b32.xlu0 %v2441, 111
      %v2565 = vpop.permute.xlu0 %2564
      %v2566 = vsel %vm1097, %v2559, %v2563
      %v2567 = vsel %vm1097, %v2561, %v2565
      %v2568 = vsel %vm1097, %v2563, %v2559
      %v2569 = vsel %vm1097, %v2565, %v2561
      %v2570 = vmul.f32 %v2566, %v1103
      %v2571 = vmul.f32 %v2568, %v1107
      %v2572 = vmul.f32 %v2567, %v1103
      %v2573 = vmul.f32 %v2569, %v1107
      %v2574 = vld [vmem:[%s43] sm:$0xff]
      %v2575 = vld [vmem:[%s43 + $0x8] sm:$0xff]
      %v2576 = vld [vmem:[%s43 + $0x10] sm:$0xff]
      %v2577 = vld [vmem:[%s43 + $0x18] sm:$0xff]
      %v2579 = vsel %vm1368, %v2575, 0
      %v2582 = vsel %vm1368, %v2577, 0
      %2584 = vmatprep.subr.mxu0 %v2455
      %2585 = vmatpush1.msra.mxu0 %v2454
      %2586 = vmatprep.subr.mxu0 %v2457
      %2587 = vmatpush1.msra.mxu0 %v2456
      %2588 = vmatprep.subr.mxu0 %v2471
      %2589 = vmatpush1.msra.mxu0 %v2470
      %2590 = vmatprep.subr.mxu0 %v2473
      %2591 = vmatpush1.msra.mxu0 %v2472
      %2592 = vmatprep.subr.mxu0 %v2487
      %2593 = vmatpush1.msra.mxu0 %v2486
      %2594 = vmatprep.subr.mxu0 %v2489
      %2595 = vmatpush1.msra.mxu0 %v2488
      %2596 = vmatprep.subr.mxu0 %v2503
      %2597 = vmatpush1.msra.mxu0 %v2502
      %2598 = vmatprep.subr.mxu0 %v2505
      %2599 = vmatpush1.msra.mxu0 %v2504
      %2600 = vmatprep.subr.mxu0 %v2507
      %2601 = vmatpush1.msra.mxu0 %v2506
      %2602 = vmatprep.subr.mxu0 %v2509
      %2603 = vmatpush1.msra.mxu0 %v2508
      %2604 = vmatprep.subr.mxu0 %v2523
      %2605 = vmatpush1.msra.mxu0 %v2522
      %2606 = vmatprep.subr.mxu0 %v2525
      %2607 = vmatpush1.msra.mxu0 %v2524
      %2608 = vmatprep.subr.mxu0 %v2539
      %2609 = vmatpush1.msra.mxu0 %v2538
      %2610 = vmatprep.subr.mxu0 %v2541
      %2611 = vmatpush1.msra.mxu0 %v2540
      %2612 = vmatprep.subr.mxu0 %v2555
      %2613 = vmatpush1.msra.mxu0 %v2554
      %2614 = vmatprep.subr.mxu0 %v2557
      %2615 = vmatpush1.msra.mxu0 %v2556
      %2616 = vmatprep.subr.mxu0 %v2571
      %2617 = vmatpush1.msra.mxu0 %v2570
      %2618 = vmatprep.subr.mxu0 %v2573
      %2619 = vmatpush1.msra.mxu0 %v2572
      %2620 = vmatprep.subr.mxu0 0.0
      %2621 = vmatpush1.msra.mxu0 0.0
      %2622 = vmatprep.subr.mxu0 0.0
      %2623 = vmatpush1.msra.mxu0 0.0
      %2624 = vmatprep.subr.mxu0 0.0
      %2625 = vmatpush1.msra.mxu0 0.0
      %2626 = vmatprep.subr.mxu0 0.0
      %2627 = vmatpush1.msra.mxu0 0.0
      %2628 = vmatprep.subr.mxu0 0.0
      %2629 = vmatpush1.msra.mxu0 0.0
      %2630 = vmatprep.subr.mxu0 0.0
      %2631 = vmatpush1.msra.mxu0 0.0
      %2632 = vmatprep.subr.mxu0 0.0
      %2633 = vmatpush1.msra.mxu0 0.0
      %2634 = vmatprep.subr.mxu0 0.0
      %2635 = vmatpush1.msra.mxu0 0.0
      %2636 = vmatprep.subr.mxu0 0.0
      %2637 = vmatpush1.msra.mxu0 0.0
      %2638 = vmatprep.subr.mxu0 0.0
      %2639 = vmatpush1.msra.mxu0 0.0
      %2640 = vmatprep.subr.mxu0 0.0
      %2641 = vmatpush1.msra.mxu0 0.0
      %2642 = vmatprep.subr.mxu0 0.0
      %2643 = vmatpush1.msra.mxu0 0.0
      %2644 = vmatprep.subr.mxu0 0.0
      %2645 = vmatpush1.msra.mxu0 0.0
      %2646 = vmatprep.subr.mxu0 0.0
      %2647 = vmatpush1.msra.mxu0 0.0
      %2648 = vmatprep.mubr.f32.mxu0 %v2579
      %2649 = vmatmul.mubr.f32.gmra.mrb[0].mxu0 %v2574
      %v2650 = vpop.f32.mrb[0].mxu0
      %v2651 = vadd.f32 0.0, %v2650
      %v2652 = vpop.f32.mrb[0].mxu0
      %v2653 = vadd.f32 0.0, %v2652
      %2654 = vmatprep.mubr.f32.mxu0 %v2582
      %2655 = vmatmul.mubr.f32.gmra.mrb[0].mxu0 %v2576
      %v2656 = vpop.f32.mrb[0].mxu0
      %v2657 = vadd.f32 0.0, %v2656
      %v2658 = vpop.f32.mrb[0].mxu0
      %v2659 = vadd.f32 0.0, %v2658
      %2660 = vdwg.mxu0
      %v2661 = vld [vmem:[%s45] sm:$0xff]
      %v2662 = vld [vmem:[%s45 + $0x8] sm:$0xff]
      %2664 = vset.pattern.permute.xlu0 0
      %2665 = vperm.xlu0 %2664, %v2661
      %v2666 = vpop.permute.xlu0 %2665
      %2669 = vset.pattern.permute.xlu0 0
      %2670 = vperm.xlu0 %2669, %v2662
      %v2671 = vpop.permute.xlu0 %2670
      %v2673 = vmul.f32 %v2651, %v2666
      %v2674 = vmul.f32 %v2653, %v2666
      %v2675 = vmul.f32 %v2657, %v2671
      %v2676 = vmul.f32 %v2659, %v2671
      %v2677 = vld [vmem:[%s47] sm:$0xff]
      %v2678 = vld [vmem:[%s47 + $0x8] sm:$0xff]
      %2680 = vset.pattern.permute.xlu0 0
      %2681 = vperm.xlu0 %2680, %v2677
      %v2682 = vpop.permute.xlu0 %2681
      %2685 = vset.pattern.permute.xlu0 0
      %2686 = vperm.xlu0 %2685, %v2678
      %v2687 = vpop.permute.xlu0 %2686
      %v2689 = vadd.f32 %v2673, %v2682
      %v2690 = vadd.f32 %v2674, %v2682
      %v2691 = vadd.f32 %v2675, %v2687
      %v2692 = vadd.f32 %v2676, %v2687
      %v2693 = vmax.f32 %v2689, 0.0
      %v2694 = vmax.f32 %v2690, 0.0
      %v2695 = vmax.f32 %v2691, 0.0
      %v2696 = vmax.f32 %v2692, 0.0
      %2697 = vrot.lane.b32.xlu0 %v2693, 17
      %v2698 = vpop.permute.xlu0 %2697
      %2699 = vrot.lane.b32.xlu0 %v2695, 17
      %v2700 = vpop.permute.xlu0 %2699
      %2701 = vrot.lane.b32.xlu0 %v2694, 17
      %v2702 = vpop.permute.xlu0 %2701
      %2703 = vrot.lane.b32.xlu0 %v2696, 17
      %v2704 = vpop.permute.xlu0 %2703
      %v2705 = vsel %vm968, %v2698, %v2702
      %v2706 = vsel %vm968, %v2700, %v2704
      %v2707 = vsel %vm968, %v2702, %v2698
      %v2708 = vsel %vm968, %v2704, %v2700
      %v2709 = vmul.f32 %v2707, %v974
      %v2710 = vmul.f32 %v2705, %v978
      %v2711 = vmul.f32 %v2708, %v974
      %v2712 = vmul.f32 %v2706, %v978
      %2713 = vrot.lane.b32.xlu0 %v2693, 16
      %v2714 = vpop.permute.xlu0 %2713
      %2715 = vrot.lane.b32.xlu0 %v2695, 16
      %v2716 = vpop.permute.xlu0 %2715
      %2717 = vrot.lane.b32.xlu0 %v2694, 16
      %v2718 = vpop.permute.xlu0 %2717
      %2719 = vrot.lane.b32.xlu0 %v2696, 16
      %v2720 = vpop.permute.xlu0 %2719
      %v2721 = vsel %vm985, %v2714, %v2718
      %v2722 = vsel %vm985, %v2716, %v2720
      %v2723 = vsel %vm985, %v2718, %v2714
      %v2724 = vsel %vm985, %v2720, %v2716
      %v2725 = vmul.f32 %v2723, %v991
      %v2726 = vmul.f32 %v2721, %v995
      %v2727 = vmul.f32 %v2724, %v991
      %v2728 = vmul.f32 %v2722, %v995
      %2729 = vrot.lane.b32.xlu0 %v2693, 15
      %v2730 = vpop.permute.xlu0 %2729
      %2731 = vrot.lane.b32.xlu0 %v2695, 15
      %v2732 = vpop.permute.xlu0 %2731
      %2733 = vrot.lane.b32.xlu0 %v2694, 15
      %v2734 = vpop.permute.xlu0 %2733
      %2735 = vrot.lane.b32.xlu0 %v2696, 15
      %v2736 = vpop.permute.xlu0 %2735
      %v2737 = vsel %vm1002, %v2730, %v2734
      %v2738 = vsel %vm1002, %v2732, %v2736
      %v2739 = vsel %vm1002, %v2734, %v2730
      %v2740 = vsel %vm1002, %v2736, %v2732
      %v2741 = vmul.f32 %v2739, %v1008
      %v2742 = vmul.f32 %v2737, %v1012
      %v2743 = vmul.f32 %v2740, %v1008
      %v2744 = vmul.f32 %v2738, %v1012
      %2745 = vrot.lane.b32.xlu0 %v2693, 1
      %v2746 = vpop.permute.xlu0 %2745
      %2747 = vrot.lane.b32.xlu0 %v2695, 1
      %v2748 = vpop.permute.xlu0 %2747
      %2749 = vrot.lane.b32.xlu0 %v2694, 1
      %v2750 = vpop.permute.xlu0 %2749
      %2751 = vrot.lane.b32.xlu0 %v2696, 1
      %v2752 = vpop.permute.xlu0 %2751
      %v2753 = vsel %vm1019, %v2746, %v2750
      %v2754 = vsel %vm1019, %v2748, %v2752
      %v2755 = vsel %vm1019, %v2750, %v2746
      %v2756 = vsel %vm1019, %v2752, %v2748
      %v2757 = vmul.f32 %v2755, %v1025
      %v2758 = vmul.f32 %v2753, %v1029
      %v2759 = vmul.f32 %v2756, %v1025
      %v2760 = vmul.f32 %v2754, %v1029
      %v2761 = vmul.f32 %v2693, %v1035
      %v2762 = vmul.f32 %v2694, %v1039
      %v2763 = vmul.f32 %v2695, %v1035
      %v2764 = vmul.f32 %v2696, %v1039
      %2765 = vrot.lane.b32.xlu0 %v2693, 127
      %v2766 = vpop.permute.xlu0 %2765
      %2767 = vrot.lane.b32.xlu0 %v2695, 127
      %v2768 = vpop.permute.xlu0 %2767
      %2769 = vrot.lane.b32.xlu0 %v2694, 127
      %v2770 = vpop.permute.xlu0 %2769
      %2771 = vrot.lane.b32.xlu0 %v2696, 127
      %v2772 = vpop.permute.xlu0 %2771
      %v2773 = vsel %vm1046, %v2766, %v2770
      %v2774 = vsel %vm1046, %v2768, %v2772
      %v2775 = vsel %vm1046, %v2770, %v2766
      %v2776 = vsel %vm1046, %v2772, %v2768
      %v2777 = vmul.f32 %v2773, %v1052
      %v2778 = vmul.f32 %v2775, %v1056
      %v2779 = vmul.f32 %v2774, %v1052
      %v2780 = vmul.f32 %v2776, %v1056
      %2781 = vrot.lane.b32.xlu0 %v2693, 113
      %v2782 = vpop.permute.xlu0 %2781
      %2783 = vrot.lane.b32.xlu0 %v2695, 113
      %v2784 = vpop.permute.xlu0 %2783
      %2785 = vrot.lane.b32.xlu0 %v2694, 113
      %v2786 = vpop.permute.xlu0 %2785
      %2787 = vrot.lane.b32.xlu0 %v2696, 113
      %v2788 = vpop.permute.xlu0 %2787
      %v2789 = vsel %vm1063, %v2782, %v2786
      %v2790 = vsel %vm1063, %v2784, %v2788
      %v2791 = vsel %vm1063, %v2786, %v2782
      %v2792 = vsel %vm1063, %v2788, %v2784
      %v2793 = vmul.f32 %v2789, %v1069
      %v2794 = vmul.f32 %v2791, %v1073
      %v2795 = vmul.f32 %v2790, %v1069
      %v2796 = vmul.f32 %v2792, %v1073
      %2797 = vrot.lane.b32.xlu0 %v2693, 112
      %v2798 = vpop.permute.xlu0 %2797
      %2799 = vrot.lane.b32.xlu0 %v2695, 112
      %v2800 = vpop.permute.xlu0 %2799
      %2801 = vrot.lane.b32.xlu0 %v2694, 112
      %v2802 = vpop.permute.xlu0 %2801
      %2803 = vrot.lane.b32.xlu0 %v2696, 112
      %v2804 = vpop.permute.xlu0 %2803
      %v2805 = vsel %vm1080, %v2798, %v2802
      %v2806 = vsel %vm1080, %v2800, %v2804
      %v2807 = vsel %vm1080, %v2802, %v2798
      %v2808 = vsel %vm1080, %v2804, %v2800
      %v2809 = vmul.f32 %v2805, %v1086
      %v2810 = vmul.f32 %v2807, %v1090
      %v2811 = vmul.f32 %v2806, %v1086
      %v2812 = vmul.f32 %v2808, %v1090
      %2813 = vrot.lane.b32.xlu0 %v2693, 111
      %v2814 = vpop.permute.xlu0 %2813
      %2815 = vrot.lane.b32.xlu0 %v2695, 111
      %v2816 = vpop.permute.xlu0 %2815
      %2817 = vrot.lane.b32.xlu0 %v2694, 111
      %v2818 = vpop.permute.xlu0 %2817
      %2819 = vrot.lane.b32.xlu0 %v2696, 111
      %v2820 = vpop.permute.xlu0 %2819
      %v2821 = vsel %vm1097, %v2814, %v2818
      %v2822 = vsel %vm1097, %v2816, %v2820
      %v2823 = vsel %vm1097, %v2818, %v2814
      %v2824 = vsel %vm1097, %v2820, %v2816
      %v2825 = vmul.f32 %v2821, %v1103
      %v2826 = vmul.f32 %v2823, %v1107
      %v2827 = vmul.f32 %v2822, %v1103
      %v2828 = vmul.f32 %v2824, %v1107
      %v2829 = vld [vmem:[%s49] sm:$0xff]
      %v2830 = vld [vmem:[%s49 + $0x8] sm:$0xff]
      %v2832 = vsel %vm1368, %v2830, 0
      %2834 = vmatprep.subr.mxu0 %v2710
      %2835 = vmatpush1.msra.mxu0 %v2709
      %2836 = vmatprep.subr.mxu0 %v2712
      %2837 = vmatpush1.msra.mxu0 %v2711
      %2838 = vmatprep.subr.mxu0 %v2726
      %2839 = vmatpush1.msra.mxu0 %v2725
      %2840 = vmatprep.subr.mxu0 %v2728
      %2841 = vmatpush1.msra.mxu0 %v2727
      %2842 = vmatprep.subr.mxu0 %v2742
      %2843 = vmatpush1.msra.mxu0 %v2741
      %2844 = vmatprep.subr.mxu0 %v2744
      %2845 = vmatpush1.msra.mxu0 %v2743
      %2846 = vmatprep.subr.mxu0 %v2758
      %2847 = vmatpush1.msra.mxu0 %v2757
      %2848 = vmatprep.subr.mxu0 %v2760
      %2849 = vmatpush1.msra.mxu0 %v2759
      %2850 = vmatprep.subr.mxu0 %v2762
      %2851 = vmatpush1.msra.mxu0 %v2761
      %2852 = vmatprep.subr.mxu0 %v2764
      %2853 = vmatpush1.msra.mxu0 %v2763
      %2854 = vmatprep.subr.mxu0 %v2778
      %2855 = vmatpush1.msra.mxu0 %v2777
      %2856 = vmatprep.subr.mxu0 %v2780
      %2857 = vmatpush1.msra.mxu0 %v2779
      %2858 = vmatprep.subr.mxu0 %v2794
      %2859 = vmatpush1.msra.mxu0 %v2793
      %2860 = vmatprep.subr.mxu0 %v2796
      %2861 = vmatpush1.msra.mxu0 %v2795
      %2862 = vmatprep.subr.mxu0 %v2810
      %2863 = vmatpush1.msra.mxu0 %v2809
      %2864 = vmatprep.subr.mxu0 %v2812
      %2865 = vmatpush1.msra.mxu0 %v2811
      %2866 = vmatprep.subr.mxu0 %v2826
      %2867 = vmatpush1.msra.mxu0 %v2825
      %2868 = vmatprep.subr.mxu0 %v2828
      %2869 = vmatpush1.msra.mxu0 %v2827
      %2870 = vmatprep.subr.mxu0 0.0
      %2871 = vmatpush1.msra.mxu0 0.0
      %2872 = vmatprep.subr.mxu0 0.0
      %2873 = vmatpush1.msra.mxu0 0.0
      %2874 = vmatprep.subr.mxu0 0.0
      %2875 = vmatpush1.msra.mxu0 0.0
      %2876 = vmatprep.subr.mxu0 0.0
      %2877 = vmatpush1.msra.mxu0 0.0
      %2878 = vmatprep.subr.mxu0 0.0
      %2879 = vmatpush1.msra.mxu0 0.0
      %2880 = vmatprep.subr.mxu0 0.0
      %2881 = vmatpush1.msra.mxu0 0.0
      %2882 = vmatprep.subr.mxu0 0.0
      %2883 = vmatpush1.msra.mxu0 0.0
      %2884 = vmatprep.subr.mxu0 0.0
      %2885 = vmatpush1.msra.mxu0 0.0
      %2886 = vmatprep.subr.mxu0 0.0
      %2887 = vmatpush1.msra.mxu0 0.0
      %2888 = vmatprep.subr.mxu0 0.0
      %2889 = vmatpush1.msra.mxu0 0.0
      %2890 = vmatprep.subr.mxu0 0.0
      %2891 = vmatpush1.msra.mxu0 0.0
      %2892 = vmatprep.subr.mxu0 0.0
      %2893 = vmatpush1.msra.mxu0 0.0
      %2894 = vmatprep.subr.mxu0 0.0
      %2895 = vmatpush1.msra.mxu0 0.0
      %2896 = vmatprep.subr.mxu0 0.0
      %2897 = vmatpush1.msra.mxu0 0.0
      %2898 = vmatprep.mubr.f32.mxu0 %v2832
      %2899 = vmatmul.mubr.f32.gmra.mrb[0].mxu0 %v2829
      %v2900 = vpop.f32.mrb[0].mxu0
      %v2901 = vadd.f32 0.0, %v2900
      %v2902 = vpop.f32.mrb[0].mxu0
      %v2903 = vadd.f32 0.0, %v2902
      %2904 = vdwg.mxu0
      %v2905 = vld [vmem:[%s51] sm:$0xff]
      %2907 = vset.pattern.permute.xlu0 0
      %2908 = vperm.xlu0 %2907, %v2905
      %v2909 = vpop.permute.xlu0 %2908
      %v2911 = vmul.f32 %v2901, %v2909
      %v2912 = vmul.f32 %v2903, %v2909
      %v2913 = vld [vmem:[%s53] sm:$0xff]
      %2915 = vset.pattern.permute.xlu0 0
      %2916 = vperm.xlu0 %2915, %v2913
      %v2917 = vpop.permute.xlu0 %2916
      %v2919 = vadd.f32 %v2911, %v2917
      %v2920 = vadd.f32 %v2912, %v2917
      %v2921 = vmax.f32 %v2919, 0.0
      %v2922 = vmax.f32 %v2920, 0.0
      %v2923 = vld [vmem:[%s55] sm:$0xff]
      %v2925 = vsel %vm1515, %v2923, 0
      %2927 = vmatprep.subr.mxu0 %v2922
      %2928 = vmatpush1.msra.mxu0 %v2921
      %2929 = vmatprep.subr.mxu0 0.0
      %2930 = vmatpush1.msra.mxu0 0.0
      %2931 = vmatprep.subr.mxu0 0.0
      %2932 = vmatpush1.msra.mxu0 0.0
      %2933 = vmatprep.subr.mxu0 0.0
      %2934 = vmatpush1.msra.mxu0 0.0
      %2935 = vmatprep.subr.mxu0 0.0
      %2936 = vmatpush1.msra.mxu0 0.0
      %2937 = vmatprep.subr.mxu0 0.0
      %2938 = vmatpush1.msra.mxu0 0.0
      %2939 = vmatprep.subr.mxu0 0.0
      %2940 = vmatpush1.msra.mxu0 0.0
      %2941 = vmatprep.subr.mxu0 0.0
      %2942 = vmatpush1.msra.mxu0 0.0
      %2943 = vmatprep.subr.mxu0 0.0
      %2944 = vmatpush1.msra.mxu0 0.0
      %2945 = vmatprep.subr.mxu0 0.0
      %2946 = vmatpush1.msra.mxu0 0.0
      %2947 = vmatprep.subr.mxu0 0.0
      %2948 = vmatpush1.msra.mxu0 0.0
      %2949 = vmatprep.subr.mxu0 0.0
      %2950 = vmatpush1.msra.mxu0 0.0
      %2951 = vmatprep.subr.mxu0 0.0
      %2952 = vmatpush1.msra.mxu0 0.0
      %2953 = vmatprep.subr.mxu0 0.0
      %2954 = vmatpush1.msra.mxu0 0.0
      %2955 = vmatprep.subr.mxu0 0.0
      %2956 = vmatpush1.msra.mxu0 0.0
      %2957 = vmatprep.subr.mxu0 0.0
      %2958 = vmatpush1.msra.mxu0 0.0
      %2959 = vmatprep.subr.mxu0 0.0
      %2960 = vmatpush1.msra.mxu0 0.0
      %2961 = vmatprep.subr.mxu0 0.0
      %2962 = vmatpush1.msra.mxu0 0.0
      %2963 = vmatprep.subr.mxu0 0.0
      %2964 = vmatpush1.msra.mxu0 0.0
      %2965 = vmatprep.subr.mxu0 0.0
      %2966 = vmatpush1.msra.mxu0 0.0
      %2967 = vmatprep.subr.mxu0 0.0
      %2968 = vmatpush1.msra.mxu0 0.0
      %2969 = vmatprep.subr.mxu0 0.0
      %2970 = vmatpush1.msra.mxu0 0.0
      %2971 = vmatprep.subr.mxu0 0.0
      %2972 = vmatpush1.msra.mxu0 0.0
      %2973 = vmatprep.subr.mxu0 0.0
      %2974 = vmatpush1.msra.mxu0 0.0
      %2975 = vmatprep.subr.mxu0 0.0
      %2976 = vmatpush1.msra.mxu0 0.0
      %2977 = vmatprep.subr.mxu0 0.0
      %2978 = vmatpush1.msra.mxu0 0.0
      %2979 = vmatprep.subr.mxu0 0.0
      %2980 = vmatpush1.msra.mxu0 0.0
      %2981 = vmatprep.subr.mxu0 0.0
      %2982 = vmatpush1.msra.mxu0 0.0
      %2983 = vmatprep.subr.mxu0 0.0
      %2984 = vmatpush1.msra.mxu0 0.0
      %2985 = vmatprep.subr.mxu0 0.0
      %2986 = vmatpush1.msra.mxu0 0.0
      %2987 = vmatprep.subr.mxu0 0.0
      %2988 = vmatpush1.msra.mxu0 0.0
      %2989 = vmatprep.subr.mxu0 0.0
      %2990 = vmatpush1.msra.mxu0 0.0
      %2991 = vmatprep.mubr.f32.mxu0 0.0
      %2992 = vmatmul.mubr.f32.gmra.mrb[0].mxu0 %v2925
      %v2993 = vpop.f32.mrb[0].mxu0
      %v2994 = vadd.f32 0.0, %v2993
      %v2995 = vpop.f32.mrb[0].mxu0
      %v2996 = vadd.f32 0.0, %v2995
      %2997 = vdwg.mxu0
      %v2998 = vadd.f32 %v2994, %v2996
      %2999 = vadd.xlane.f32.xlu0 %v2998
      %v3000 = vpop.xlane.xlu0 %2999
      %v3001 = vmul.f32 %v3000, 0.00390625
      %v3002 = vld [vmem:[%s57] sm:$0xff]
      %v3003 = vadd.f32 %v3001, %v3002
      %vm3004 = vcmask 7168
      %3005 = vst.msk [vmem:[%s955] sm:$0xff] %vm3004, %v3003
      %p3006 = scmp.lt.s32.totalorder %s73, 1
      %s3007 = scalar_select %p3006, %s73, 1
      %s3008 = smul.addr %s3007, 2
      %s3009 = smul.addr %s3008, 4
      %s3010 = scalar_lea.vmem %s59, %s3009
      %p3011 = scmp.lt.s32.totalorder %s73, 1
      %s3012 = scalar_select %p3011, %s73, 1
      %s3013 = smul.addr %s3012, 8
      %s3014 = scalar_lea.vmem %s61, %s3013
      // Predicated region
      $region137: #{encoder_decoder_forward.1} parent=135 // pred_check
        %p3015 = pneg %p710
      $region138: #{encoder_decoder_forward.1} parent=135 // pred_check_branch
        %3017 = sbr.rel (%p3015) target = $region140
      $region139: #{encoder_decoder_forward.1} parent=135 // pred_region
        _
      $region140: #{encoder_decoder_forward.1} parent=135 // pred_fallthru
        _
      // Predicated region
      $region141: #{encoder_decoder_forward.1} parent=135 // pred_check
        %p3018 = pneg %p736
      $region142: #{encoder_decoder_forward.1} parent=135 // pred_check_branch
        %3020 = sbr.rel (%p3018) target = $region144
      $region143: #{encoder_decoder_forward.1} parent=135 // pred_region
        _
      $region144: #{encoder_decoder_forward.1} parent=135 // pred_fallthru
        _
    $region136: #{encoder_decoder_forward.1} parent=5 // pred_fallthru
      _
    %p3021 = scmp.le.s32.totalorder 2, %s68
    // Predicated region
    $region145: #{encoder_decoder_forward.1} parent=5 // pred_check
      %p3022 = pneg %p3021
    $region146: #{encoder_decoder_forward.1} parent=5 // pred_check_branch
      %3024 = sbr.rel (%p3022) target = $region148
    $region147: #{encoder_decoder_forward.1} parent=5 // pred_region
      %s3025 = ssub.s32 %s68, 2
      // Predicated region
      $region149: #{encoder_decoder_forward.1} parent=147 // pred_check
        %p3026 = pneg %p716
      $region150: #{encoder_decoder_forward.1} parent=147 // pred_check_branch
        %3028 = sbr.rel (%p3026) target = $region152
      $region151: #{encoder_decoder_forward.1} parent=147 // pred_region
        %p3029 = scmp.lt.s32.totalorder %s74, 1
        %s3030 = scalar_select %p3029, %s74, 1
        %s3031 = smul.addr %s3030, 2
        %s3032 = smul.addr %s3031, 4
        %s3033 = scalar_lea.vmem %s59, %s3032
      $region152: #{encoder_decoder_forward.1} parent=147 // pred_fallthru
        _
      // Predicated region
      $region153: #{encoder_decoder_forward.1} parent=147 // pred_check
        %p3034 = pneg %p742
      $region154: #{encoder_decoder_forward.1} parent=147 // pred_check_branch
        %3036 = sbr.rel (%p3034) target = $region156
      $region155: #{encoder_decoder_forward.1} parent=147 // pred_region
        %p3037 = scmp.lt.s32.totalorder %s74, 1
        %s3038 = scalar_select %p3037, %s74, 1
        %s3039 = smul.addr %s3038, 8
        %s3040 = scalar_lea.vmem %s61, %s3039
      $region156: #{encoder_decoder_forward.1} parent=147 // pred_fallthru
        _
    $region148: #{encoder_decoder_forward.1} parent=5 // pred_fallthru
      _
  $region6: #{encoder_decoder_forward.1} parent=0 // loop_footer
    %s72 = sadd.s32 1, %s68
  $region7: #{encoder_decoder_forward.1} parent=0 // loop_footer_branch
    %67 = sbr.rel target = $region3
  $region8: #{encoder_decoder_forward.1} parent=0 // loop_exit
    _

</llo_original>
